<compile_context>
chip_gen: v6e
topology: v6e:2x2x1
jax: 0.10.0
libtpu: 0.0.40
codegen_flags: <defaults>
</compile_context>

<pallas_src>
from functools import partial

import jax
import jax.numpy as jnp
from jax import lax
from jax.experimental import pallas as pl
from jax.experimental.pallas import tpu as pltpu


def attention_kernel(n_heads, d_head, scale, eps,
                     x_ref, g_ref, b_ref, wq_ref, wk_ref, wv_ref, wo_ref,
                     out_ref, attn_ref):
    """One grid step = one batch element, fully fused attention.

    x_ref    : [1, T, D]      input tokens
    g_ref    : [1, D]         LayerNorm gamma
    b_ref    : [1, D]         LayerNorm beta
    wq/k/v   : [D, inner]     projection weights (pre-transposed, x @ W)
    wo_ref   : [inner, D]     output projection weight (pre-transposed)
    out_ref  : [1, T, D]      attention output
    attn_ref : [1, H, T, T]   post-softmax attention maps
    """
    T = x_ref.shape[1]
    D = x_ref.shape[2]

    x = x_ref[0, :, :]                                     # [T, D]

    # ---- LayerNorm (fused; eps matches torch default) ----
    mean = jnp.mean(x, axis=-1, keepdims=True)
    xc = x - mean
    var = jnp.mean(xc * xc, axis=-1, keepdims=True)
    xn = xc * lax.rsqrt(var + eps) * g_ref[...] + b_ref[...]     # [T, D]

    # ---- QKV projections: one MXU matmul each over the whole token block ----
    q = jnp.dot(xn, wq_ref[...], preferred_element_type=jnp.float32) * scale
    k = jnp.dot(xn, wk_ref[...], preferred_element_type=jnp.float32)
    v = jnp.dot(xn, wv_ref[...], preferred_element_type=jnp.float32)

    acc = jnp.zeros((T, D), jnp.float32)

    # Short static unroll over heads (n_heads is small & fixed).
    for h in range(n_heads):
        s0 = h * d_head
        qh = q[:, s0:s0 + d_head]                          # [T, dh]
        kh = k[:, s0:s0 + d_head]                          # [T, dh]
        vh = v[:, s0:s0 + d_head]                          # [T, dh]

        # sim = qh @ kh.T  (rhs-transposed dot_general, no explicit transpose)
        sim = lax.dot_general(qh, kh, (((1,), (1,)), ((), ())),
                              preferred_element_type=jnp.float32)   # [T, T]

        m = jnp.max(sim, axis=-1, keepdims=True)
        e = jnp.exp(sim - m)
        attn_h = e / jnp.sum(e, axis=-1, keepdims=True)
        attn_ref[0, h, :, :] = attn_h.astype(attn_ref.dtype)

        oh = jnp.dot(attn_h, vh, preferred_element_type=jnp.float32)       # [T, dh]
        # out = concat_h(oh) @ Wo^T  ==  sum_h  oh @ Wo_t[h*dh:(h+1)*dh, :]
        acc = acc + jnp.dot(oh, wo_ref[s0:s0 + d_head, :],
                            preferred_element_type=jnp.float32)            # [T, D]

    out_ref[0, :, :] = acc.astype(out_ref.dtype)           # single contiguous store


def attention(x, gamma, beta, wq, wk, wv, wo, *, n_heads, d_head, eps=1e-5):
    """Forward of ft_transformer.Attention (only_cls=False, dropout=0.0).

    x        : [B, T, D]
    gamma/β  : [D]                      (LayerNorm affine)
    wq/wk/wv : [inner, D]  torch layout (inner = n_heads * d_head)
    wo       : [D, inner]  torch layout
    returns  : (out [B, T, D], attn [B, H, T, T])
    """
    B, T, D = x.shape
    inner = n_heads * d_head
    assert wq.shape == (inner, D) and wk.shape == (inner, D)
    assert wv.shape == (inner, D) and wo.shape == (D, inner)
    scale = float(d_head) ** -0.5

    # One-time parameter prep: torch [out, in] -> [in, out] so the kernel does x @ W.
    wq_t, wk_t, wv_t, wo_t = wq.T, wk.T, wv.T, wo.T
    g2 = gamma.reshape(1, D)
    b2 = beta.reshape(1, D)

    kernel = partial(attention_kernel, n_heads, d_head, scale, eps)

    grid_spec = pltpu.PrefetchScalarGridSpec(
        num_scalar_prefetch=0,
        grid=(B,),
        in_specs=[
            pl.BlockSpec((1, T, D), lambda b: (b, 0, 0)),          # x
            pl.BlockSpec((1, D), lambda b: (0, 0)),                # gamma
            pl.BlockSpec((1, D), lambda b: (0, 0)),                # beta
            pl.BlockSpec((D, inner), lambda b: (0, 0)),            # Wq^T  (VMEM-resident)
            pl.BlockSpec((D, inner), lambda b: (0, 0)),            # Wk^T
            pl.BlockSpec((D, inner), lambda b: (0, 0)),            # Wv^T
            pl.BlockSpec((inner, D), lambda b: (0, 0)),            # Wo^T
        ],
        out_specs=(
            pl.BlockSpec((1, T, D), lambda b: (b, 0, 0)),              # out
            pl.BlockSpec((1, n_heads, T, T), lambda b: (b, 0, 0, 0)),  # attn
        ),
    )

    out, attn = pl.pallas_call(
        kernel,
        out_shape=(jax.ShapeDtypeStruct((B, T, D), x.dtype),
                   jax.ShapeDtypeStruct((B, n_heads, T, T), x.dtype)),
        grid_spec=grid_spec,
        compiler_params=pltpu.CompilerParams(
            dimension_semantics=("parallel",)),      # megacore split on v7x
    )(x, g2, b2, wq_t, wk_t, wv_t, wo_t)
    return out, attn


def attention_reference(x, gamma, beta, wq, wk, wv, wo, n_heads, d_head, eps=1e-5):
    """Pure-JAX mirror of the PyTorch forward."""
    prec = jax.lax.Precision.HIGHEST
    B, T, D = x.shape
    mean = jnp.mean(x, axis=-1, keepdims=True)
    var = jnp.mean((x - mean) ** 2, axis=-1, keepdims=True)
    xn = (x - mean) * lax.rsqrt(var + eps) * gamma + beta

    q = jnp.einsum('btd,ed->bte', xn, wq, precision=prec)
    k = jnp.einsum('btd,ed->bte', xn, wk, precision=prec)
    v = jnp.einsum('btd,ed->bte', xn, wv, precision=prec)

    def split(t):  # b n (h d) -> b h n d
        return t.reshape(B, T, n_heads, d_head).transpose(0, 2, 1, 3)

    q, k, v = split(q), split(k), split(v)
    q = q * (float(d_head) ** -0.5)
    sim = jnp.einsum('bhid,bhjd->bhij', q, k, precision=prec)
    attn = jax.nn.softmax(sim, axis=-1)
    out = jnp.einsum('bhij,bhjd->bhid', attn, v, precision=prec)
    out = out.transpose(0, 2, 1, 3).reshape(B, T, n_heads * d_head)
    out = jnp.einsum('bti,di->btd', out, wo, precision=prec)
    return out, attn


if __name__ == "__main__":
    # Small config consistent with the module defaults.
    B, T = 2, 8
    d_embedding = 32
    n_heads = 8
    d_head = 64
    inner = n_heads * d_head

    key = jax.random.PRNGKey(0)
    ks = jax.random.split(key, 7)

    # torch nn.Linear-style init (U(-1/sqrt(fan_in), 1/sqrt(fan_in))) keeps the
    # logits well-conditioned so the softmax is smooth.
    bd = 1.0 / (d_embedding ** 0.5)
    bo = 1.0 / (inner ** 0.5)
    wq = jax.random.uniform(ks[0], (inner, d_embedding), jnp.float32, -bd, bd)
    wk = jax.random.uniform(ks[1], (inner, d_embedding), jnp.float32, -bd, bd)
    wv = jax.random.uniform(ks[2], (inner, d_embedding), jnp.float32, -bd, bd)
    wo = jax.random.uniform(ks[3], (d_embedding, inner), jnp.float32, -bo, bo)
    gamma = 1.0 + 0.1 * jax.random.normal(ks[4], (d_embedding,), jnp.float32)
    beta = 0.1 * jax.random.normal(ks[5], (d_embedding,), jnp.float32)
    x = jax.random.normal(ks[6], (B, T, d_embedding), jnp.float32)

    out, attn = attention(x, gamma, beta, wq, wk, wv, wo,
                          n_heads=n_heads, d_head=d_head)
    out = jax.block_until_ready(out)
    attn = jax.block_until_ready(attn)

    ref_out, ref_attn = attention_reference(x, gamma, beta, wq, wk, wv, wo,
                                            n_heads, d_head)

    assert out.shape == (B, T, d_embedding)
    assert attn.shape == (B, n_heads, T, T)
    assert jnp.allclose(out, ref_out, atol=5e-3, rtol=5e-3), \
        float(jnp.max(jnp.abs(out - ref_out)))
    assert jnp.allclose(attn, ref_attn, atol=5e-3, rtol=5e-3), \
        float(jnp.max(jnp.abs(attn - ref_attn)))
    print("KERNEL_OK")
</pallas_src>

<mosaic_0001>
module attributes {stable_mosaic.version = 11 : i64} {
  func.func @attention_kernel(%arg0: i32, %arg1: memref<1x8x32xf32, #tpu.memory_space<vmem>>, %arg2: memref<1x32xf32, #tpu.memory_space<vmem>>, %arg3: memref<1x32xf32, #tpu.memory_space<vmem>>, %arg4: memref<32x512xf32, #tpu.memory_space<vmem>>, %arg5: memref<32x512xf32, #tpu.memory_space<vmem>>, %arg6: memref<32x512xf32, #tpu.memory_space<vmem>>, %arg7: memref<512x32xf32, #tpu.memory_space<vmem>>, %arg8: memref<1x8x32xf32, #tpu.memory_space<vmem>>, %arg9: memref<1x8x8x8xf32, #tpu.memory_space<vmem>>) attributes {dimension_semantics = [#tpu.dimension_semantics<parallel>], iteration_bounds = array<i64: 2>, scalar_prefetch = 0 : i64, scratch_operands = 0 : i64, tpu.core_type = #tpu.core_type<tc>, window_params = [{transform_indices = @transform_0, window_bounds = array<i64: 1, 8, 32>}, {pipeline_mode = #tpu.pipeline_mode<synchronous>, transform_indices = @transform_1, window_bounds = array<i64: 1, 32>}, {pipeline_mode = #tpu.pipeline_mode<synchronous>, transform_indices = @transform_2, window_bounds = array<i64: 1, 32>}, {pipeline_mode = #tpu.pipeline_mode<synchronous>, transform_indices = @transform_3, window_bounds = array<i64: 32, 512>}, {pipeline_mode = #tpu.pipeline_mode<synchronous>, transform_indices = @transform_4, window_bounds = array<i64: 32, 512>}, {pipeline_mode = #tpu.pipeline_mode<synchronous>, transform_indices = @transform_5, window_bounds = array<i64: 32, 512>}, {pipeline_mode = #tpu.pipeline_mode<synchronous>, transform_indices = @transform_6, window_bounds = array<i64: 512, 32>}, {transform_indices = @transform_7, window_bounds = array<i64: 1, 8, 32>}, {transform_indices = @transform_8, window_bounds = array<i64: 1, 8, 8, 8>}]} {
    %c0 = arith.constant 0 : index
    %c0_0 = arith.constant 0 : index
    %c0_1 = arith.constant 0 : index
    %0 = vector.load %arg1[%c0, %c0_0, %c0_1] : memref<1x8x32xf32, #tpu.memory_space<vmem>>, vector<1x8x32xf32>
    %1 = vector.shape_cast %0 : vector<1x8x32xf32> to vector<8x32xf32>
    %cst = arith.constant dense<0.000000e+00> : vector<8xf32>
    %2 = vector.multi_reduction <add>, %1, %cst [1] : vector<8x32xf32> to vector<8xf32>
    %3 = vector.shape_cast %2 : vector<8xf32> to vector<8x1xf32>
    %cst_2 = arith.constant 3.200000e+01 : f32
    %4 = vector.broadcast %cst_2 : f32 to vector<8x1xf32>
    %5 = arith.divf %3, %4 : vector<8x1xf32>
    %6 = vector.broadcast %5 : vector<8x1xf32> to vector<8x32xf32>
    %7 = arith.subf %1, %6 : vector<8x32xf32>
    %8 = arith.mulf %7, %7 : vector<8x32xf32>
    %cst_3 = arith.constant dense<0.000000e+00> : vector<8xf32>
    %9 = vector.multi_reduction <add>, %8, %cst_3 [1] : vector<8x32xf32> to vector<8xf32>
    %10 = vector.shape_cast %9 : vector<8xf32> to vector<8x1xf32>
    %cst_4 = arith.constant 3.200000e+01 : f32
    %11 = vector.broadcast %cst_4 : f32 to vector<8x1xf32>
    %12 = arith.divf %10, %11 : vector<8x1xf32>
    %cst_5 = arith.constant 9.99999974E-6 : f32
    %13 = vector.broadcast %cst_5 : f32 to vector<8x1xf32>
    %14 = arith.addf %12, %13 : vector<8x1xf32>
    %15 = math.rsqrt %14 : vector<8x1xf32>
    %16 = vector.broadcast %15 : vector<8x1xf32> to vector<8x32xf32>
    %17 = arith.mulf %7, %16 : vector<8x32xf32>
    %c0_6 = arith.constant 0 : index
    %c0_7 = arith.constant 0 : index
    %18 = vector.load %arg2[%c0_6, %c0_7] : memref<1x32xf32, #tpu.memory_space<vmem>>, vector<1x32xf32>
    %19 = vector.broadcast %18 : vector<1x32xf32> to vector<8x32xf32>
    %20 = arith.mulf %17, %19 : vector<8x32xf32>
    %c0_8 = arith.constant 0 : index
    %c0_9 = arith.constant 0 : index
    %21 = vector.load %arg3[%c0_8, %c0_9] : memref<1x32xf32, #tpu.memory_space<vmem>>, vector<1x32xf32>
    %22 = vector.broadcast %21 : vector<1x32xf32> to vector<8x32xf32>
    %23 = arith.addf %20, %22 : vector<8x32xf32>
    %c0_10 = arith.constant 0 : index
    %c0_11 = arith.constant 0 : index
    %24 = vector.load %arg4[%c0_10, %c0_11] : memref<32x512xf32, #tpu.memory_space<vmem>>, vector<32x512xf32>
    %cst_12 = arith.constant dense<0.000000e+00> : vector<8x512xf32>
    %25 = tpu.matmul %23, %24, %cst_12 {dimension_numbers = #tpu.dot_dimension_numbers<[1], [0], [0], [1], [0, 0, 1, 1], [], []>} : vector<8x32xf32>, vector<32x512xf32>, vector<8x512xf32> -> vector<8x512xf32>
    %cst_13 = arith.constant 1.250000e-01 : f32
    %26 = vector.broadcast %cst_13 : f32 to vector<8x512xf32>
    %27 = arith.mulf %25, %26 : vector<8x512xf32>
    %c0_14 = arith.constant 0 : index
    %c0_15 = arith.constant 0 : index
    %28 = vector.load %arg5[%c0_14, %c0_15] : memref<32x512xf32, #tpu.memory_space<vmem>>, vector<32x512xf32>
    %cst_16 = arith.constant dense<0.000000e+00> : vector<8x512xf32>
    %29 = tpu.matmul %23, %28, %cst_16 {dimension_numbers = #tpu.dot_dimension_numbers<[1], [0], [0], [1], [0, 0, 1, 1], [], []>} : vector<8x32xf32>, vector<32x512xf32>, vector<8x512xf32> -> vector<8x512xf32>
    %c0_17 = arith.constant 0 : index
    %c0_18 = arith.constant 0 : index
    %30 = vector.load %arg6[%c0_17, %c0_18] : memref<32x512xf32, #tpu.memory_space<vmem>>, vector<32x512xf32>
    %cst_19 = arith.constant dense<0.000000e+00> : vector<8x512xf32>
    %31 = tpu.matmul %23, %30, %cst_19 {dimension_numbers = #tpu.dot_dimension_numbers<[1], [0], [0], [1], [0, 0, 1, 1], [], []>} : vector<8x32xf32>, vector<32x512xf32>, vector<8x512xf32> -> vector<8x512xf32>
    %cst_20 = arith.constant 0.000000e+00 : f32
    %32 = vector.broadcast %cst_20 : f32 to vector<8x32xf32>
    %33 = vector.extract_strided_slice %27 {offsets = [0, 0], sizes = [8, 64], strides = [1, 1]} : vector<8x512xf32> to vector<8x64xf32>
    %34 = vector.extract_strided_slice %29 {offsets = [0, 0], sizes = [8, 64], strides = [1, 1]} : vector<8x512xf32> to vector<8x64xf32>
    %35 = vector.extract_strided_slice %31 {offsets = [0, 0], sizes = [8, 64], strides = [1, 1]} : vector<8x512xf32> to vector<8x64xf32>
    %cst_21 = arith.constant dense<0.000000e+00> : vector<8x8xf32>
    %36 = tpu.matmul %33, %34, %cst_21 {dimension_numbers = #tpu.dot_dimension_numbers<[1], [1], [0], [0], [0, 0, 1, 0], [], []>} : vector<8x64xf32>, vector<8x64xf32>, vector<8x8xf32> -> vector<8x8xf32>
    %cst_22 = arith.constant dense<0xFF800000> : vector<8xf32>
    %37 = vector.multi_reduction <maximumf>, %36, %cst_22 [1] : vector<8x8xf32> to vector<8xf32>
    %38 = vector.shape_cast %37 : vector<8xf32> to vector<8x1xf32>
    %39 = vector.broadcast %38 : vector<8x1xf32> to vector<8x8xf32>
    %40 = arith.subf %36, %39 : vector<8x8xf32>
    %41 = math.exp %40 : vector<8x8xf32>
    %cst_23 = arith.constant dense<0.000000e+00> : vector<8xf32>
    %42 = vector.multi_reduction <add>, %41, %cst_23 [1] : vector<8x8xf32> to vector<8xf32>
    %43 = vector.shape_cast %42 : vector<8xf32> to vector<8x1xf32>
    %44 = vector.broadcast %43 : vector<8x1xf32> to vector<8x8xf32>
    %45 = arith.divf %41, %44 : vector<8x8xf32>
    %c0_24 = arith.constant 0 : index
    %c0_25 = arith.constant 0 : index
    %c0_26 = arith.constant 0 : index
    %c0_27 = arith.constant 0 : index
    %46 = vector.load %arg9[%c0_24, %c0_25, %c0_26, %c0_27] : memref<1x8x8x8xf32, #tpu.memory_space<vmem>>, vector<1x1x8x8xf32>
    %47 = vector.shape_cast %46 : vector<1x1x8x8xf32> to vector<8x8xf32>
    %48 = vector.shape_cast %45 : vector<8x8xf32> to vector<1x1x8x8xf32>
    tpu.vector_store %arg9[%c0_24, %c0_25, %c0_26, %c0_27], %48 {strides = array<i32>} : memref<1x8x8x8xf32, #tpu.memory_space<vmem>>, vector<1x1x8x8xf32>,
    %cst_28 = arith.constant dense<0.000000e+00> : vector<8x64xf32>
    %49 = tpu.matmul %45, %35, %cst_28 {dimension_numbers = #tpu.dot_dimension_numbers<[1], [0], [0], [1], [0, 0, 1, 1], [], []>} : vector<8x8xf32>, vector<8x64xf32>, vector<8x64xf32> -> vector<8x64xf32>
    %c0_29 = arith.constant 0 : index
    %c0_30 = arith.constant 0 : index
    %50 = vector.load %arg7[%c0_29, %c0_30] : memref<512x32xf32, #tpu.memory_space<vmem>>, vector<64x32xf32>
    %cst_31 = arith.constant dense<0.000000e+00> : vector<8x32xf32>
    %51 = tpu.matmul %49, %50, %cst_31 {dimension_numbers = #tpu.dot_dimension_numbers<[1], [0], [0], [1], [0, 0, 1, 1], [], []>} : vector<8x64xf32>, vector<64x32xf32>, vector<8x32xf32> -> vector<8x32xf32>
    %52 = arith.addf %32, %51 : vector<8x32xf32>
    %53 = vector.extract_strided_slice %27 {offsets = [0, 64], sizes = [8, 64], strides = [1, 1]} : vector<8x512xf32> to vector<8x64xf32>
    %54 = vector.extract_strided_slice %29 {offsets = [0, 64], sizes = [8, 64], strides = [1, 1]} : vector<8x512xf32> to vector<8x64xf32>
    %55 = vector.extract_strided_slice %31 {offsets = [0, 64], sizes = [8, 64], strides = [1, 1]} : vector<8x512xf32> to vector<8x64xf32>
    %cst_32 = arith.constant dense<0.000000e+00> : vector<8x8xf32>
    %56 = tpu.matmul %53, %54, %cst_32 {dimension_numbers = #tpu.dot_dimension_numbers<[1], [1], [0], [0], [0, 0, 1, 0], [], []>} : vector<8x64xf32>, vector<8x64xf32>, vector<8x8xf32> -> vector<8x8xf32>
    %cst_33 = arith.constant dense<0xFF800000> : vector<8xf32>
    %57 = vector.multi_reduction <maximumf>, %56, %cst_33 [1] : vector<8x8xf32> to vector<8xf32>
    %58 = vector.shape_cast %57 : vector<8xf32> to vector<8x1xf32>
    %59 = vector.broadcast %58 : vector<8x1xf32> to vector<8x8xf32>
    %60 = arith.subf %56, %59 : vector<8x8xf32>
    %61 = math.exp %60 : vector<8x8xf32>
    %cst_34 = arith.constant dense<0.000000e+00> : vector<8xf32>
    %62 = vector.multi_reduction <add>, %61, %cst_34 [1] : vector<8x8xf32> to vector<8xf32>
    %63 = vector.shape_cast %62 : vector<8xf32> to vector<8x1xf32>
    %64 = vector.broadcast %63 : vector<8x1xf32> to vector<8x8xf32>
    %65 = arith.divf %61, %64 : vector<8x8xf32>
    %c0_35 = arith.constant 0 : index
    %c1 = arith.constant 1 : index
    %c0_36 = arith.constant 0 : index
    %c0_37 = arith.constant 0 : index
    %66 = vector.load %arg9[%c0_35, %c1, %c0_36, %c0_37] : memref<1x8x8x8xf32, #tpu.memory_space<vmem>>, vector<1x1x8x8xf32>
    %67 = vector.shape_cast %66 : vector<1x1x8x8xf32> to vector<8x8xf32>
    %68 = vector.shape_cast %65 : vector<8x8xf32> to vector<1x1x8x8xf32>
    tpu.vector_store %arg9[%c0_35, %c1, %c0_36, %c0_37], %68 {strides = array<i32>} : memref<1x8x8x8xf32, #tpu.memory_space<vmem>>, vector<1x1x8x8xf32>,
    %cst_38 = arith.constant dense<0.000000e+00> : vector<8x64xf32>
    %69 = tpu.matmul %65, %55, %cst_38 {dimension_numbers = #tpu.dot_dimension_numbers<[1], [0], [0], [1], [0, 0, 1, 1], [], []>} : vector<8x8xf32>, vector<8x64xf32>, vector<8x64xf32> -> vector<8x64xf32>
    %c64 = arith.constant 64 : index
    %c0_39 = arith.constant 0 : index
    %70 = vector.load %arg7[%c64, %c0_39] : memref<512x32xf32, #tpu.memory_space<vmem>>, vector<64x32xf32>
    %cst_40 = arith.constant dense<0.000000e+00> : vector<8x32xf32>
    %71 = tpu.matmul %69, %70, %cst_40 {dimension_numbers = #tpu.dot_dimension_numbers<[1], [0], [0], [1], [0, 0, 1, 1], [], []>} : vector<8x64xf32>, vector<64x32xf32>, vector<8x32xf32> -> vector<8x32xf32>
    %72 = arith.addf %52, %71 : vector<8x32xf32>
    %73 = vector.extract_strided_slice %27 {offsets = [0, 128], sizes = [8, 64], strides = [1, 1]} : vector<8x512xf32> to vector<8x64xf32>
    %74 = vector.extract_strided_slice %29 {offsets = [0, 128], sizes = [8, 64], strides = [1, 1]} : vector<8x512xf32> to vector<8x64xf32>
    %75 = vector.extract_strided_slice %31 {offsets = [0, 128], sizes = [8, 64], strides = [1, 1]} : vector<8x512xf32> to vector<8x64xf32>
    %cst_41 = arith.constant dense<0.000000e+00> : vector<8x8xf32>
    %76 = tpu.matmul %73, %74, %cst_41 {dimension_numbers = #tpu.dot_dimension_numbers<[1], [1], [0], [0], [0, 0, 1, 0], [], []>} : vector<8x64xf32>, vector<8x64xf32>, vector<8x8xf32> -> vector<8x8xf32>
    %cst_42 = arith.constant dense<0xFF800000> : vector<8xf32>
    %77 = vector.multi_reduction <maximumf>, %76, %cst_42 [1] : vector<8x8xf32> to vector<8xf32>
    %78 = vector.shape_cast %77 : vector<8xf32> to vector<8x1xf32>
    %79 = vector.broadcast %78 : vector<8x1xf32> to vector<8x8xf32>
    %80 = arith.subf %76, %79 : vector<8x8xf32>
    %81 = math.exp %80 : vector<8x8xf32>
    %cst_43 = arith.constant dense<0.000000e+00> : vector<8xf32>
    %82 = vector.multi_reduction <add>, %81, %cst_43 [1] : vector<8x8xf32> to vector<8xf32>
    %83 = vector.shape_cast %82 : vector<8xf32> to vector<8x1xf32>
    %84 = vector.broadcast %83 : vector<8x1xf32> to vector<8x8xf32>
    %85 = arith.divf %81, %84 : vector<8x8xf32>
    %c0_44 = arith.constant 0 : index
    %c2 = arith.constant 2 : index
    %c0_45 = arith.constant 0 : index
    %c0_46 = arith.constant 0 : index
    %86 = vector.load %arg9[%c0_44, %c2, %c0_45, %c0_46] : memref<1x8x8x8xf32, #tpu.memory_space<vmem>>, vector<1x1x8x8xf32>
    %87 = vector.shape_cast %86 : vector<1x1x8x8xf32> to vector<8x8xf32>
    %88 = vector.shape_cast %85 : vector<8x8xf32> to vector<1x1x8x8xf32>
    tpu.vector_store %arg9[%c0_44, %c2, %c0_45, %c0_46], %88 {strides = array<i32>} : memref<1x8x8x8xf32, #tpu.memory_space<vmem>>, vector<1x1x8x8xf32>,
    %cst_47 = arith.constant dense<0.000000e+00> : vector<8x64xf32>
    %89 = tpu.matmul %85, %75, %cst_47 {dimension_numbers = #tpu.dot_dimension_numbers<[1], [0], [0], [1], [0, 0, 1, 1], [], []>} : vector<8x8xf32>, vector<8x64xf32>, vector<8x64xf32> -> vector<8x64xf32>
    %c128 = arith.constant 128 : index
    %c0_48 = arith.constant 0 : index
    %90 = vector.load %arg7[%c128, %c0_48] : memref<512x32xf32, #tpu.memory_space<vmem>>, vector<64x32xf32>
    %cst_49 = arith.constant dense<0.000000e+00> : vector<8x32xf32>
    %91 = tpu.matmul %89, %90, %cst_49 {dimension_numbers = #tpu.dot_dimension_numbers<[1], [0], [0], [1], [0, 0, 1, 1], [], []>} : vector<8x64xf32>, vector<64x32xf32>, vector<8x32xf32> -> vector<8x32xf32>
    %92 = arith.addf %72, %91 : vector<8x32xf32>
    %93 = vector.extract_strided_slice %27 {offsets = [0, 192], sizes = [8, 64], strides = [1, 1]} : vector<8x512xf32> to vector<8x64xf32>
    %94 = vector.extract_strided_slice %29 {offsets = [0, 192], sizes = [8, 64], strides = [1, 1]} : vector<8x512xf32> to vector<8x64xf32>
    %95 = vector.extract_strided_slice %31 {offsets = [0, 192], sizes = [8, 64], strides = [1, 1]} : vector<8x512xf32> to vector<8x64xf32>
    %cst_50 = arith.constant dense<0.000000e+00> : vector<8x8xf32>
    %96 = tpu.matmul %93, %94, %cst_50 {dimension_numbers = #tpu.dot_dimension_numbers<[1], [1], [0], [0], [0, 0, 1, 0], [], []>} : vector<8x64xf32>, vector<8x64xf32>, vector<8x8xf32> -> vector<8x8xf32>
    %cst_51 = arith.constant dense<0xFF800000> : vector<8xf32>
    %97 = vector.multi_reduction <maximumf>, %96, %cst_51 [1] : vector<8x8xf32> to vector<8xf32>
    %98 = vector.shape_cast %97 : vector<8xf32> to vector<8x1xf32>
    %99 = vector.broadcast %98 : vector<8x1xf32> to vector<8x8xf32>
    %100 = arith.subf %96, %99 : vector<8x8xf32>
    %101 = math.exp %100 : vector<8x8xf32>
    %cst_52 = arith.constant dense<0.000000e+00> : vector<8xf32>
    %102 = vector.multi_reduction <add>, %101, %cst_52 [1] : vector<8x8xf32> to vector<8xf32>
    %103 = vector.shape_cast %102 : vector<8xf32> to vector<8x1xf32>
    %104 = vector.broadcast %103 : vector<8x1xf32> to vector<8x8xf32>
    %105 = arith.divf %101, %104 : vector<8x8xf32>
    %c0_53 = arith.constant 0 : index
    %c3 = arith.constant 3 : index
    %c0_54 = arith.constant 0 : index
    %c0_55 = arith.constant 0 : index
    %106 = vector.load %arg9[%c0_53, %c3, %c0_54, %c0_55] : memref<1x8x8x8xf32, #tpu.memory_space<vmem>>, vector<1x1x8x8xf32>
    %107 = vector.shape_cast %106 : vector<1x1x8x8xf32> to vector<8x8xf32>
    %108 = vector.shape_cast %105 : vector<8x8xf32> to vector<1x1x8x8xf32>
    tpu.vector_store %arg9[%c0_53, %c3, %c0_54, %c0_55], %108 {strides = array<i32>} : memref<1x8x8x8xf32, #tpu.memory_space<vmem>>, vector<1x1x8x8xf32>,
    %cst_56 = arith.constant dense<0.000000e+00> : vector<8x64xf32>
    %109 = tpu.matmul %105, %95, %cst_56 {dimension_numbers = #tpu.dot_dimension_numbers<[1], [0], [0], [1], [0, 0, 1, 1], [], []>} : vector<8x8xf32>, vector<8x64xf32>, vector<8x64xf32> -> vector<8x64xf32>
    %c192 = arith.constant 192 : index
    %c0_57 = arith.constant 0 : index
    %110 = vector.load %arg7[%c192, %c0_57] : memref<512x32xf32, #tpu.memory_space<vmem>>, vector<64x32xf32>
    %cst_58 = arith.constant dense<0.000000e+00> : vector<8x32xf32>
    %111 = tpu.matmul %109, %110, %cst_58 {dimension_numbers = #tpu.dot_dimension_numbers<[1], [0], [0], [1], [0, 0, 1, 1], [], []>} : vector<8x64xf32>, vector<64x32xf32>, vector<8x32xf32> -> vector<8x32xf32>
    %112 = arith.addf %92, %111 : vector<8x32xf32>
    %113 = vector.extract_strided_slice %27 {offsets = [0, 256], sizes = [8, 64], strides = [1, 1]} : vector<8x512xf32> to vector<8x64xf32>
    %114 = vector.extract_strided_slice %29 {offsets = [0, 256], sizes = [8, 64], strides = [1, 1]} : vector<8x512xf32> to vector<8x64xf32>
    %115 = vector.extract_strided_slice %31 {offsets = [0, 256], sizes = [8, 64], strides = [1, 1]} : vector<8x512xf32> to vector<8x64xf32>
    %cst_59 = arith.constant dense<0.000000e+00> : vector<8x8xf32>
    %116 = tpu.matmul %113, %114, %cst_59 {dimension_numbers = #tpu.dot_dimension_numbers<[1], [1], [0], [0], [0, 0, 1, 0], [], []>} : vector<8x64xf32>, vector<8x64xf32>, vector<8x8xf32> -> vector<8x8xf32>
    %cst_60 = arith.constant dense<0xFF800000> : vector<8xf32>
    %117 = vector.multi_reduction <maximumf>, %116, %cst_60 [1] : vector<8x8xf32> to vector<8xf32>
    %118 = vector.shape_cast %117 : vector<8xf32> to vector<8x1xf32>
    %119 = vector.broadcast %118 : vector<8x1xf32> to vector<8x8xf32>
    %120 = arith.subf %116, %119 : vector<8x8xf32>
    %121 = math.exp %120 : vector<8x8xf32>
    %cst_61 = arith.constant dense<0.000000e+00> : vector<8xf32>
    %122 = vector.multi_reduction <add>, %121, %cst_61 [1] : vector<8x8xf32> to vector<8xf32>
    %123 = vector.shape_cast %122 : vector<8xf32> to vector<8x1xf32>
    %124 = vector.broadcast %123 : vector<8x1xf32> to vector<8x8xf32>
    %125 = arith.divf %121, %124 : vector<8x8xf32>
    %c0_62 = arith.constant 0 : index
    %c4 = arith.constant 4 : index
    %c0_63 = arith.constant 0 : index
    %c0_64 = arith.constant 0 : index
    %126 = vector.load %arg9[%c0_62, %c4, %c0_63, %c0_64] : memref<1x8x8x8xf32, #tpu.memory_space<vmem>>, vector<1x1x8x8xf32>
    %127 = vector.shape_cast %126 : vector<1x1x8x8xf32> to vector<8x8xf32>
    %128 = vector.shape_cast %125 : vector<8x8xf32> to vector<1x1x8x8xf32>
    tpu.vector_store %arg9[%c0_62, %c4, %c0_63, %c0_64], %128 {strides = array<i32>} : memref<1x8x8x8xf32, #tpu.memory_space<vmem>>, vector<1x1x8x8xf32>,
    %cst_65 = arith.constant dense<0.000000e+00> : vector<8x64xf32>
    %129 = tpu.matmul %125, %115, %cst_65 {dimension_numbers = #tpu.dot_dimension_numbers<[1], [0], [0], [1], [0, 0, 1, 1], [], []>} : vector<8x8xf32>, vector<8x64xf32>, vector<8x64xf32> -> vector<8x64xf32>
    %c256 = arith.constant 256 : index
    %c0_66 = arith.constant 0 : index
    %130 = vector.load %arg7[%c256, %c0_66] : memref<512x32xf32, #tpu.memory_space<vmem>>, vector<64x32xf32>
    %cst_67 = arith.constant dense<0.000000e+00> : vector<8x32xf32>
    %131 = tpu.matmul %129, %130, %cst_67 {dimension_numbers = #tpu.dot_dimension_numbers<[1], [0], [0], [1], [0, 0, 1, 1], [], []>} : vector<8x64xf32>, vector<64x32xf32>, vector<8x32xf32> -> vector<8x32xf32>
    %132 = arith.addf %112, %131 : vector<8x32xf32>
    %133 = vector.extract_strided_slice %27 {offsets = [0, 320], sizes = [8, 64], strides = [1, 1]} : vector<8x512xf32> to vector<8x64xf32>
    %134 = vector.extract_strided_slice %29 {offsets = [0, 320], sizes = [8, 64], strides = [1, 1]} : vector<8x512xf32> to vector<8x64xf32>
    %135 = vector.extract_strided_slice %31 {offsets = [0, 320], sizes = [8, 64], strides = [1, 1]} : vector<8x512xf32> to vector<8x64xf32>
    %cst_68 = arith.constant dense<0.000000e+00> : vector<8x8xf32>
    %136 = tpu.matmul %133, %134, %cst_68 {dimension_numbers = #tpu.dot_dimension_numbers<[1], [1], [0], [0], [0, 0, 1, 0], [], []>} : vector<8x64xf32>, vector<8x64xf32>, vector<8x8xf32> -> vector<8x8xf32>
    %cst_69 = arith.constant dense<0xFF800000> : vector<8xf32>
    %137 = vector.multi_reduction <maximumf>, %136, %cst_69 [1] : vector<8x8xf32> to vector<8xf32>
    %138 = vector.shape_cast %137 : vector<8xf32> to vector<8x1xf32>
    %139 = vector.broadcast %138 : vector<8x1xf32> to vector<8x8xf32>
    %140 = arith.subf %136, %139 : vector<8x8xf32>
    %141 = math.exp %140 : vector<8x8xf32>
    %cst_70 = arith.constant dense<0.000000e+00> : vector<8xf32>
    %142 = vector.multi_reduction <add>, %141, %cst_70 [1] : vector<8x8xf32> to vector<8xf32>
    %143 = vector.shape_cast %142 : vector<8xf32> to vector<8x1xf32>
    %144 = vector.broadcast %143 : vector<8x1xf32> to vector<8x8xf32>
    %145 = arith.divf %141, %144 : vector<8x8xf32>
    %c0_71 = arith.constant 0 : index
    %c5 = arith.constant 5 : index
    %c0_72 = arith.constant 0 : index
    %c0_73 = arith.constant 0 : index
    %146 = vector.load %arg9[%c0_71, %c5, %c0_72, %c0_73] : memref<1x8x8x8xf32, #tpu.memory_space<vmem>>, vector<1x1x8x8xf32>
    %147 = vector.shape_cast %146 : vector<1x1x8x8xf32> to vector<8x8xf32>
    %148 = vector.shape_cast %145 : vector<8x8xf32> to vector<1x1x8x8xf32>
    tpu.vector_store %arg9[%c0_71, %c5, %c0_72, %c0_73], %148 {strides = array<i32>} : memref<1x8x8x8xf32, #tpu.memory_space<vmem>>, vector<1x1x8x8xf32>,
    %cst_74 = arith.constant dense<0.000000e+00> : vector<8x64xf32>
    %149 = tpu.matmul %145, %135, %cst_74 {dimension_numbers = #tpu.dot_dimension_numbers<[1], [0], [0], [1], [0, 0, 1, 1], [], []>} : vector<8x8xf32>, vector<8x64xf32>, vector<8x64xf32> -> vector<8x64xf32>
    %c320 = arith.constant 320 : index
    %c0_75 = arith.constant 0 : index
    %150 = vector.load %arg7[%c320, %c0_75] : memref<512x32xf32, #tpu.memory_space<vmem>>, vector<64x32xf32>
    %cst_76 = arith.constant dense<0.000000e+00> : vector<8x32xf32>
    %151 = tpu.matmul %149, %150, %cst_76 {dimension_numbers = #tpu.dot_dimension_numbers<[1], [0], [0], [1], [0, 0, 1, 1], [], []>} : vector<8x64xf32>, vector<64x32xf32>, vector<8x32xf32> -> vector<8x32xf32>
    %152 = arith.addf %132, %151 : vector<8x32xf32>
    %153 = vector.extract_strided_slice %27 {offsets = [0, 384], sizes = [8, 64], strides = [1, 1]} : vector<8x512xf32> to vector<8x64xf32>
    %154 = vector.extract_strided_slice %29 {offsets = [0, 384], sizes = [8, 64], strides = [1, 1]} : vector<8x512xf32> to vector<8x64xf32>
    %155 = vector.extract_strided_slice %31 {offsets = [0, 384], sizes = [8, 64], strides = [1, 1]} : vector<8x512xf32> to vector<8x64xf32>
    %cst_77 = arith.constant dense<0.000000e+00> : vector<8x8xf32>
    %156 = tpu.matmul %153, %154, %cst_77 {dimension_numbers = #tpu.dot_dimension_numbers<[1], [1], [0], [0], [0, 0, 1, 0], [], []>} : vector<8x64xf32>, vector<8x64xf32>, vector<8x8xf32> -> vector<8x8xf32>
    %cst_78 = arith.constant dense<0xFF800000> : vector<8xf32>
    %157 = vector.multi_reduction <maximumf>, %156, %cst_78 [1] : vector<8x8xf32> to vector<8xf32>
    %158 = vector.shape_cast %157 : vector<8xf32> to vector<8x1xf32>
    %159 = vector.broadcast %158 : vector<8x1xf32> to vector<8x8xf32>
    %160 = arith.subf %156, %159 : vector<8x8xf32>
    %161 = math.exp %160 : vector<8x8xf32>
    %cst_79 = arith.constant dense<0.000000e+00> : vector<8xf32>
    %162 = vector.multi_reduction <add>, %161, %cst_79 [1] : vector<8x8xf32> to vector<8xf32>
    %163 = vector.shape_cast %162 : vector<8xf32> to vector<8x1xf32>
    %164 = vector.broadcast %163 : vector<8x1xf32> to vector<8x8xf32>
    %165 = arith.divf %161, %164 : vector<8x8xf32>
    %c0_80 = arith.constant 0 : index
    %c6 = arith.constant 6 : index
    %c0_81 = arith.constant 0 : index
    %c0_82 = arith.constant 0 : index
    %166 = vector.load %arg9[%c0_80, %c6, %c0_81, %c0_82] : memref<1x8x8x8xf32, #tpu.memory_space<vmem>>, vector<1x1x8x8xf32>
    %167 = vector.shape_cast %166 : vector<1x1x8x8xf32> to vector<8x8xf32>
    %168 = vector.shape_cast %165 : vector<8x8xf32> to vector<1x1x8x8xf32>
    tpu.vector_store %arg9[%c0_80, %c6, %c0_81, %c0_82], %168 {strides = array<i32>} : memref<1x8x8x8xf32, #tpu.memory_space<vmem>>, vector<1x1x8x8xf32>,
    %cst_83 = arith.constant dense<0.000000e+00> : vector<8x64xf32>
    %169 = tpu.matmul %165, %155, %cst_83 {dimension_numbers = #tpu.dot_dimension_numbers<[1], [0], [0], [1], [0, 0, 1, 1], [], []>} : vector<8x8xf32>, vector<8x64xf32>, vector<8x64xf32> -> vector<8x64xf32>
    %c384 = arith.constant 384 : index
    %c0_84 = arith.constant 0 : index
    %170 = vector.load %arg7[%c384, %c0_84] : memref<512x32xf32, #tpu.memory_space<vmem>>, vector<64x32xf32>
    %cst_85 = arith.constant dense<0.000000e+00> : vector<8x32xf32>
    %171 = tpu.matmul %169, %170, %cst_85 {dimension_numbers = #tpu.dot_dimension_numbers<[1], [0], [0], [1], [0, 0, 1, 1], [], []>} : vector<8x64xf32>, vector<64x32xf32>, vector<8x32xf32> -> vector<8x32xf32>
    %172 = arith.addf %152, %171 : vector<8x32xf32>
    %173 = vector.extract_strided_slice %27 {offsets = [0, 448], sizes = [8, 64], strides = [1, 1]} : vector<8x512xf32> to vector<8x64xf32>
    %174 = vector.extract_strided_slice %29 {offsets = [0, 448], sizes = [8, 64], strides = [1, 1]} : vector<8x512xf32> to vector<8x64xf32>
    %175 = vector.extract_strided_slice %31 {offsets = [0, 448], sizes = [8, 64], strides = [1, 1]} : vector<8x512xf32> to vector<8x64xf32>
    %cst_86 = arith.constant dense<0.000000e+00> : vector<8x8xf32>
    %176 = tpu.matmul %173, %174, %cst_86 {dimension_numbers = #tpu.dot_dimension_numbers<[1], [1], [0], [0], [0, 0, 1, 0], [], []>} : vector<8x64xf32>, vector<8x64xf32>, vector<8x8xf32> -> vector<8x8xf32>
    %cst_87 = arith.constant dense<0xFF800000> : vector<8xf32>
    %177 = vector.multi_reduction <maximumf>, %176, %cst_87 [1] : vector<8x8xf32> to vector<8xf32>
    %178 = vector.shape_cast %177 : vector<8xf32> to vector<8x1xf32>
    %179 = vector.broadcast %178 : vector<8x1xf32> to vector<8x8xf32>
    %180 = arith.subf %176, %179 : vector<8x8xf32>
    %181 = math.exp %180 : vector<8x8xf32>
    %cst_88 = arith.constant dense<0.000000e+00> : vector<8xf32>
    %182 = vector.multi_reduction <add>, %181, %cst_88 [1] : vector<8x8xf32> to vector<8xf32>
    %183 = vector.shape_cast %182 : vector<8xf32> to vector<8x1xf32>
    %184 = vector.broadcast %183 : vector<8x1xf32> to vector<8x8xf32>
    %185 = arith.divf %181, %184 : vector<8x8xf32>
    %c0_89 = arith.constant 0 : index
    %c7 = arith.constant 7 : index
    %c0_90 = arith.constant 0 : index
    %c0_91 = arith.constant 0 : index
    %186 = vector.load %arg9[%c0_89, %c7, %c0_90, %c0_91] : memref<1x8x8x8xf32, #tpu.memory_space<vmem>>, vector<1x1x8x8xf32>
    %187 = vector.shape_cast %186 : vector<1x1x8x8xf32> to vector<8x8xf32>
    %188 = vector.shape_cast %185 : vector<8x8xf32> to vector<1x1x8x8xf32>
    tpu.vector_store %arg9[%c0_89, %c7, %c0_90, %c0_91], %188 {strides = array<i32>} : memref<1x8x8x8xf32, #tpu.memory_space<vmem>>, vector<1x1x8x8xf32>,
    %cst_92 = arith.constant dense<0.000000e+00> : vector<8x64xf32>
    %189 = tpu.matmul %185, %175, %cst_92 {dimension_numbers = #tpu.dot_dimension_numbers<[1], [0], [0], [1], [0, 0, 1, 1], [], []>} : vector<8x8xf32>, vector<8x64xf32>, vector<8x64xf32> -> vector<8x64xf32>
    %c448 = arith.constant 448 : index
    %c0_93 = arith.constant 0 : index
    %190 = vector.load %arg7[%c448, %c0_93] : memref<512x32xf32, #tpu.memory_space<vmem>>, vector<64x32xf32>
    %cst_94 = arith.constant dense<0.000000e+00> : vector<8x32xf32>
    %191 = tpu.matmul %189, %190, %cst_94 {dimension_numbers = #tpu.dot_dimension_numbers<[1], [0], [0], [1], [0, 0, 1, 1], [], []>} : vector<8x64xf32>, vector<64x32xf32>, vector<8x32xf32> -> vector<8x32xf32>
    %192 = arith.addf %172, %191 : vector<8x32xf32>
    %c0_95 = arith.constant 0 : index
    %c0_96 = arith.constant 0 : index
    %c0_97 = arith.constant 0 : index
    %193 = vector.load %arg8[%c0_95, %c0_96, %c0_97] : memref<1x8x32xf32, #tpu.memory_space<vmem>>, vector<1x8x32xf32>
    %194 = vector.shape_cast %193 : vector<1x8x32xf32> to vector<8x32xf32>
    %195 = vector.shape_cast %192 : vector<8x32xf32> to vector<1x8x32xf32>
    tpu.vector_store %arg8[%c0_95, %c0_96, %c0_97], %195 {strides = array<i32>} : memref<1x8x32xf32, #tpu.memory_space<vmem>>, vector<1x8x32xf32>,
    return
  }
  func.func @transform_0(%arg0: i32) -> (i32, i32, i32) {
    %c0_i32 = arith.constant 0 : i32
    %c0_i32_0 = arith.constant 0 : i32
    %c0_i32_1 = arith.constant 0 : i32
    return %arg0, %c0_i32, %c0_i32_0 : i32, i32, i32
  }
  func.func @transform_1(%arg0: i32) -> (i32, i32) {
    %c0_i32 = arith.constant 0 : i32
    %c0_i32_0 = arith.constant 0 : i32
    %c0_i32_1 = arith.constant 0 : i32
    return %c0_i32, %c0_i32_0 : i32, i32
  }
  func.func @transform_2(%arg0: i32) -> (i32, i32) {
    %c0_i32 = arith.constant 0 : i32
    %c0_i32_0 = arith.constant 0 : i32
    %c0_i32_1 = arith.constant 0 : i32
    return %c0_i32, %c0_i32_0 : i32, i32
  }
  func.func @transform_3(%arg0: i32) -> (i32, i32) {
    %c0_i32 = arith.constant 0 : i32
    %c0_i32_0 = arith.constant 0 : i32
    %c0_i32_1 = arith.constant 0 : i32
    return %c0_i32, %c0_i32_0 : i32, i32
  }
  func.func @transform_4(%arg0: i32) -> (i32, i32) {
    %c0_i32 = arith.constant 0 : i32
    %c0_i32_0 = arith.constant 0 : i32
    %c0_i32_1 = arith.constant 0 : i32
    return %c0_i32, %c0_i32_0 : i32, i32
  }
  func.func @transform_5(%arg0: i32) -> (i32, i32) {
    %c0_i32 = arith.constant 0 : i32
    %c0_i32_0 = arith.constant 0 : i32
    %c0_i32_1 = arith.constant 0 : i32
    return %c0_i32, %c0_i32_0 : i32, i32
  }
  func.func @transform_6(%arg0: i32) -> (i32, i32) {
    %c0_i32 = arith.constant 0 : i32
    %c0_i32_0 = arith.constant 0 : i32
    %c0_i32_1 = arith.constant 0 : i32
    return %c0_i32, %c0_i32_0 : i32, i32
  }
  func.func @transform_7(%arg0: i32) -> (i32, i32, i32) {
    %c0_i32 = arith.constant 0 : i32
    %c0_i32_0 = arith.constant 0 : i32
    %c0_i32_1 = arith.constant 0 : i32
    return %arg0, %c0_i32, %c0_i32_0 : i32, i32, i32
  }
  func.func @transform_8(%arg0: i32) -> (i32, i32, i32, i32) {
    %c0_i32 = arith.constant 0 : i32
    %c0_i32_0 = arith.constant 0 : i32
    %c0_i32_1 = arith.constant 0 : i32
    %c0_i32_2 = arith.constant 0 : i32
    return %arg0, %c0_i32, %c0_i32_0, %c0_i32_1 : i32, i32, i32, i32
  }
}

</mosaic_0001>

<llo_original>
// kernel: tpu_custom_call.1
$region0: #{tpu_custom_call.1}
  #allocation0 [shape = 'u32[]', space=smem, size = 0x4, offset = 0x4, fixed_abs, tag = 'smem constant byte address 0x4 - core index']
  #allocation1 [shape = 'u32[144,128]{1,0:T(1,128)}', space=vmem, size = 0x12000, scoped, tag = 'internal scratch']
  %s0 = inlined_call_operand.vmem [shape: f32[2,8,32], index: 0, kind: input, shape index: {}]
  %s1 = inlined_call_operand.vmem [shape: f32[1,32], index: 1, kind: input, shape index: {}]
  %s2 = inlined_call_operand.vmem [shape: f32[1,32], index: 2, kind: input, shape index: {}]
  %s3 = inlined_call_operand.vmem [shape: f32[32,512], index: 3, kind: input, shape index: {}]
  %s4 = inlined_call_operand.vmem [shape: f32[32,512], index: 4, kind: input, shape index: {}]
  %s5 = inlined_call_operand.vmem [shape: f32[32,512], index: 5, kind: input, shape index: {}]
  %s6 = inlined_call_operand.vmem [shape: f32[512,32], index: 6, kind: input, shape index: {}]
  %s7 = inlined_call_operand.hbm [shape: f32[2,8,32], index: 7, kind: output, shape index: {0}]
  %s8 = inlined_call_operand.hbm [shape: f32[2,8,8,8], index: 8, kind: output, shape index: {1}]
  %9 = xla_tuple %s7, %s8
  %s10 = sld [smem:[#allocation0]]
  $region69: #{tpu_custom_call.1} parent=0
    _
  %s12 = ssub.s32 1, %s10
  %s13 = scalar_select 0, %s12, %s10
  $region1: #{tpu_custom_call.1} parent=0
    #allocation2 [shape = 'u8[8192]{0}', space=vmem, size = 0x2000, scoped, tag = 'output window, operand 0']
    #allocation3 [shape = 's32[2]{0}', space=sflag, size = 0x8, scoped, tag = 'scoped memory for tpu_custom_call.1']
    #allocation4 [shape = 'u8[65536]{0}', space=vmem, size = 0x10000, scoped, tag = 'output window, operand 1']
    #allocation5 [shape = 's32[2]{0}', space=sflag, size = 0x8, scoped, tag = 'scoped memory for tpu_custom_call.1']
    %14 = vsyncpa [#allocation3], 0
    %s15 = scalar_lea.sflag [#allocation3], 1
    %16 = vsyncpa %s15, 0
    %17 = vsyncpa [#allocation5], 0
    %s18 = scalar_lea.sflag [#allocation5], 1
    %19 = vsyncpa %s18, 0
    loop: start=0, step=1, limit=4
    $region2: #{tpu_custom_call.1} parent=1 // loop_pre_header
      _
    $region3: #{tpu_custom_call.1} parent=1 // loop_header
      %s21 = sphi 0, %s25
      %p22 = scmp.ge.s32.totalorder %s21, 4
      %s31 = sphi 0, %s33
      %s34 = sphi 0, %s31
      %s35 = sphi 0, %s34
      %s51 = sphi 0, %s35
      %s55 = sphi 0, %s55
      %s57 = sphi 0, %s55
      %s58 = sphi 0, %s57
      %s72 = sphi 0, %s58
      %s76 = sphi 0, %s76
      %s78 = sphi 0, %s76
      %s79 = sphi 0, %s78
      %s93 = sphi 0, %s79
      %s97 = sphi 0, %s97
      %s99 = sphi 0, %s97
      %s100 = sphi 0, %s99
      %s114 = sphi 0, %s100
      %s118 = sphi 0, %s118
      %s120 = sphi 0, %s118
      %s121 = sphi 0, %s120
      %s135 = sphi 0, %s121
      %s139 = sphi 0, %s139
      %s141 = sphi 0, %s139
      %s142 = sphi 0, %s141
      %s156 = sphi 0, %s142
      %s160 = sphi 0, %s160
      %s162 = sphi 0, %s160
      %s163 = sphi 0, %s162
      %s177 = sphi 0, %s163
      %s183 = sphi 0, %s185
      %s186 = sphi 0, %s183
      %s187 = sphi 0, %s186
      %s203 = sphi 0, %s187
      %s209 = sphi 0, %s211
      %s212 = sphi 0, %s209
      %s213 = sphi 0, %s212
      %s229 = sphi 0, %s213
    $region4: #{tpu_custom_call.1} parent=1 // loop_header_branch
      %24 = sbr.rel (%p22) target = $region8
    $region5: #{tpu_custom_call.1} parent=1 // loop_body
      %s26 = ssub.s32 %s21, 1
      %s27 = ssub.s32 %s21, 2
      %s28 = sadd.s32 %s21, 1
      %s29 = ssub.s32 %s21, %s28
      %p30 = scmp.eq.s32.totalorder %s29, 0
      %s32 = sadd.s32 %s31, 1
      %s33 = scalar_select %p30, %s31, %s32
      %p36 = pneg %p30
      %p37 = scmp.eq.s32.totalorder %s21, 1
      %p38 = por %p36, %p37
      %p39 = scmp.ne.s32.totalorder %s31, %s34
      %p40 = scmp.eq.s32.totalorder %s21, 0
      %p41 = por %p39, %p40
      %p42 = scmp.ne.s32.totalorder %s31, %s34
      %p43 = scmp.eq.s32.totalorder %s26, 1
      %p44 = por %p42, %p43
      %p45 = scmp.ne.s32.totalorder %s34, %s35
      %p46 = scmp.eq.s32.totalorder %s26, 0
      %p47 = por %p45, %p46
      %p48 = scmp.ne.s32.totalorder %s34, %s35
      %p49 = scmp.eq.s32.totalorder %s27, 1
      %p50 = por %p48, %p49
      %p52 = scmp.ne.s32.totalorder %s35, %s51
      %p53 = scmp.eq.s32.totalorder %s27, 0
      %p54 = por %p52, %p53
      %s56 = sadd.s32 %s55, 1
      %p59 = scmp.eq.s32.totalorder %s21, 1
      %p60 = scmp.ne.s32.totalorder %s55, %s57
      %p61 = scmp.eq.s32.totalorder %s21, 0
      %p62 = por %p60, %p61
      %p63 = scmp.ne.s32.totalorder %s55, %s57
      %p64 = scmp.eq.s32.totalorder %s26, 1
      %p65 = por %p63, %p64
      %p66 = scmp.ne.s32.totalorder %s57, %s58
      %p67 = scmp.eq.s32.totalorder %s26, 0
      %p68 = por %p66, %p67
      %p69 = scmp.ne.s32.totalorder %s57, %s58
      %p70 = scmp.eq.s32.totalorder %s27, 1
      %p71 = por %p69, %p70
      %p73 = scmp.ne.s32.totalorder %s58, %s72
      %p74 = scmp.eq.s32.totalorder %s27, 0
      %p75 = por %p73, %p74
      %s77 = sadd.s32 %s76, 1
      %p80 = scmp.eq.s32.totalorder %s21, 1
      %p81 = scmp.ne.s32.totalorder %s76, %s78
      %p82 = scmp.eq.s32.totalorder %s21, 0
      %p83 = por %p81, %p82
      %p84 = scmp.ne.s32.totalorder %s76, %s78
      %p85 = scmp.eq.s32.totalorder %s26, 1
      %p86 = por %p84, %p85
      %p87 = scmp.ne.s32.totalorder %s78, %s79
      %p88 = scmp.eq.s32.totalorder %s26, 0
      %p89 = por %p87, %p88
      %p90 = scmp.ne.s32.totalorder %s78, %s79
      %p91 = scmp.eq.s32.totalorder %s27, 1
      %p92 = por %p90, %p91
      %p94 = scmp.ne.s32.totalorder %s79, %s93
      %p95 = scmp.eq.s32.totalorder %s27, 0
      %p96 = por %p94, %p95
      %s98 = sadd.s32 %s97, 1
      %p101 = scmp.eq.s32.totalorder %s21, 1
      %p102 = scmp.ne.s32.totalorder %s97, %s99
      %p103 = scmp.eq.s32.totalorder %s21, 0
      %p104 = por %p102, %p103
      %p105 = scmp.ne.s32.totalorder %s97, %s99
      %p106 = scmp.eq.s32.totalorder %s26, 1
      %p107 = por %p105, %p106
      %p108 = scmp.ne.s32.totalorder %s99, %s100
      %p109 = scmp.eq.s32.totalorder %s26, 0
      %p110 = por %p108, %p109
      %p111 = scmp.ne.s32.totalorder %s99, %s100
      %p112 = scmp.eq.s32.totalorder %s27, 1
      %p113 = por %p111, %p112
      %p115 = scmp.ne.s32.totalorder %s100, %s114
      %p116 = scmp.eq.s32.totalorder %s27, 0
      %p117 = por %p115, %p116
      %s119 = sadd.s32 %s118, 1
      %p122 = scmp.eq.s32.totalorder %s21, 1
      %p123 = scmp.ne.s32.totalorder %s118, %s120
      %p124 = scmp.eq.s32.totalorder %s21, 0
      %p125 = por %p123, %p124
      %p126 = scmp.ne.s32.totalorder %s118, %s120
      %p127 = scmp.eq.s32.totalorder %s26, 1
      %p128 = por %p126, %p127
      %p129 = scmp.ne.s32.totalorder %s120, %s121
      %p130 = scmp.eq.s32.totalorder %s26, 0
      %p131 = por %p129, %p130
      %p132 = scmp.ne.s32.totalorder %s120, %s121
      %p133 = scmp.eq.s32.totalorder %s27, 1
      %p134 = por %p132, %p133
      %p136 = scmp.ne.s32.totalorder %s121, %s135
      %p137 = scmp.eq.s32.totalorder %s27, 0
      %p138 = por %p136, %p137
      %s140 = sadd.s32 %s139, 1
      %p143 = scmp.eq.s32.totalorder %s21, 1
      %p144 = scmp.ne.s32.totalorder %s139, %s141
      %p145 = scmp.eq.s32.totalorder %s21, 0
      %p146 = por %p144, %p145
      %p147 = scmp.ne.s32.totalorder %s139, %s141
      %p148 = scmp.eq.s32.totalorder %s26, 1
      %p149 = por %p147, %p148
      %p150 = scmp.ne.s32.totalorder %s141, %s142
      %p151 = scmp.eq.s32.totalorder %s26, 0
      %p152 = por %p150, %p151
      %p153 = scmp.ne.s32.totalorder %s141, %s142
      %p154 = scmp.eq.s32.totalorder %s27, 1
      %p155 = por %p153, %p154
      %p157 = scmp.ne.s32.totalorder %s142, %s156
      %p158 = scmp.eq.s32.totalorder %s27, 0
      %p159 = por %p157, %p158
      %s161 = sadd.s32 %s160, 1
      %p164 = scmp.eq.s32.totalorder %s21, 1
      %p165 = scmp.ne.s32.totalorder %s160, %s162
      %p166 = scmp.eq.s32.totalorder %s21, 0
      %p167 = por %p165, %p166
      %p168 = scmp.ne.s32.totalorder %s160, %s162
      %p169 = scmp.eq.s32.totalorder %s26, 1
      %p170 = por %p168, %p169
      %p171 = scmp.ne.s32.totalorder %s162, %s163
      %p172 = scmp.eq.s32.totalorder %s26, 0
      %p173 = por %p171, %p172
      %p174 = scmp.ne.s32.totalorder %s162, %s163
      %p175 = scmp.eq.s32.totalorder %s27, 1
      %p176 = por %p174, %p175
      %p178 = scmp.ne.s32.totalorder %s163, %s177
      %p179 = scmp.eq.s32.totalorder %s27, 0
      %p180 = por %p178, %p179
      %s181 = ssub.s32 %s21, %s28
      %p182 = scmp.eq.s32.totalorder %s181, 0
      %s184 = sadd.s32 %s183, 1
      %s185 = scalar_select %p182, %s183, %s184
      %p188 = pneg %p182
      %p189 = scmp.eq.s32.totalorder %s21, 1
      %p190 = por %p188, %p189
      %p191 = scmp.ne.s32.totalorder %s183, %s186
      %p192 = scmp.eq.s32.totalorder %s21, 0
      %p193 = por %p191, %p192
      %p194 = scmp.ne.s32.totalorder %s183, %s186
      %p195 = scmp.eq.s32.totalorder %s26, 1
      %p196 = por %p194, %p195
      %p197 = scmp.ne.s32.totalorder %s186, %s187
      %p198 = scmp.eq.s32.totalorder %s26, 0
      %p199 = por %p197, %p198
      %p200 = scmp.ne.s32.totalorder %s186, %s187
      %p201 = scmp.eq.s32.totalorder %s27, 1
      %p202 = por %p200, %p201
      %p204 = scmp.ne.s32.totalorder %s187, %s203
      %p205 = scmp.eq.s32.totalorder %s27, 0
      %p206 = por %p204, %p205
      %s207 = ssub.s32 %s21, %s28
      %p208 = scmp.eq.s32.totalorder %s207, 0
      %s210 = sadd.s32 %s209, 1
      %s211 = scalar_select %p208, %s209, %s210
      %p214 = pneg %p208
      %p215 = scmp.eq.s32.totalorder %s21, 1
      %p216 = por %p214, %p215
      %p217 = scmp.ne.s32.totalorder %s209, %s212
      %p218 = scmp.eq.s32.totalorder %s21, 0
      %p219 = por %p217, %p218
      %p220 = scmp.ne.s32.totalorder %s209, %s212
      %p221 = scmp.eq.s32.totalorder %s26, 1
      %p222 = por %p220, %p221
      %p223 = scmp.ne.s32.totalorder %s212, %s213
      %p224 = scmp.eq.s32.totalorder %s26, 0
      %p225 = por %p223, %p224
      %p226 = scmp.ne.s32.totalorder %s212, %s213
      %p227 = scmp.eq.s32.totalorder %s27, 1
      %p228 = por %p226, %p227
      %p230 = scmp.ne.s32.totalorder %s213, %s229
      %p231 = scmp.eq.s32.totalorder %s27, 0
      %p232 = por %p230, %p231
      %p233 = scmp.le.s32.totalorder 1, %s21
      %p234 = scmp.lt.s32.totalorder %s21, 3
      %p235 = pnand %p233, %p234
      %p236 = pneg %p235
      // Predicated region
      $region9: #{tpu_custom_call.1} parent=5 // pred_check
        _
      $region10: #{tpu_custom_call.1} parent=5 // pred_check_branch
        %238 = sbr.rel (%p235) target = $region12
      $region11: #{tpu_custom_call.1} parent=5 // pred_region
        %s239 = ssub.s32 %s21, 1
        // Predicated region
        $region13: #{tpu_custom_call.1} parent=11 // pred_check
          %p240 = pneg %p68
        $region14: #{tpu_custom_call.1} parent=11 // pred_check_branch
          %242 = sbr.rel (%p240) target = $region16
        $region15: #{tpu_custom_call.1} parent=11 // pred_region
          _
        $region16: #{tpu_custom_call.1} parent=11 // pred_fallthru
          _
        // Predicated region
        $region17: #{tpu_custom_call.1} parent=11 // pred_check
          %p243 = pneg %p89
        $region18: #{tpu_custom_call.1} parent=11 // pred_check_branch
          %245 = sbr.rel (%p243) target = $region20
        $region19: #{tpu_custom_call.1} parent=11 // pred_region
          _
        $region20: #{tpu_custom_call.1} parent=11 // pred_fallthru
          _
        // Predicated region
        $region21: #{tpu_custom_call.1} parent=11 // pred_check
          %p246 = pneg %p110
        $region22: #{tpu_custom_call.1} parent=11 // pred_check_branch
          %248 = sbr.rel (%p246) target = $region24
        $region23: #{tpu_custom_call.1} parent=11 // pred_region
          _
        $region24: #{tpu_custom_call.1} parent=11 // pred_fallthru
          _
        // Predicated region
        $region25: #{tpu_custom_call.1} parent=11 // pred_check
          %p249 = pneg %p131
        $region26: #{tpu_custom_call.1} parent=11 // pred_check_branch
          %251 = sbr.rel (%p249) target = $region28
        $region27: #{tpu_custom_call.1} parent=11 // pred_region
          _
        $region28: #{tpu_custom_call.1} parent=11 // pred_fallthru
          _
        // Predicated region
        $region29: #{tpu_custom_call.1} parent=11 // pred_check
          %p252 = pneg %p152
        $region30: #{tpu_custom_call.1} parent=11 // pred_check_branch
          %254 = sbr.rel (%p252) target = $region32
        $region31: #{tpu_custom_call.1} parent=11 // pred_region
          _
        $region32: #{tpu_custom_call.1} parent=11 // pred_fallthru
          _
        // Predicated region
        $region33: #{tpu_custom_call.1} parent=11 // pred_check
          %p255 = pneg %p173
        $region34: #{tpu_custom_call.1} parent=11 // pred_check_branch
          %257 = sbr.rel (%p255) target = $region36
        $region35: #{tpu_custom_call.1} parent=11 // pred_region
          _
        $region36: #{tpu_custom_call.1} parent=11 // pred_fallthru
          _
      $region12: #{tpu_custom_call.1} parent=5 // pred_fallthru
        _
      %p258 = scmp.lt.s32.totalorder %s21, 2
      // Predicated region
      $region37: #{tpu_custom_call.1} parent=5 // pred_check
        %p259 = pneg %p258
      $region38: #{tpu_custom_call.1} parent=5 // pred_check_branch
        %261 = sbr.rel (%p259) target = $region40
      $region39: #{tpu_custom_call.1} parent=5 // pred_region
        // Predicated region
        $region41: #{tpu_custom_call.1} parent=39 // pred_check
          %p262 = pneg %p41
        $region42: #{tpu_custom_call.1} parent=39 // pred_check_branch
          %264 = sbr.rel (%p262) target = $region44
        $region43: #{tpu_custom_call.1} parent=39 // pred_region
          %p265 = scmp.lt.s32.totalorder %s21, 1
          %s266 = scalar_select %p265, %s21, 1
          %s267 = smul.addr %s266, 8
          %s268 = scalar_lea.vmem %s0, %s267
        $region44: #{tpu_custom_call.1} parent=39 // pred_fallthru
          _
      $region40: #{tpu_custom_call.1} parent=5 // pred_fallthru
        _
      %p269 = scmp.le.s32.totalorder 1, %s21
      %p270 = scmp.lt.s32.totalorder %s21, 3
      %p271 = pnand %p269, %p270
      %p272 = pneg %p271
      // Predicated region
      $region45: #{tpu_custom_call.1} parent=5 // pred_check
        _
      $region46: #{tpu_custom_call.1} parent=5 // pred_check_branch
        %274 = sbr.rel (%p271) target = $region48
      $region47: #{tpu_custom_call.1} parent=5 // pred_region
        %s275 = ssub.s32 %s21, 1
        %p276 = scmp.lt.s32.totalorder %s26, 1
        %s277 = scalar_select %p276, %s26, 1
        %s278 = smul.addr %s277, 8
        %s279 = scalar_lea.vmem %s0, %s278
        %p280 = pneg %p47
        %p281 = pneg %p44
        %p282 = pneg %p68
        %p283 = pneg %p65
        %p284 = pneg %p89
        %p285 = pneg %p86
        %p286 = pneg %p110
        %p287 = pneg %p107
        %p288 = pneg %p131
        %p289 = pneg %p128
        %p290 = pneg %p152
        %p291 = pneg %p149
        %p292 = pneg %p173
        %p293 = pneg %p170
        %p294 = pneg %p199
        %p295 = pneg %p196
        %s296 = sand.u32 %s186, 1
        %s297 = scalar_lea.sflag [#allocation3], %s296
        %s298 = sand.u32 %s186, 1
        %s299 = smul.addr %s298, 8
        %s300 = scalar_lea.vmem [#allocation2], %s299
        %p301 = pneg %p225
        %p302 = pneg %p222
        %s303 = sand.u32 %s212, 1
        %s304 = scalar_lea.sflag [#allocation5], %s303
        %s305 = sand.u32 %s212, 1
        %s306 = smul.addr %s305, 64
        %s307 = scalar_lea.vmem [#allocation4], %s306
        %p308 = scmp.lt.s32.totalorder %s26, 1
        %s309 = scalar_select %p308, %s26, 1
        %s310 = smul.addr %s309, 8
        %s311 = scalar_lea.vmem %s0, %s310
        %v312 = vld [vmem:[%s311] sm:$0xff]
        %vm313 = vcmask 261120
        %v314 = vsel %vm313, %v312, 0.0
        %315 = vadd.xlane.f32.xlu0 %v314
        %v316 = vpop.xlane.xlu0 %315
        %v317 = vrcp.pop 32.0
        %v318 = vmul.f32 %v316, %v317
        %v319 = vsub.f32 %v312, %v318
        %v320 = vmul.f32 %v319, %v319
        %v321 = vsel %vm313, %v320, 0.0
        %322 = vadd.xlane.f32.xlu0 %v321
        %v323 = vpop.xlane.xlu0 %322
        %v324 = vmul.f32 %v323, %v317
        %v325 = vadd.f32 %v324, 1e-05
        %v326 = vrsqrt.pop %v325
        %v327 = vmul.f32 %v319, %v326
        %v328 = vld [vmem:[%s1] sm:$0x1]
        %v330 = vlaneseq
        %v331 = vshrl.u32 %v330, 7
        %v332 = vsub.s32 0, %v331
        %v333 = vrot.slane %v328, %v332
        %v335 = vmul.f32 %v327, %v333
        %v336 = vld [vmem:[%s2] sm:$0x1]
        %v338 = vlaneseq
        %v339 = vshrl.u32 %v338, 7
        %v340 = vsub.s32 0, %v339
        %v341 = vrot.slane %v336, %v340
        %v343 = vadd.f32 %v335, %v341
        %v344 = vld [vmem:[%s3] sm:$0xff]
        %v345 = vld [vmem:[%s3 + $0x8] sm:$0xff]
        %v346 = vld [vmem:[%s3 + $0x10] sm:$0xff]
        %v347 = vld [vmem:[%s3 + $0x18] sm:$0xff]
        %v348 = vld [vmem:[%s3 + $0x20] sm:$0xff]
        %v349 = vld [vmem:[%s3 + $0x28] sm:$0xff]
        %v350 = vld [vmem:[%s3 + $0x30] sm:$0xff]
        %v351 = vld [vmem:[%s3 + $0x38] sm:$0xff]
        %v352 = vld [vmem:[%s3 + $0x40] sm:$0xff]
        %v353 = vld [vmem:[%s3 + $0x48] sm:$0xff]
        %v354 = vld [vmem:[%s3 + $0x50] sm:$0xff]
        %v355 = vld [vmem:[%s3 + $0x58] sm:$0xff]
        %v356 = vld [vmem:[%s3 + $0x60] sm:$0xff]
        %v357 = vld [vmem:[%s3 + $0x68] sm:$0xff]
        %v358 = vld [vmem:[%s3 + $0x70] sm:$0xff]
        %v359 = vld [vmem:[%s3 + $0x78] sm:$0xff]
        %v361 = vsel %vm313, %v343, 0
        %363 = vmatprep.subr.mxu0 0.0
        %364 = vmatpush1.msra.mxu0 0.0
        %365 = vmatprep.subr.mxu0 0.0
        %366 = vmatpush1.msra.mxu0 0.0
        %367 = vmatprep.subr.mxu0 0.0
        %368 = vmatpush1.msra.mxu0 0.0
        %369 = vmatprep.subr.mxu0 0.0
        %370 = vmatpush1.msra.mxu0 0.0
        %371 = vmatprep.subr.mxu0 0.0
        %372 = vmatpush1.msra.mxu0 0.0
        %373 = vmatprep.subr.mxu0 0.0
        %374 = vmatpush1.msra.mxu0 0.0
        %375 = vmatprep.subr.mxu0 0.0
        %376 = vmatpush1.msra.mxu0 0.0
        %377 = vmatprep.subr.mxu0 0.0
        %378 = vmatpush1.msra.mxu0 0.0
        %379 = vmatprep.subr.mxu0 0.0
        %380 = vmatpush1.msra.mxu0 0.0
        %381 = vmatprep.subr.mxu0 0.0
        %382 = vmatpush1.msra.mxu0 0.0
        %383 = vmatprep.subr.mxu0 0.0
        %384 = vmatpush1.msra.mxu0 0.0
        %385 = vmatprep.subr.mxu0 0.0
        %386 = vmatpush1.msra.mxu0 0.0
        %387 = vmatprep.subr.mxu0 %v357
        %388 = vmatpush1.msra.mxu0 %v356
        %389 = vmatprep.subr.mxu0 %v353
        %390 = vmatpush1.msra.mxu0 %v352
        %391 = vmatprep.subr.mxu0 %v349
        %392 = vmatpush1.msra.mxu0 %v348
        %393 = vmatprep.subr.mxu0 %v345
        %394 = vmatpush1.msra.mxu0 %v344
        %395 = vmatprep.subr.mxu0 0.0
        %396 = vmatpush2.msra.mxu0 0.0
        %397 = vmatprep.subr.mxu0 0.0
        %398 = vmatpush2.msra.mxu0 0.0
        %399 = vmatprep.subr.mxu0 0.0
        %400 = vmatpush2.msra.mxu0 0.0
        %401 = vmatprep.subr.mxu0 0.0
        %402 = vmatpush2.msra.mxu0 0.0
        %403 = vmatprep.subr.mxu0 0.0
        %404 = vmatpush2.msra.mxu0 0.0
        %405 = vmatprep.subr.mxu0 0.0
        %406 = vmatpush2.msra.mxu0 0.0
        %407 = vmatprep.subr.mxu0 0.0
        %408 = vmatpush2.msra.mxu0 0.0
        %409 = vmatprep.subr.mxu0 0.0
        %410 = vmatpush2.msra.mxu0 0.0
        %411 = vmatprep.subr.mxu0 0.0
        %412 = vmatpush2.msra.mxu0 0.0
        %413 = vmatprep.subr.mxu0 0.0
        %414 = vmatpush2.msra.mxu0 0.0
        %415 = vmatprep.subr.mxu0 0.0
        %416 = vmatpush2.msra.mxu0 0.0
        %417 = vmatprep.subr.mxu0 0.0
        %418 = vmatpush2.msra.mxu0 0.0
        %419 = vmatprep.subr.mxu0 0.0
        %420 = vmatpush2.msra.mxu0 0.0
        %421 = vmatprep.subr.mxu0 0.0
        %422 = vmatpush2.msra.mxu0 0.0
        %423 = vmatprep.subr.mxu0 0.0
        %424 = vmatpush2.msra.mxu0 0.0
        %425 = vmatprep.subr.mxu0 0.0
        %426 = vmatpush2.msra.mxu0 0.0
        %427 = vmatprep.mubr.f32.mxu0 0.0
        %428 = vmatmul.mubr.f32.gmra.mxu0 %v361
        %v429 = vpop.f32.mrf.mxu0
        %v430 = vadd.f32 0.0, %v429
        %v431 = vpop.f32.mrf.mxu0
        %v432 = vadd.f32 0.0, %v431
        %433 = vdwg.mxu0
        %434 = vmatprep.subr.mxu0 0.0
        %435 = vmatpush1.msra.mxu0 0.0
        %436 = vmatprep.subr.mxu0 0.0
        %437 = vmatpush1.msra.mxu0 0.0
        %438 = vmatprep.subr.mxu0 0.0
        %439 = vmatpush1.msra.mxu0 0.0
        %440 = vmatprep.subr.mxu0 0.0
        %441 = vmatpush1.msra.mxu0 0.0
        %442 = vmatprep.subr.mxu0 0.0
        %443 = vmatpush1.msra.mxu0 0.0
        %444 = vmatprep.subr.mxu0 0.0
        %445 = vmatpush1.msra.mxu0 0.0
        %446 = vmatprep.subr.mxu0 0.0
        %447 = vmatpush1.msra.mxu0 0.0
        %448 = vmatprep.subr.mxu0 0.0
        %449 = vmatpush1.msra.mxu0 0.0
        %450 = vmatprep.subr.mxu0 0.0
        %451 = vmatpush1.msra.mxu0 0.0
        %452 = vmatprep.subr.mxu0 0.0
        %453 = vmatpush1.msra.mxu0 0.0
        %454 = vmatprep.subr.mxu0 0.0
        %455 = vmatpush1.msra.mxu0 0.0
        %456 = vmatprep.subr.mxu0 0.0
        %457 = vmatpush1.msra.mxu0 0.0
        %458 = vmatprep.subr.mxu0 %v359
        %459 = vmatpush1.msra.mxu0 %v358
        %460 = vmatprep.subr.mxu0 %v355
        %461 = vmatpush1.msra.mxu0 %v354
        %462 = vmatprep.subr.mxu0 %v351
        %463 = vmatpush1.msra.mxu0 %v350
        %464 = vmatprep.subr.mxu0 %v347
        %465 = vmatpush1.msra.mxu0 %v346
        %466 = vmatprep.subr.mxu0 0.0
        %467 = vmatpush2.msra.mxu0 0.0
        %468 = vmatprep.subr.mxu0 0.0
        %469 = vmatpush2.msra.mxu0 0.0
        %470 = vmatprep.subr.mxu0 0.0
        %471 = vmatpush2.msra.mxu0 0.0
        %472 = vmatprep.subr.mxu0 0.0
        %473 = vmatpush2.msra.mxu0 0.0
        %474 = vmatprep.subr.mxu0 0.0
        %475 = vmatpush2.msra.mxu0 0.0
        %476 = vmatprep.subr.mxu0 0.0
        %477 = vmatpush2.msra.mxu0 0.0
        %478 = vmatprep.subr.mxu0 0.0
        %479 = vmatpush2.msra.mxu0 0.0
        %480 = vmatprep.subr.mxu0 0.0
        %481 = vmatpush2.msra.mxu0 0.0
        %482 = vmatprep.subr.mxu0 0.0
        %483 = vmatpush2.msra.mxu0 0.0
        %484 = vmatprep.subr.mxu0 0.0
        %485 = vmatpush2.msra.mxu0 0.0
        %486 = vmatprep.subr.mxu0 0.0
        %487 = vmatpush2.msra.mxu0 0.0
        %488 = vmatprep.subr.mxu0 0.0
        %489 = vmatpush2.msra.mxu0 0.0
        %490 = vmatprep.subr.mxu0 0.0
        %491 = vmatpush2.msra.mxu0 0.0
        %492 = vmatprep.subr.mxu0 0.0
        %493 = vmatpush2.msra.mxu0 0.0
        %494 = vmatprep.subr.mxu0 0.0
        %495 = vmatpush2.msra.mxu0 0.0
        %496 = vmatprep.subr.mxu0 0.0
        %497 = vmatpush2.msra.mxu0 0.0
        %498 = vmatprep.mubr.f32.mxu0 0.0
        %499 = vmatmul.mubr.f32.gmra.mxu0 %v361
        %v500 = vpop.f32.mrf.mxu0
        %v501 = vadd.f32 0.0, %v500
        %v502 = vpop.f32.mrf.mxu0
        %v503 = vadd.f32 0.0, %v502
        %504 = vdwg.mxu0
        %v505 = vmul.f32 %v430, 0.125
        %v506 = vmul.f32 %v432, 0.125
        %v507 = vmul.f32 %v501, 0.125
        %v508 = vmul.f32 %v503, 0.125
        %v509 = vld [vmem:[%s4] sm:$0xff]
        %v510 = vld [vmem:[%s4 + $0x8] sm:$0xff]
        %v511 = vld [vmem:[%s4 + $0x10] sm:$0xff]
        %v512 = vld [vmem:[%s4 + $0x18] sm:$0xff]
        %v513 = vld [vmem:[%s4 + $0x20] sm:$0xff]
        %v514 = vld [vmem:[%s4 + $0x28] sm:$0xff]
        %v515 = vld [vmem:[%s4 + $0x30] sm:$0xff]
        %v516 = vld [vmem:[%s4 + $0x38] sm:$0xff]
        %v517 = vld [vmem:[%s4 + $0x40] sm:$0xff]
        %v518 = vld [vmem:[%s4 + $0x48] sm:$0xff]
        %v519 = vld [vmem:[%s4 + $0x50] sm:$0xff]
        %v520 = vld [vmem:[%s4 + $0x58] sm:$0xff]
        %v521 = vld [vmem:[%s4 + $0x60] sm:$0xff]
        %v522 = vld [vmem:[%s4 + $0x68] sm:$0xff]
        %v523 = vld [vmem:[%s4 + $0x70] sm:$0xff]
        %v524 = vld [vmem:[%s4 + $0x78] sm:$0xff]
        %525 = vmatprep.subr.mxu0 0.0
        %526 = vmatpush1.msra.mxu0 0.0
        %527 = vmatprep.subr.mxu0 0.0
        %528 = vmatpush1.msra.mxu0 0.0
        %529 = vmatprep.subr.mxu0 0.0
        %530 = vmatpush1.msra.mxu0 0.0
        %531 = vmatprep.subr.mxu0 0.0
        %532 = vmatpush1.msra.mxu0 0.0
        %533 = vmatprep.subr.mxu0 0.0
        %534 = vmatpush1.msra.mxu0 0.0
        %535 = vmatprep.subr.mxu0 0.0
        %536 = vmatpush1.msra.mxu0 0.0
        %537 = vmatprep.subr.mxu0 0.0
        %538 = vmatpush1.msra.mxu0 0.0
        %539 = vmatprep.subr.mxu0 0.0
        %540 = vmatpush1.msra.mxu0 0.0
        %541 = vmatprep.subr.mxu0 0.0
        %542 = vmatpush1.msra.mxu0 0.0
        %543 = vmatprep.subr.mxu0 0.0
        %544 = vmatpush1.msra.mxu0 0.0
        %545 = vmatprep.subr.mxu0 0.0
        %546 = vmatpush1.msra.mxu0 0.0
        %547 = vmatprep.subr.mxu0 0.0
        %548 = vmatpush1.msra.mxu0 0.0
        %549 = vmatprep.subr.mxu0 %v522
        %550 = vmatpush1.msra.mxu0 %v521
        %551 = vmatprep.subr.mxu0 %v518
        %552 = vmatpush1.msra.mxu0 %v517
        %553 = vmatprep.subr.mxu0 %v514
        %554 = vmatpush1.msra.mxu0 %v513
        %555 = vmatprep.subr.mxu0 %v510
        %556 = vmatpush1.msra.mxu0 %v509
        %557 = vmatprep.subr.mxu0 0.0
        %558 = vmatpush2.msra.mxu0 0.0
        %559 = vmatprep.subr.mxu0 0.0
        %560 = vmatpush2.msra.mxu0 0.0
        %561 = vmatprep.subr.mxu0 0.0
        %562 = vmatpush2.msra.mxu0 0.0
        %563 = vmatprep.subr.mxu0 0.0
        %564 = vmatpush2.msra.mxu0 0.0
        %565 = vmatprep.subr.mxu0 0.0
        %566 = vmatpush2.msra.mxu0 0.0
        %567 = vmatprep.subr.mxu0 0.0
        %568 = vmatpush2.msra.mxu0 0.0
        %569 = vmatprep.subr.mxu0 0.0
        %570 = vmatpush2.msra.mxu0 0.0
        %571 = vmatprep.subr.mxu0 0.0
        %572 = vmatpush2.msra.mxu0 0.0
        %573 = vmatprep.subr.mxu0 0.0
        %574 = vmatpush2.msra.mxu0 0.0
        %575 = vmatprep.subr.mxu0 0.0
        %576 = vmatpush2.msra.mxu0 0.0
        %577 = vmatprep.subr.mxu0 0.0
        %578 = vmatpush2.msra.mxu0 0.0
        %579 = vmatprep.subr.mxu0 0.0
        %580 = vmatpush2.msra.mxu0 0.0
        %581 = vmatprep.subr.mxu0 0.0
        %582 = vmatpush2.msra.mxu0 0.0
        %583 = vmatprep.subr.mxu0 0.0
        %584 = vmatpush2.msra.mxu0 0.0
        %585 = vmatprep.subr.mxu0 0.0
        %586 = vmatpush2.msra.mxu0 0.0
        %587 = vmatprep.subr.mxu0 0.0
        %588 = vmatpush2.msra.mxu0 0.0
        %589 = vmatprep.mubr.f32.mxu0 0.0
        %590 = vmatmul.mubr.f32.gmra.mxu0 %v361
        %v591 = vpop.f32.mrf.mxu0
        %v592 = vadd.f32 0.0, %v591
        %v593 = vpop.f32.mrf.mxu0
        %v594 = vadd.f32 0.0, %v593
        %595 = vdwg.mxu0
        %596 = vmatprep.subr.mxu0 0.0
        %597 = vmatpush1.msra.mxu0 0.0
        %598 = vmatprep.subr.mxu0 0.0
        %599 = vmatpush1.msra.mxu0 0.0
        %600 = vmatprep.subr.mxu0 0.0
        %601 = vmatpush1.msra.mxu0 0.0
        %602 = vmatprep.subr.mxu0 0.0
        %603 = vmatpush1.msra.mxu0 0.0
        %604 = vmatprep.subr.mxu0 0.0
        %605 = vmatpush1.msra.mxu0 0.0
        %606 = vmatprep.subr.mxu0 0.0
        %607 = vmatpush1.msra.mxu0 0.0
        %608 = vmatprep.subr.mxu0 0.0
        %609 = vmatpush1.msra.mxu0 0.0
        %610 = vmatprep.subr.mxu0 0.0
        %611 = vmatpush1.msra.mxu0 0.0
        %612 = vmatprep.subr.mxu0 0.0
        %613 = vmatpush1.msra.mxu0 0.0
        %614 = vmatprep.subr.mxu0 0.0
        %615 = vmatpush1.msra.mxu0 0.0
        %616 = vmatprep.subr.mxu0 0.0
        %617 = vmatpush1.msra.mxu0 0.0
        %618 = vmatprep.subr.mxu0 0.0
        %619 = vmatpush1.msra.mxu0 0.0
        %620 = vmatprep.subr.mxu0 %v524
        %621 = vmatpush1.msra.mxu0 %v523
        %622 = vmatprep.subr.mxu0 %v520
        %623 = vmatpush1.msra.mxu0 %v519
        %624 = vmatprep.subr.mxu0 %v516
        %625 = vmatpush1.msra.mxu0 %v515
        %626 = vmatprep.subr.mxu0 %v512
        %627 = vmatpush1.msra.mxu0 %v511
        %628 = vmatprep.subr.mxu0 0.0
        %629 = vmatpush2.msra.mxu0 0.0
        %630 = vmatprep.subr.mxu0 0.0
        %631 = vmatpush2.msra.mxu0 0.0
        %632 = vmatprep.subr.mxu0 0.0
        %633 = vmatpush2.msra.mxu0 0.0
        %634 = vmatprep.subr.mxu0 0.0
        %635 = vmatpush2.msra.mxu0 0.0
        %636 = vmatprep.subr.mxu0 0.0
        %637 = vmatpush2.msra.mxu0 0.0
        %638 = vmatprep.subr.mxu0 0.0
        %639 = vmatpush2.msra.mxu0 0.0
        %640 = vmatprep.subr.mxu0 0.0
        %641 = vmatpush2.msra.mxu0 0.0
        %642 = vmatprep.subr.mxu0 0.0
        %643 = vmatpush2.msra.mxu0 0.0
        %644 = vmatprep.subr.mxu0 0.0
        %645 = vmatpush2.msra.mxu0 0.0
        %646 = vmatprep.subr.mxu0 0.0
        %647 = vmatpush2.msra.mxu0 0.0
        %648 = vmatprep.subr.mxu0 0.0
        %649 = vmatpush2.msra.mxu0 0.0
        %650 = vmatprep.subr.mxu0 0.0
        %651 = vmatpush2.msra.mxu0 0.0
        %652 = vmatprep.subr.mxu0 0.0
        %653 = vmatpush2.msra.mxu0 0.0
        %654 = vmatprep.subr.mxu0 0.0
        %655 = vmatpush2.msra.mxu0 0.0
        %656 = vmatprep.subr.mxu0 0.0
        %657 = vmatpush2.msra.mxu0 0.0
        %658 = vmatprep.subr.mxu0 0.0
        %659 = vmatpush2.msra.mxu0 0.0
        %660 = vmatprep.mubr.f32.mxu0 0.0
        %661 = vmatmul.mubr.f32.gmra.mxu0 %v361
        %v662 = vpop.f32.mrf.mxu0
        %v663 = vadd.f32 0.0, %v662
        %v664 = vpop.f32.mrf.mxu0
        %v665 = vadd.f32 0.0, %v664
        %666 = vdwg.mxu0
        %v667 = vld [vmem:[%s5] sm:$0xff]
        %v668 = vld [vmem:[%s5 + $0x8] sm:$0xff]
        %v669 = vld [vmem:[%s5 + $0x10] sm:$0xff]
        %v670 = vld [vmem:[%s5 + $0x18] sm:$0xff]
        %v671 = vld [vmem:[%s5 + $0x20] sm:$0xff]
        %v672 = vld [vmem:[%s5 + $0x28] sm:$0xff]
        %v673 = vld [vmem:[%s5 + $0x30] sm:$0xff]
        %v674 = vld [vmem:[%s5 + $0x38] sm:$0xff]
        %v675 = vld [vmem:[%s5 + $0x40] sm:$0xff]
        %v676 = vld [vmem:[%s5 + $0x48] sm:$0xff]
        %v677 = vld [vmem:[%s5 + $0x50] sm:$0xff]
        %v678 = vld [vmem:[%s5 + $0x58] sm:$0xff]
        %v679 = vld [vmem:[%s5 + $0x60] sm:$0xff]
        %v680 = vld [vmem:[%s5 + $0x68] sm:$0xff]
        %v681 = vld [vmem:[%s5 + $0x70] sm:$0xff]
        %v682 = vld [vmem:[%s5 + $0x78] sm:$0xff]
        %683 = vmatprep.subr.mxu0 0.0
        %684 = vmatpush1.msra.mxu0 0.0
        %685 = vmatprep.subr.mxu0 0.0
        %686 = vmatpush1.msra.mxu0 0.0
        %687 = vmatprep.subr.mxu0 0.0
        %688 = vmatpush1.msra.mxu0 0.0
        %689 = vmatprep.subr.mxu0 0.0
        %690 = vmatpush1.msra.mxu0 0.0
        %691 = vmatprep.subr.mxu0 0.0
        %692 = vmatpush1.msra.mxu0 0.0
        %693 = vmatprep.subr.mxu0 0.0
        %694 = vmatpush1.msra.mxu0 0.0
        %695 = vmatprep.subr.mxu0 0.0
        %696 = vmatpush1.msra.mxu0 0.0
        %697 = vmatprep.subr.mxu0 0.0
        %698 = vmatpush1.msra.mxu0 0.0
        %699 = vmatprep.subr.mxu0 0.0
        %700 = vmatpush1.msra.mxu0 0.0
        %701 = vmatprep.subr.mxu0 0.0
        %702 = vmatpush1.msra.mxu0 0.0
        %703 = vmatprep.subr.mxu0 0.0
        %704 = vmatpush1.msra.mxu0 0.0
        %705 = vmatprep.subr.mxu0 0.0
        %706 = vmatpush1.msra.mxu0 0.0
        %707 = vmatprep.subr.mxu0 %v680
        %708 = vmatpush1.msra.mxu0 %v679
        %709 = vmatprep.subr.mxu0 %v676
        %710 = vmatpush1.msra.mxu0 %v675
        %711 = vmatprep.subr.mxu0 %v672
        %712 = vmatpush1.msra.mxu0 %v671
        %713 = vmatprep.subr.mxu0 %v668
        %714 = vmatpush1.msra.mxu0 %v667
        %715 = vmatprep.subr.mxu0 0.0
        %716 = vmatpush2.msra.mxu0 0.0
        %717 = vmatprep.subr.mxu0 0.0
        %718 = vmatpush2.msra.mxu0 0.0
        %719 = vmatprep.subr.mxu0 0.0
        %720 = vmatpush2.msra.mxu0 0.0
        %721 = vmatprep.subr.mxu0 0.0
        %722 = vmatpush2.msra.mxu0 0.0
        %723 = vmatprep.subr.mxu0 0.0
        %724 = vmatpush2.msra.mxu0 0.0
        %725 = vmatprep.subr.mxu0 0.0
        %726 = vmatpush2.msra.mxu0 0.0
        %727 = vmatprep.subr.mxu0 0.0
        %728 = vmatpush2.msra.mxu0 0.0
        %729 = vmatprep.subr.mxu0 0.0
        %730 = vmatpush2.msra.mxu0 0.0
        %731 = vmatprep.subr.mxu0 0.0
        %732 = vmatpush2.msra.mxu0 0.0
        %733 = vmatprep.subr.mxu0 0.0
        %734 = vmatpush2.msra.mxu0 0.0
        %735 = vmatprep.subr.mxu0 0.0
        %736 = vmatpush2.msra.mxu0 0.0
        %737 = vmatprep.subr.mxu0 0.0
        %738 = vmatpush2.msra.mxu0 0.0
        %739 = vmatprep.subr.mxu0 0.0
        %740 = vmatpush2.msra.mxu0 0.0
        %741 = vmatprep.subr.mxu0 0.0
        %742 = vmatpush2.msra.mxu0 0.0
        %743 = vmatprep.subr.mxu0 0.0
        %744 = vmatpush2.msra.mxu0 0.0
        %745 = vmatprep.subr.mxu0 0.0
        %746 = vmatpush2.msra.mxu0 0.0
        %747 = vmatprep.mubr.f32.mxu0 0.0
        %748 = vmatmul.mubr.f32.gmra.mxu0 %v361
        %v749 = vpop.f32.mrf.mxu0
        %v750 = vadd.f32 0.0, %v749
        %v751 = vpop.f32.mrf.mxu0
        %v752 = vadd.f32 0.0, %v751
        %753 = vdwg.mxu0
        %754 = vmatprep.subr.mxu0 0.0
        %755 = vmatpush1.msra.mxu0 0.0
        %756 = vmatprep.subr.mxu0 0.0
        %757 = vmatpush1.msra.mxu0 0.0
        %758 = vmatprep.subr.mxu0 0.0
        %759 = vmatpush1.msra.mxu0 0.0
        %760 = vmatprep.subr.mxu0 0.0
        %761 = vmatpush1.msra.mxu0 0.0
        %762 = vmatprep.subr.mxu0 0.0
        %763 = vmatpush1.msra.mxu0 0.0
        %764 = vmatprep.subr.mxu0 0.0
        %765 = vmatpush1.msra.mxu0 0.0
        %766 = vmatprep.subr.mxu0 0.0
        %767 = vmatpush1.msra.mxu0 0.0
        %768 = vmatprep.subr.mxu0 0.0
        %769 = vmatpush1.msra.mxu0 0.0
        %770 = vmatprep.subr.mxu0 0.0
        %771 = vmatpush1.msra.mxu0 0.0
        %772 = vmatprep.subr.mxu0 0.0
        %773 = vmatpush1.msra.mxu0 0.0
        %774 = vmatprep.subr.mxu0 0.0
        %775 = vmatpush1.msra.mxu0 0.0
        %776 = vmatprep.subr.mxu0 0.0
        %777 = vmatpush1.msra.mxu0 0.0
        %778 = vmatprep.subr.mxu0 %v682
        %779 = vmatpush1.msra.mxu0 %v681
        %780 = vmatprep.subr.mxu0 %v678
        %781 = vmatpush1.msra.mxu0 %v677
        %782 = vmatprep.subr.mxu0 %v674
        %783 = vmatpush1.msra.mxu0 %v673
        %784 = vmatprep.subr.mxu0 %v670
        %785 = vmatpush1.msra.mxu0 %v669
        %786 = vmatprep.subr.mxu0 0.0
        %787 = vmatpush2.msra.mxu0 0.0
        %788 = vmatprep.subr.mxu0 0.0
        %789 = vmatpush2.msra.mxu0 0.0
        %790 = vmatprep.subr.mxu0 0.0
        %791 = vmatpush2.msra.mxu0 0.0
        %792 = vmatprep.subr.mxu0 0.0
        %793 = vmatpush2.msra.mxu0 0.0
        %794 = vmatprep.subr.mxu0 0.0
        %795 = vmatpush2.msra.mxu0 0.0
        %796 = vmatprep.subr.mxu0 0.0
        %797 = vmatpush2.msra.mxu0 0.0
        %798 = vmatprep.subr.mxu0 0.0
        %799 = vmatpush2.msra.mxu0 0.0
        %800 = vmatprep.subr.mxu0 0.0
        %801 = vmatpush2.msra.mxu0 0.0
        %802 = vmatprep.subr.mxu0 0.0
        %803 = vmatpush2.msra.mxu0 0.0
        %804 = vmatprep.subr.mxu0 0.0
        %805 = vmatpush2.msra.mxu0 0.0
        %806 = vmatprep.subr.mxu0 0.0
        %807 = vmatpush2.msra.mxu0 0.0
        %808 = vmatprep.subr.mxu0 0.0
        %809 = vmatpush2.msra.mxu0 0.0
        %810 = vmatprep.subr.mxu0 0.0
        %811 = vmatpush2.msra.mxu0 0.0
        %812 = vmatprep.subr.mxu0 0.0
        %813 = vmatpush2.msra.mxu0 0.0
        %814 = vmatprep.subr.mxu0 0.0
        %815 = vmatpush2.msra.mxu0 0.0
        %816 = vmatprep.subr.mxu0 0.0
        %817 = vmatpush2.msra.mxu0 0.0
        %818 = vmatprep.mubr.f32.mxu0 0.0
        %819 = vmatmul.mubr.f32.gmra.mxu0 %v361
        %v820 = vpop.f32.mrf.mxu0
        %v821 = vadd.f32 0.0, %v820
        %v822 = vpop.f32.mrf.mxu0
        %v823 = vadd.f32 0.0, %v822
        %824 = vdwg.mxu0
        %vm825 = vcmask 523264
        %v827 = vsel %vm825, %v505, 0
        %v830 = vsel %vm825, %v592, 0
        %832 = vmatprep.subr.mxu0 0.0
        %833 = vmatpush1.xpose.msra.mxu0 0.0
        %834 = vmatprep.subr.mxu0 0.0
        %835 = vmatpush1.xpose.msra.mxu0 0.0
        %836 = vmatprep.subr.mxu0 0.0
        %837 = vmatpush1.xpose.msra.mxu0 0.0
        %838 = vmatprep.subr.mxu0 0.0
        %839 = vmatpush1.xpose.msra.mxu0 0.0
        %840 = vmatprep.subr.mxu0 0.0
        %841 = vmatpush1.xpose.msra.mxu0 0.0
        %842 = vmatprep.subr.mxu0 0.0
        %843 = vmatpush1.xpose.msra.mxu0 0.0
        %844 = vmatprep.subr.mxu0 0.0
        %845 = vmatpush1.xpose.msra.mxu0 0.0
        %846 = vmatprep.subr.mxu0 0.0
        %847 = vmatpush1.xpose.msra.mxu0 0.0
        %848 = vmatprep.subr.mxu0 0.0
        %849 = vmatpush1.xpose.msra.mxu0 0.0
        %850 = vmatprep.subr.mxu0 0.0
        %851 = vmatpush1.xpose.msra.mxu0 0.0
        %852 = vmatprep.subr.mxu0 0.0
        %853 = vmatpush1.xpose.msra.mxu0 0.0
        %854 = vmatprep.subr.mxu0 0.0
        %855 = vmatpush1.xpose.msra.mxu0 0.0
        %856 = vmatprep.subr.mxu0 0.0
        %857 = vmatpush1.xpose.msra.mxu0 0.0
        %858 = vmatprep.subr.mxu0 0.0
        %859 = vmatpush1.xpose.msra.mxu0 0.0
        %860 = vmatprep.subr.mxu0 0.0
        %861 = vmatpush1.xpose.msra.mxu0 0.0
        %862 = vmatprep.subr.mxu0 0.0
        %863 = vmatpush1.xpose.msra.mxu0 %v830
        %864 = vmatprep.subr.mxu0 0.0
        %865 = vmatpush2.xpose.msra.mxu0 0.0
        %866 = vmatprep.subr.mxu0 0.0
        %867 = vmatpush2.xpose.msra.mxu0 0.0
        %868 = vmatprep.subr.mxu0 0.0
        %869 = vmatpush2.xpose.msra.mxu0 0.0
        %870 = vmatprep.subr.mxu0 0.0
        %871 = vmatpush2.xpose.msra.mxu0 0.0
        %872 = vmatprep.subr.mxu0 0.0
        %873 = vmatpush2.xpose.msra.mxu0 0.0
        %874 = vmatprep.subr.mxu0 0.0
        %875 = vmatpush2.xpose.msra.mxu0 0.0
        %876 = vmatprep.subr.mxu0 0.0
        %877 = vmatpush2.xpose.msra.mxu0 0.0
        %878 = vmatprep.subr.mxu0 0.0
        %879 = vmatpush2.xpose.msra.mxu0 0.0
        %880 = vmatprep.subr.mxu0 0.0
        %881 = vmatpush2.xpose.msra.mxu0 0.0
        %882 = vmatprep.subr.mxu0 0.0
        %883 = vmatpush2.xpose.msra.mxu0 0.0
        %884 = vmatprep.subr.mxu0 0.0
        %885 = vmatpush2.xpose.msra.mxu0 0.0
        %886 = vmatprep.subr.mxu0 0.0
        %887 = vmatpush2.xpose.msra.mxu0 0.0
        %888 = vmatprep.subr.mxu0 0.0
        %889 = vmatpush2.xpose.msra.mxu0 0.0
        %890 = vmatprep.subr.mxu0 0.0
        %891 = vmatpush2.xpose.msra.mxu0 0.0
        %892 = vmatprep.subr.mxu0 0.0
        %893 = vmatpush2.xpose.msra.mxu0 0.0
        %894 = vmatprep.subr.mxu0 0.0
        %895 = vmatpush2.xpose.msra.mxu0 0.0
        %896 = vmatprep.mubr.f32.mxu0 0.0
        %897 = vmatmul.mubr.f32.gmra.mxu0 %v827
        %v898 = vpop.f32.mrf.mxu0
        %v899 = vadd.f32 0.0, %v898
        %v900 = vpop.f32.mrf.mxu0
        %901 = vdwg.mxu0
        %vm902 = vcmask 64512
        %v903 = vsel %vm902, %v899, -inf
        %904 = vmax.xlane.f32.xlu0 %v903
        %v905 = vpop.xlane.xlu0 %904
        %v906 = vsub.f32 %v899, %v905
        %v907 = vmul.f32 %v906, 1.442695
        %v908 = vpow.pop %v907
        %v909 = vsel %vm902, %v908, 0.0
        %910 = vadd.xlane.f32.xlu0 %v909
        %v911 = vpop.xlane.xlu0 %910
        %v912 = vrcp.pop %v911
        %v913 = vmul.f32 %v908, %v912
        %914 = vst.msk [vmem:[%s307] sm:$0xff] %vm902, %v913
        %v916 = vsel %vm902, %v913, 0
        %918 = vmatprep.subr.mxu0 0.0
        %919 = vmatpush1.msra.mxu0 0.0
        %920 = vmatprep.subr.mxu0 0.0
        %921 = vmatpush1.msra.mxu0 0.0
        %922 = vmatprep.subr.mxu0 0.0
        %923 = vmatpush1.msra.mxu0 0.0
        %924 = vmatprep.subr.mxu0 0.0
        %925 = vmatpush1.msra.mxu0 0.0
        %926 = vmatprep.subr.mxu0 0.0
        %927 = vmatpush1.msra.mxu0 0.0
        %928 = vmatprep.subr.mxu0 0.0
        %929 = vmatpush1.msra.mxu0 0.0
        %930 = vmatprep.subr.mxu0 0.0
        %931 = vmatpush1.msra.mxu0 0.0
        %932 = vmatprep.subr.mxu0 0.0
        %933 = vmatpush1.msra.mxu0 0.0
        %934 = vmatprep.subr.mxu0 0.0
        %935 = vmatpush1.msra.mxu0 0.0
        %936 = vmatprep.subr.mxu0 0.0
        %937 = vmatpush1.msra.mxu0 0.0
        %938 = vmatprep.subr.mxu0 0.0
        %939 = vmatpush1.msra.mxu0 0.0
        %940 = vmatprep.subr.mxu0 0.0
        %941 = vmatpush1.msra.mxu0 0.0
        %942 = vmatprep.subr.mxu0 0.0
        %943 = vmatpush1.msra.mxu0 0.0
        %944 = vmatprep.subr.mxu0 0.0
        %945 = vmatpush1.msra.mxu0 0.0
        %946 = vmatprep.subr.mxu0 0.0
        %947 = vmatpush1.msra.mxu0 0.0
        %948 = vmatprep.subr.mxu0 0.0
        %949 = vmatpush1.msra.mxu0 %v750
        %950 = vmatprep.subr.mxu0 0.0
        %951 = vmatpush2.msra.mxu0 0.0
        %952 = vmatprep.subr.mxu0 0.0
        %953 = vmatpush2.msra.mxu0 0.0
        %954 = vmatprep.subr.mxu0 0.0
        %955 = vmatpush2.msra.mxu0 0.0
        %956 = vmatprep.subr.mxu0 0.0
        %957 = vmatpush2.msra.mxu0 0.0
        %958 = vmatprep.subr.mxu0 0.0
        %959 = vmatpush2.msra.mxu0 0.0
        %960 = vmatprep.subr.mxu0 0.0
        %961 = vmatpush2.msra.mxu0 0.0
        %962 = vmatprep.subr.mxu0 0.0
        %963 = vmatpush2.msra.mxu0 0.0
        %964 = vmatprep.subr.mxu0 0.0
        %965 = vmatpush2.msra.mxu0 0.0
        %966 = vmatprep.subr.mxu0 0.0
        %967 = vmatpush2.msra.mxu0 0.0
        %968 = vmatprep.subr.mxu0 0.0
        %969 = vmatpush2.msra.mxu0 0.0
        %970 = vmatprep.subr.mxu0 0.0
        %971 = vmatpush2.msra.mxu0 0.0
        %972 = vmatprep.subr.mxu0 0.0
        %973 = vmatpush2.msra.mxu0 0.0
        %974 = vmatprep.subr.mxu0 0.0
        %975 = vmatpush2.msra.mxu0 0.0
        %976 = vmatprep.subr.mxu0 0.0
        %977 = vmatpush2.msra.mxu0 0.0
        %978 = vmatprep.subr.mxu0 0.0
        %979 = vmatpush2.msra.mxu0 0.0
        %980 = vmatprep.subr.mxu0 0.0
        %981 = vmatpush2.msra.mxu0 0.0
        %982 = vmatprep.mubr.f32.mxu0 0.0
        %983 = vmatmul.mubr.f32.gmra.mxu0 %v916
        %v984 = vpop.f32.mrf.mxu0
        %v985 = vadd.f32 0.0, %v984
        %v986 = vpop.f32.mrf.mxu0
        %987 = vdwg.mxu0
        %v988 = vld [vmem:[%s6] sm:$0xff]
        %v989 = vld [vmem:[%s6 + $0x8] sm:$0xff]
        %v990 = vld [vmem:[%s6 + $0x10] sm:$0xff]
        %v991 = vld [vmem:[%s6 + $0x18] sm:$0xff]
        %v992 = vld [vmem:[%s6 + $0x20] sm:$0xff]
        %v993 = vld [vmem:[%s6 + $0x28] sm:$0xff]
        %v994 = vld [vmem:[%s6 + $0x30] sm:$0xff]
        %v995 = vld [vmem:[%s6 + $0x38] sm:$0xff]
        %996 = vrot.lane.b32.xlu0 %v505, 64
        %v997 = vpop.permute.xlu0 %996
        %998 = vrot.lane.b32.xlu0 %v592, 64
        %v999 = vpop.permute.xlu0 %998
        %v1000 = vsel %vm825, %v997, 0
        %v1002 = vsel %vm825, %v999, 0
        %1004 = vmatprep.subr.mxu0 0.0
        %1005 = vmatpush1.xpose.msra.mxu0 0.0
        %1006 = vmatprep.subr.mxu0 0.0
        %1007 = vmatpush1.xpose.msra.mxu0 0.0
        %1008 = vmatprep.subr.mxu0 0.0
        %1009 = vmatpush1.xpose.msra.mxu0 0.0
        %1010 = vmatprep.subr.mxu0 0.0
        %1011 = vmatpush1.xpose.msra.mxu0 0.0
        %1012 = vmatprep.subr.mxu0 0.0
        %1013 = vmatpush1.xpose.msra.mxu0 0.0
        %1014 = vmatprep.subr.mxu0 0.0
        %1015 = vmatpush1.xpose.msra.mxu0 0.0
        %1016 = vmatprep.subr.mxu0 0.0
        %1017 = vmatpush1.xpose.msra.mxu0 0.0
        %1018 = vmatprep.subr.mxu0 0.0
        %1019 = vmatpush1.xpose.msra.mxu0 0.0
        %1020 = vmatprep.subr.mxu0 0.0
        %1021 = vmatpush1.xpose.msra.mxu0 0.0
        %1022 = vmatprep.subr.mxu0 0.0
        %1023 = vmatpush1.xpose.msra.mxu0 0.0
        %1024 = vmatprep.subr.mxu0 0.0
        %1025 = vmatpush1.xpose.msra.mxu0 0.0
        %1026 = vmatprep.subr.mxu0 0.0
        %1027 = vmatpush1.xpose.msra.mxu0 0.0
        %1028 = vmatprep.subr.mxu0 0.0
        %1029 = vmatpush1.xpose.msra.mxu0 0.0
        %1030 = vmatprep.subr.mxu0 0.0
        %1031 = vmatpush1.xpose.msra.mxu0 0.0
        %1032 = vmatprep.subr.mxu0 0.0
        %1033 = vmatpush1.xpose.msra.mxu0 0.0
        %1034 = vmatprep.subr.mxu0 0.0
        %1035 = vmatpush1.xpose.msra.mxu0 %v1002
        %1036 = vmatprep.subr.mxu0 0.0
        %1037 = vmatpush2.xpose.msra.mxu0 0.0
        %1038 = vmatprep.subr.mxu0 0.0
        %1039 = vmatpush2.xpose.msra.mxu0 0.0
        %1040 = vmatprep.subr.mxu0 0.0
        %1041 = vmatpush2.xpose.msra.mxu0 0.0
        %1042 = vmatprep.subr.mxu0 0.0
        %1043 = vmatpush2.xpose.msra.mxu0 0.0
        %1044 = vmatprep.subr.mxu0 0.0
        %1045 = vmatpush2.xpose.msra.mxu0 0.0
        %1046 = vmatprep.subr.mxu0 0.0
        %1047 = vmatpush2.xpose.msra.mxu0 0.0
        %1048 = vmatprep.subr.mxu0 0.0
        %1049 = vmatpush2.xpose.msra.mxu0 0.0
        %1050 = vmatprep.subr.mxu0 0.0
        %1051 = vmatpush2.xpose.msra.mxu0 0.0
        %1052 = vmatprep.subr.mxu0 0.0
        %1053 = vmatpush2.xpose.msra.mxu0 0.0
        %1054 = vmatprep.subr.mxu0 0.0
        %1055 = vmatpush2.xpose.msra.mxu0 0.0
        %1056 = vmatprep.subr.mxu0 0.0
        %1057 = vmatpush2.xpose.msra.mxu0 0.0
        %1058 = vmatprep.subr.mxu0 0.0
        %1059 = vmatpush2.xpose.msra.mxu0 0.0
        %1060 = vmatprep.subr.mxu0 0.0
        %1061 = vmatpush2.xpose.msra.mxu0 0.0
        %1062 = vmatprep.subr.mxu0 0.0
        %1063 = vmatpush2.xpose.msra.mxu0 0.0
        %1064 = vmatprep.subr.mxu0 0.0
        %1065 = vmatpush2.xpose.msra.mxu0 0.0
        %1066 = vmatprep.subr.mxu0 0.0
        %1067 = vmatpush2.xpose.msra.mxu0 0.0
        %1068 = vmatprep.mubr.f32.mxu0 0.0
        %1069 = vmatmul.mubr.f32.gmra.mxu0 %v1000
        %v1070 = vpop.f32.mrf.mxu0
        %v1071 = vadd.f32 0.0, %v1070
        %v1072 = vpop.f32.mrf.mxu0
        %1073 = vdwg.mxu0
        %v1074 = vsel %vm902, %v1071, -inf
        %1075 = vmax.xlane.f32.xlu0 %v1074
        %v1076 = vpop.xlane.xlu0 %1075
        %v1077 = vsub.f32 %v1071, %v1076
        %v1078 = vmul.f32 %v1077, 1.442695
        %v1079 = vpow.pop %v1078
        %v1080 = vsel %vm902, %v1079, 0.0
        %1081 = vadd.xlane.f32.xlu0 %v1080
        %v1082 = vpop.xlane.xlu0 %1081
        %v1083 = vrcp.pop %v1082
        %v1084 = vmul.f32 %v1079, %v1083
        %s1085 = scalar_lea.vmem %s307, 8 [#allocation4]
        %1086 = vst.msk [vmem:[%s1085] sm:$0xff] %vm902, %v1084
        %1088 = vrot.lane.b32.xlu0 %v750, 64
        %v1089 = vpop.permute.xlu0 %1088
        %v1092 = vsel %vm902, %v1084, 0
        %1094 = vmatprep.subr.mxu0 0.0
        %1095 = vmatpush1.msra.mxu0 0.0
        %1096 = vmatprep.subr.mxu0 0.0
        %1097 = vmatpush1.msra.mxu0 0.0
        %1098 = vmatprep.subr.mxu0 0.0
        %1099 = vmatpush1.msra.mxu0 0.0
        %1100 = vmatprep.subr.mxu0 0.0
        %1101 = vmatpush1.msra.mxu0 0.0
        %1102 = vmatprep.subr.mxu0 0.0
        %1103 = vmatpush1.msra.mxu0 0.0
        %1104 = vmatprep.subr.mxu0 0.0
        %1105 = vmatpush1.msra.mxu0 0.0
        %1106 = vmatprep.subr.mxu0 0.0
        %1107 = vmatpush1.msra.mxu0 0.0
        %1108 = vmatprep.subr.mxu0 0.0
        %1109 = vmatpush1.msra.mxu0 0.0
        %1110 = vmatprep.subr.mxu0 0.0
        %1111 = vmatpush1.msra.mxu0 0.0
        %1112 = vmatprep.subr.mxu0 0.0
        %1113 = vmatpush1.msra.mxu0 0.0
        %1114 = vmatprep.subr.mxu0 0.0
        %1115 = vmatpush1.msra.mxu0 0.0
        %1116 = vmatprep.subr.mxu0 0.0
        %1117 = vmatpush1.msra.mxu0 0.0
        %1118 = vmatprep.subr.mxu0 0.0
        %1119 = vmatpush1.msra.mxu0 0.0
        %1120 = vmatprep.subr.mxu0 0.0
        %1121 = vmatpush1.msra.mxu0 0.0
        %1122 = vmatprep.subr.mxu0 0.0
        %1123 = vmatpush1.msra.mxu0 0.0
        %1124 = vmatprep.subr.mxu0 0.0
        %1125 = vmatpush1.msra.mxu0 %v1089
        %1126 = vmatprep.subr.mxu0 0.0
        %1127 = vmatpush2.msra.mxu0 0.0
        %1128 = vmatprep.subr.mxu0 0.0
        %1129 = vmatpush2.msra.mxu0 0.0
        %1130 = vmatprep.subr.mxu0 0.0
        %1131 = vmatpush2.msra.mxu0 0.0
        %1132 = vmatprep.subr.mxu0 0.0
        %1133 = vmatpush2.msra.mxu0 0.0
        %1134 = vmatprep.subr.mxu0 0.0
        %1135 = vmatpush2.msra.mxu0 0.0
        %1136 = vmatprep.subr.mxu0 0.0
        %1137 = vmatpush2.msra.mxu0 0.0
        %1138 = vmatprep.subr.mxu0 0.0
        %1139 = vmatpush2.msra.mxu0 0.0
        %1140 = vmatprep.subr.mxu0 0.0
        %1141 = vmatpush2.msra.mxu0 0.0
        %1142 = vmatprep.subr.mxu0 0.0
        %1143 = vmatpush2.msra.mxu0 0.0
        %1144 = vmatprep.subr.mxu0 0.0
        %1145 = vmatpush2.msra.mxu0 0.0
        %1146 = vmatprep.subr.mxu0 0.0
        %1147 = vmatpush2.msra.mxu0 0.0
        %1148 = vmatprep.subr.mxu0 0.0
        %1149 = vmatpush2.msra.mxu0 0.0
        %1150 = vmatprep.subr.mxu0 0.0
        %1151 = vmatpush2.msra.mxu0 0.0
        %1152 = vmatprep.subr.mxu0 0.0
        %1153 = vmatpush2.msra.mxu0 0.0
        %1154 = vmatprep.subr.mxu0 0.0
        %1155 = vmatpush2.msra.mxu0 0.0
        %1156 = vmatprep.subr.mxu0 0.0
        %1157 = vmatpush2.msra.mxu0 0.0
        %1158 = vmatprep.mubr.f32.mxu0 0.0
        %1159 = vmatmul.mubr.f32.gmra.mxu0 %v1092
        %v1160 = vpop.f32.mrf.mxu0
        %v1161 = vadd.f32 0.0, %v1160
        %v1162 = vpop.f32.mrf.mxu0
        %1163 = vdwg.mxu0
        %v1164 = vld [vmem:[%s6 + $0x40] sm:$0xff]
        %v1165 = vld [vmem:[%s6 + $0x48] sm:$0xff]
        %v1166 = vld [vmem:[%s6 + $0x50] sm:$0xff]
        %v1167 = vld [vmem:[%s6 + $0x58] sm:$0xff]
        %v1168 = vld [vmem:[%s6 + $0x60] sm:$0xff]
        %v1169 = vld [vmem:[%s6 + $0x68] sm:$0xff]
        %v1170 = vld [vmem:[%s6 + $0x70] sm:$0xff]
        %v1171 = vld [vmem:[%s6 + $0x78] sm:$0xff]
        %v1173 = vsel %vm825, %v1161, 0
        %1175 = vmatprep.subr.mxu0 0.0
        %1176 = vmatpush1.msra.mxu0 0.0
        %1177 = vmatprep.subr.mxu0 0.0
        %1178 = vmatpush1.msra.mxu0 0.0
        %1179 = vmatprep.subr.mxu0 0.0
        %1180 = vmatpush1.msra.mxu0 0.0
        %1181 = vmatprep.subr.mxu0 0.0
        %1182 = vmatpush1.msra.mxu0 0.0
        %1183 = vmatprep.subr.mxu0 0.0
        %1184 = vmatpush1.msra.mxu0 0.0
        %1185 = vmatprep.subr.mxu0 0.0
        %1186 = vmatpush1.msra.mxu0 0.0
        %1187 = vmatprep.subr.mxu0 0.0
        %1188 = vmatpush1.msra.mxu0 0.0
        %1189 = vmatprep.subr.mxu0 0.0
        %1190 = vmatpush1.msra.mxu0 0.0
        %1191 = vmatprep.subr.mxu0 0.0
        %1192 = vmatpush1.msra.mxu0 %v1171
        %1193 = vmatprep.subr.mxu0 0.0
        %1194 = vmatpush1.msra.mxu0 %v1170
        %1195 = vmatprep.subr.mxu0 0.0
        %1196 = vmatpush1.msra.mxu0 %v1169
        %1197 = vmatprep.subr.mxu0 0.0
        %1198 = vmatpush1.msra.mxu0 %v1168
        %1199 = vmatprep.subr.mxu0 0.0
        %1200 = vmatpush1.msra.mxu0 %v1167
        %1201 = vmatprep.subr.mxu0 0.0
        %1202 = vmatpush1.msra.mxu0 %v1166
        %1203 = vmatprep.subr.mxu0 0.0
        %1204 = vmatpush1.msra.mxu0 %v1165
        %1205 = vmatprep.subr.mxu0 0.0
        %1206 = vmatpush1.msra.mxu0 %v1164
        %1207 = vmatprep.subr.mxu0 0.0
        %1208 = vmatpush2.msra.mxu0 0.0
        %1209 = vmatprep.subr.mxu0 0.0
        %1210 = vmatpush2.msra.mxu0 0.0
        %1211 = vmatprep.subr.mxu0 0.0
        %1212 = vmatpush2.msra.mxu0 0.0
        %1213 = vmatprep.subr.mxu0 0.0
        %1214 = vmatpush2.msra.mxu0 0.0
        %1215 = vmatprep.subr.mxu0 0.0
        %1216 = vmatpush2.msra.mxu0 0.0
        %1217 = vmatprep.subr.mxu0 0.0
        %1218 = vmatpush2.msra.mxu0 0.0
        %1219 = vmatprep.subr.mxu0 0.0
        %1220 = vmatpush2.msra.mxu0 0.0
        %1221 = vmatprep.subr.mxu0 0.0
        %1222 = vmatpush2.msra.mxu0 0.0
        %1223 = vmatprep.subr.mxu0 0.0
        %1224 = vmatpush2.msra.mxu0 0.0
        %1225 = vmatprep.subr.mxu0 0.0
        %1226 = vmatpush2.msra.mxu0 0.0
        %1227 = vmatprep.subr.mxu0 0.0
        %1228 = vmatpush2.msra.mxu0 0.0
        %1229 = vmatprep.subr.mxu0 0.0
        %1230 = vmatpush2.msra.mxu0 0.0
        %1231 = vmatprep.subr.mxu0 0.0
        %1232 = vmatpush2.msra.mxu0 0.0
        %1233 = vmatprep.subr.mxu0 0.0
        %1234 = vmatpush2.msra.mxu0 0.0
        %1235 = vmatprep.subr.mxu0 0.0
        %1236 = vmatpush2.msra.mxu0 0.0
        %1237 = vmatprep.subr.mxu0 0.0
        %1238 = vmatpush2.msra.mxu0 0.0
        %1239 = vmatprep.mubr.f32.mxu0 0.0
        %1240 = vmatmul.mubr.f32.gmra.mxu0 %v1173
        %v1241 = vpop.f32.mrf.mxu0
        %v1242 = vadd.f32 0.0, %v1241
        %v1243 = vpop.f32.mrf.mxu0
        %1244 = vdwg.mxu0
        %v1246 = vsel %vm825, %v985, 0
        %1248 = vmatprep.subr.mxu0 0.0
        %1249 = vmatpush1.msra.mxu0 0.0
        %1250 = vmatprep.subr.mxu0 0.0
        %1251 = vmatpush1.msra.mxu0 0.0
        %1252 = vmatprep.subr.mxu0 0.0
        %1253 = vmatpush1.msra.mxu0 0.0
        %1254 = vmatprep.subr.mxu0 0.0
        %1255 = vmatpush1.msra.mxu0 0.0
        %1256 = vmatprep.subr.mxu0 0.0
        %1257 = vmatpush1.msra.mxu0 0.0
        %1258 = vmatprep.subr.mxu0 0.0
        %1259 = vmatpush1.msra.mxu0 0.0
        %1260 = vmatprep.subr.mxu0 0.0
        %1261 = vmatpush1.msra.mxu0 0.0
        %1262 = vmatprep.subr.mxu0 0.0
        %1263 = vmatpush1.msra.mxu0 0.0
        %1264 = vmatprep.subr.mxu0 0.0
        %1265 = vmatpush1.msra.mxu0 %v995
        %1266 = vmatprep.subr.mxu0 0.0
        %1267 = vmatpush1.msra.mxu0 %v994
        %1268 = vmatprep.subr.mxu0 0.0
        %1269 = vmatpush1.msra.mxu0 %v993
        %1270 = vmatprep.subr.mxu0 0.0
        %1271 = vmatpush1.msra.mxu0 %v992
        %1272 = vmatprep.subr.mxu0 0.0
        %1273 = vmatpush1.msra.mxu0 %v991
        %1274 = vmatprep.subr.mxu0 0.0
        %1275 = vmatpush1.msra.mxu0 %v990
        %1276 = vmatprep.subr.mxu0 0.0
        %1277 = vmatpush1.msra.mxu0 %v989
        %1278 = vmatprep.subr.mxu0 0.0
        %1279 = vmatpush1.msra.mxu0 %v988
        %1280 = vmatprep.subr.mxu0 0.0
        %1281 = vmatpush2.msra.mxu0 0.0
        %1282 = vmatprep.subr.mxu0 0.0
        %1283 = vmatpush2.msra.mxu0 0.0
        %1284 = vmatprep.subr.mxu0 0.0
        %1285 = vmatpush2.msra.mxu0 0.0
        %1286 = vmatprep.subr.mxu0 0.0
        %1287 = vmatpush2.msra.mxu0 0.0
        %1288 = vmatprep.subr.mxu0 0.0
        %1289 = vmatpush2.msra.mxu0 0.0
        %1290 = vmatprep.subr.mxu0 0.0
        %1291 = vmatpush2.msra.mxu0 0.0
        %1292 = vmatprep.subr.mxu0 0.0
        %1293 = vmatpush2.msra.mxu0 0.0
        %1294 = vmatprep.subr.mxu0 0.0
        %1295 = vmatpush2.msra.mxu0 0.0
        %1296 = vmatprep.subr.mxu0 0.0
        %1297 = vmatpush2.msra.mxu0 0.0
        %1298 = vmatprep.subr.mxu0 0.0
        %1299 = vmatpush2.msra.mxu0 0.0
        %1300 = vmatprep.subr.mxu0 0.0
        %1301 = vmatpush2.msra.mxu0 0.0
        %1302 = vmatprep.subr.mxu0 0.0
        %1303 = vmatpush2.msra.mxu0 0.0
        %1304 = vmatprep.subr.mxu0 0.0
        %1305 = vmatpush2.msra.mxu0 0.0
        %1306 = vmatprep.subr.mxu0 0.0
        %1307 = vmatpush2.msra.mxu0 0.0
        %1308 = vmatprep.subr.mxu0 0.0
        %1309 = vmatpush2.msra.mxu0 0.0
        %1310 = vmatprep.subr.mxu0 0.0
        %1311 = vmatpush2.msra.mxu0 0.0
        %1312 = vmatprep.mubr.f32.mxu0 0.0
        %1313 = vmatmul.mubr.f32.gmra.mxu0 %v1246
        %v1314 = vpop.f32.mrf.mxu0
        %v1315 = vadd.f32 %v1242, %v1314
        %v1316 = vpop.f32.mrf.mxu0
        %1317 = vdwg.mxu0
        %v1319 = vsel %vm825, %v506, 0
        %v1322 = vsel %vm825, %v594, 0
        %1324 = vmatprep.subr.mxu0 0.0
        %1325 = vmatpush1.xpose.msra.mxu0 0.0
        %1326 = vmatprep.subr.mxu0 0.0
        %1327 = vmatpush1.xpose.msra.mxu0 0.0
        %1328 = vmatprep.subr.mxu0 0.0
        %1329 = vmatpush1.xpose.msra.mxu0 0.0
        %1330 = vmatprep.subr.mxu0 0.0
        %1331 = vmatpush1.xpose.msra.mxu0 0.0
        %1332 = vmatprep.subr.mxu0 0.0
        %1333 = vmatpush1.xpose.msra.mxu0 0.0
        %1334 = vmatprep.subr.mxu0 0.0
        %1335 = vmatpush1.xpose.msra.mxu0 0.0
        %1336 = vmatprep.subr.mxu0 0.0
        %1337 = vmatpush1.xpose.msra.mxu0 0.0
        %1338 = vmatprep.subr.mxu0 0.0
        %1339 = vmatpush1.xpose.msra.mxu0 0.0
        %1340 = vmatprep.subr.mxu0 0.0
        %1341 = vmatpush1.xpose.msra.mxu0 0.0
        %1342 = vmatprep.subr.mxu0 0.0
        %1343 = vmatpush1.xpose.msra.mxu0 0.0
        %1344 = vmatprep.subr.mxu0 0.0
        %1345 = vmatpush1.xpose.msra.mxu0 0.0
        %1346 = vmatprep.subr.mxu0 0.0
        %1347 = vmatpush1.xpose.msra.mxu0 0.0
        %1348 = vmatprep.subr.mxu0 0.0
        %1349 = vmatpush1.xpose.msra.mxu0 0.0
        %1350 = vmatprep.subr.mxu0 0.0
        %1351 = vmatpush1.xpose.msra.mxu0 0.0
        %1352 = vmatprep.subr.mxu0 0.0
        %1353 = vmatpush1.xpose.msra.mxu0 0.0
        %1354 = vmatprep.subr.mxu0 0.0
        %1355 = vmatpush1.xpose.msra.mxu0 %v1322
        %1356 = vmatprep.subr.mxu0 0.0
        %1357 = vmatpush2.xpose.msra.mxu0 0.0
        %1358 = vmatprep.subr.mxu0 0.0
        %1359 = vmatpush2.xpose.msra.mxu0 0.0
        %1360 = vmatprep.subr.mxu0 0.0
        %1361 = vmatpush2.xpose.msra.mxu0 0.0
        %1362 = vmatprep.subr.mxu0 0.0
        %1363 = vmatpush2.xpose.msra.mxu0 0.0
        %1364 = vmatprep.subr.mxu0 0.0
        %1365 = vmatpush2.xpose.msra.mxu0 0.0
        %1366 = vmatprep.subr.mxu0 0.0
        %1367 = vmatpush2.xpose.msra.mxu0 0.0
        %1368 = vmatprep.subr.mxu0 0.0
        %1369 = vmatpush2.xpose.msra.mxu0 0.0
        %1370 = vmatprep.subr.mxu0 0.0
        %1371 = vmatpush2.xpose.msra.mxu0 0.0
        %1372 = vmatprep.subr.mxu0 0.0
        %1373 = vmatpush2.xpose.msra.mxu0 0.0
        %1374 = vmatprep.subr.mxu0 0.0
        %1375 = vmatpush2.xpose.msra.mxu0 0.0
        %1376 = vmatprep.subr.mxu0 0.0
        %1377 = vmatpush2.xpose.msra.mxu0 0.0
        %1378 = vmatprep.subr.mxu0 0.0
        %1379 = vmatpush2.xpose.msra.mxu0 0.0
        %1380 = vmatprep.subr.mxu0 0.0
        %1381 = vmatpush2.xpose.msra.mxu0 0.0
        %1382 = vmatprep.subr.mxu0 0.0
        %1383 = vmatpush2.xpose.msra.mxu0 0.0
        %1384 = vmatprep.subr.mxu0 0.0
        %1385 = vmatpush2.xpose.msra.mxu0 0.0
        %1386 = vmatprep.subr.mxu0 0.0
        %1387 = vmatpush2.xpose.msra.mxu0 0.0
        %1388 = vmatprep.mubr.f32.mxu0 0.0
        %1389 = vmatmul.mubr.f32.gmra.mxu0 %v1319
        %v1390 = vpop.f32.mrf.mxu0
        %v1391 = vadd.f32 0.0, %v1390
        %v1392 = vpop.f32.mrf.mxu0
        %1393 = vdwg.mxu0
        %v1394 = vsel %vm902, %v1391, -inf
        %1395 = vmax.xlane.f32.xlu0 %v1394
        %v1396 = vpop.xlane.xlu0 %1395
        %v1397 = vsub.f32 %v1391, %v1396
        %v1398 = vmul.f32 %v1397, 1.442695
        %v1399 = vpow.pop %v1398
        %v1400 = vsel %vm902, %v1399, 0.0
        %1401 = vadd.xlane.f32.xlu0 %v1400
        %v1402 = vpop.xlane.xlu0 %1401
        %v1403 = vrcp.pop %v1402
        %v1404 = vmul.f32 %v1399, %v1403
        %s1405 = scalar_lea.vmem %s307, 16 [#allocation4]
        %1406 = vst.msk [vmem:[%s1405] sm:$0xff] %vm902, %v1404
        %v1408 = vsel %vm902, %v1404, 0
        %1410 = vmatprep.subr.mxu0 0.0
        %1411 = vmatpush1.msra.mxu0 0.0
        %1412 = vmatprep.subr.mxu0 0.0
        %1413 = vmatpush1.msra.mxu0 0.0
        %1414 = vmatprep.subr.mxu0 0.0
        %1415 = vmatpush1.msra.mxu0 0.0
        %1416 = vmatprep.subr.mxu0 0.0
        %1417 = vmatpush1.msra.mxu0 0.0
        %1418 = vmatprep.subr.mxu0 0.0
        %1419 = vmatpush1.msra.mxu0 0.0
        %1420 = vmatprep.subr.mxu0 0.0
        %1421 = vmatpush1.msra.mxu0 0.0
        %1422 = vmatprep.subr.mxu0 0.0
        %1423 = vmatpush1.msra.mxu0 0.0
        %1424 = vmatprep.subr.mxu0 0.0
        %1425 = vmatpush1.msra.mxu0 0.0
        %1426 = vmatprep.subr.mxu0 0.0
        %1427 = vmatpush1.msra.mxu0 0.0
        %1428 = vmatprep.subr.mxu0 0.0
        %1429 = vmatpush1.msra.mxu0 0.0
        %1430 = vmatprep.subr.mxu0 0.0
        %1431 = vmatpush1.msra.mxu0 0.0
        %1432 = vmatprep.subr.mxu0 0.0
        %1433 = vmatpush1.msra.mxu0 0.0
        %1434 = vmatprep.subr.mxu0 0.0
        %1435 = vmatpush1.msra.mxu0 0.0
        %1436 = vmatprep.subr.mxu0 0.0
        %1437 = vmatpush1.msra.mxu0 0.0
        %1438 = vmatprep.subr.mxu0 0.0
        %1439 = vmatpush1.msra.mxu0 0.0
        %1440 = vmatprep.subr.mxu0 0.0
        %1441 = vmatpush1.msra.mxu0 %v752
        %1442 = vmatprep.subr.mxu0 0.0
        %1443 = vmatpush2.msra.mxu0 0.0
        %1444 = vmatprep.subr.mxu0 0.0
        %1445 = vmatpush2.msra.mxu0 0.0
        %1446 = vmatprep.subr.mxu0 0.0
        %1447 = vmatpush2.msra.mxu0 0.0
        %1448 = vmatprep.subr.mxu0 0.0
        %1449 = vmatpush2.msra.mxu0 0.0
        %1450 = vmatprep.subr.mxu0 0.0
        %1451 = vmatpush2.msra.mxu0 0.0
        %1452 = vmatprep.subr.mxu0 0.0
        %1453 = vmatpush2.msra.mxu0 0.0
        %1454 = vmatprep.subr.mxu0 0.0
        %1455 = vmatpush2.msra.mxu0 0.0
        %1456 = vmatprep.subr.mxu0 0.0
        %1457 = vmatpush2.msra.mxu0 0.0
        %1458 = vmatprep.subr.mxu0 0.0
        %1459 = vmatpush2.msra.mxu0 0.0
        %1460 = vmatprep.subr.mxu0 0.0
        %1461 = vmatpush2.msra.mxu0 0.0
        %1462 = vmatprep.subr.mxu0 0.0
        %1463 = vmatpush2.msra.mxu0 0.0
        %1464 = vmatprep.subr.mxu0 0.0
        %1465 = vmatpush2.msra.mxu0 0.0
        %1466 = vmatprep.subr.mxu0 0.0
        %1467 = vmatpush2.msra.mxu0 0.0
        %1468 = vmatprep.subr.mxu0 0.0
        %1469 = vmatpush2.msra.mxu0 0.0
        %1470 = vmatprep.subr.mxu0 0.0
        %1471 = vmatpush2.msra.mxu0 0.0
        %1472 = vmatprep.subr.mxu0 0.0
        %1473 = vmatpush2.msra.mxu0 0.0
        %1474 = vmatprep.mubr.f32.mxu0 0.0
        %1475 = vmatmul.mubr.f32.gmra.mxu0 %v1408
        %v1476 = vpop.f32.mrf.mxu0
        %v1477 = vadd.f32 0.0, %v1476
        %v1478 = vpop.f32.mrf.mxu0
        %1479 = vdwg.mxu0
        %v1480 = vld [vmem:[%s6 + $0x80] sm:$0xff]
        %v1481 = vld [vmem:[%s6 + $0x88] sm:$0xff]
        %v1482 = vld [vmem:[%s6 + $0x90] sm:$0xff]
        %v1483 = vld [vmem:[%s6 + $0x98] sm:$0xff]
        %v1484 = vld [vmem:[%s6 + $0xa0] sm:$0xff]
        %v1485 = vld [vmem:[%s6 + $0xa8] sm:$0xff]
        %v1486 = vld [vmem:[%s6 + $0xb0] sm:$0xff]
        %v1487 = vld [vmem:[%s6 + $0xb8] sm:$0xff]
        %v1489 = vsel %vm825, %v1477, 0
        %1491 = vmatprep.subr.mxu0 0.0
        %1492 = vmatpush1.msra.mxu0 0.0
        %1493 = vmatprep.subr.mxu0 0.0
        %1494 = vmatpush1.msra.mxu0 0.0
        %1495 = vmatprep.subr.mxu0 0.0
        %1496 = vmatpush1.msra.mxu0 0.0
        %1497 = vmatprep.subr.mxu0 0.0
        %1498 = vmatpush1.msra.mxu0 0.0
        %1499 = vmatprep.subr.mxu0 0.0
        %1500 = vmatpush1.msra.mxu0 0.0
        %1501 = vmatprep.subr.mxu0 0.0
        %1502 = vmatpush1.msra.mxu0 0.0
        %1503 = vmatprep.subr.mxu0 0.0
        %1504 = vmatpush1.msra.mxu0 0.0
        %1505 = vmatprep.subr.mxu0 0.0
        %1506 = vmatpush1.msra.mxu0 0.0
        %1507 = vmatprep.subr.mxu0 0.0
        %1508 = vmatpush1.msra.mxu0 %v1487
        %1509 = vmatprep.subr.mxu0 0.0
        %1510 = vmatpush1.msra.mxu0 %v1486
        %1511 = vmatprep.subr.mxu0 0.0
        %1512 = vmatpush1.msra.mxu0 %v1485
        %1513 = vmatprep.subr.mxu0 0.0
        %1514 = vmatpush1.msra.mxu0 %v1484
        %1515 = vmatprep.subr.mxu0 0.0
        %1516 = vmatpush1.msra.mxu0 %v1483
        %1517 = vmatprep.subr.mxu0 0.0
        %1518 = vmatpush1.msra.mxu0 %v1482
        %1519 = vmatprep.subr.mxu0 0.0
        %1520 = vmatpush1.msra.mxu0 %v1481
        %1521 = vmatprep.subr.mxu0 0.0
        %1522 = vmatpush1.msra.mxu0 %v1480
        %1523 = vmatprep.subr.mxu0 0.0
        %1524 = vmatpush2.msra.mxu0 0.0
        %1525 = vmatprep.subr.mxu0 0.0
        %1526 = vmatpush2.msra.mxu0 0.0
        %1527 = vmatprep.subr.mxu0 0.0
        %1528 = vmatpush2.msra.mxu0 0.0
        %1529 = vmatprep.subr.mxu0 0.0
        %1530 = vmatpush2.msra.mxu0 0.0
        %1531 = vmatprep.subr.mxu0 0.0
        %1532 = vmatpush2.msra.mxu0 0.0
        %1533 = vmatprep.subr.mxu0 0.0
        %1534 = vmatpush2.msra.mxu0 0.0
        %1535 = vmatprep.subr.mxu0 0.0
        %1536 = vmatpush2.msra.mxu0 0.0
        %1537 = vmatprep.subr.mxu0 0.0
        %1538 = vmatpush2.msra.mxu0 0.0
        %1539 = vmatprep.subr.mxu0 0.0
        %1540 = vmatpush2.msra.mxu0 0.0
        %1541 = vmatprep.subr.mxu0 0.0
        %1542 = vmatpush2.msra.mxu0 0.0
        %1543 = vmatprep.subr.mxu0 0.0
        %1544 = vmatpush2.msra.mxu0 0.0
        %1545 = vmatprep.subr.mxu0 0.0
        %1546 = vmatpush2.msra.mxu0 0.0
        %1547 = vmatprep.subr.mxu0 0.0
        %1548 = vmatpush2.msra.mxu0 0.0
        %1549 = vmatprep.subr.mxu0 0.0
        %1550 = vmatpush2.msra.mxu0 0.0
        %1551 = vmatprep.subr.mxu0 0.0
        %1552 = vmatpush2.msra.mxu0 0.0
        %1553 = vmatprep.subr.mxu0 0.0
        %1554 = vmatpush2.msra.mxu0 0.0
        %1555 = vmatprep.mubr.f32.mxu0 0.0
        %1556 = vmatmul.mubr.f32.gmra.mxu0 %v1489
        %v1557 = vpop.f32.mrf.mxu0
        %v1558 = vadd.f32 0.0, %v1557
        %v1559 = vpop.f32.mrf.mxu0
        %1560 = vdwg.mxu0
        %v1561 = vadd.f32 %v1315, %v1558
        %1562 = vrot.lane.b32.xlu0 %v506, 64
        %v1563 = vpop.permute.xlu0 %1562
        %1564 = vrot.lane.b32.xlu0 %v594, 64
        %v1565 = vpop.permute.xlu0 %1564
        %v1566 = vsel %vm825, %v1563, 0
        %v1568 = vsel %vm825, %v1565, 0
        %1570 = vmatprep.subr.mxu0 0.0
        %1571 = vmatpush1.xpose.msra.mxu0 0.0
        %1572 = vmatprep.subr.mxu0 0.0
        %1573 = vmatpush1.xpose.msra.mxu0 0.0
        %1574 = vmatprep.subr.mxu0 0.0
        %1575 = vmatpush1.xpose.msra.mxu0 0.0
        %1576 = vmatprep.subr.mxu0 0.0
        %1577 = vmatpush1.xpose.msra.mxu0 0.0
        %1578 = vmatprep.subr.mxu0 0.0
        %1579 = vmatpush1.xpose.msra.mxu0 0.0
        %1580 = vmatprep.subr.mxu0 0.0
        %1581 = vmatpush1.xpose.msra.mxu0 0.0
        %1582 = vmatprep.subr.mxu0 0.0
        %1583 = vmatpush1.xpose.msra.mxu0 0.0
        %1584 = vmatprep.subr.mxu0 0.0
        %1585 = vmatpush1.xpose.msra.mxu0 0.0
        %1586 = vmatprep.subr.mxu0 0.0
        %1587 = vmatpush1.xpose.msra.mxu0 0.0
        %1588 = vmatprep.subr.mxu0 0.0
        %1589 = vmatpush1.xpose.msra.mxu0 0.0
        %1590 = vmatprep.subr.mxu0 0.0
        %1591 = vmatpush1.xpose.msra.mxu0 0.0
        %1592 = vmatprep.subr.mxu0 0.0
        %1593 = vmatpush1.xpose.msra.mxu0 0.0
        %1594 = vmatprep.subr.mxu0 0.0
        %1595 = vmatpush1.xpose.msra.mxu0 0.0
        %1596 = vmatprep.subr.mxu0 0.0
        %1597 = vmatpush1.xpose.msra.mxu0 0.0
        %1598 = vmatprep.subr.mxu0 0.0
        %1599 = vmatpush1.xpose.msra.mxu0 0.0
        %1600 = vmatprep.subr.mxu0 0.0
        %1601 = vmatpush1.xpose.msra.mxu0 %v1568
        %1602 = vmatprep.subr.mxu0 0.0
        %1603 = vmatpush2.xpose.msra.mxu0 0.0
        %1604 = vmatprep.subr.mxu0 0.0
        %1605 = vmatpush2.xpose.msra.mxu0 0.0
        %1606 = vmatprep.subr.mxu0 0.0
        %1607 = vmatpush2.xpose.msra.mxu0 0.0
        %1608 = vmatprep.subr.mxu0 0.0
        %1609 = vmatpush2.xpose.msra.mxu0 0.0
        %1610 = vmatprep.subr.mxu0 0.0
        %1611 = vmatpush2.xpose.msra.mxu0 0.0
        %1612 = vmatprep.subr.mxu0 0.0
        %1613 = vmatpush2.xpose.msra.mxu0 0.0
        %1614 = vmatprep.subr.mxu0 0.0
        %1615 = vmatpush2.xpose.msra.mxu0 0.0
        %1616 = vmatprep.subr.mxu0 0.0
        %1617 = vmatpush2.xpose.msra.mxu0 0.0
        %1618 = vmatprep.subr.mxu0 0.0
        %1619 = vmatpush2.xpose.msra.mxu0 0.0
        %1620 = vmatprep.subr.mxu0 0.0
        %1621 = vmatpush2.xpose.msra.mxu0 0.0
        %1622 = vmatprep.subr.mxu0 0.0
        %1623 = vmatpush2.xpose.msra.mxu0 0.0
        %1624 = vmatprep.subr.mxu0 0.0
        %1625 = vmatpush2.xpose.msra.mxu0 0.0
        %1626 = vmatprep.subr.mxu0 0.0
        %1627 = vmatpush2.xpose.msra.mxu0 0.0
        %1628 = vmatprep.subr.mxu0 0.0
        %1629 = vmatpush2.xpose.msra.mxu0 0.0
        %1630 = vmatprep.subr.mxu0 0.0
        %1631 = vmatpush2.xpose.msra.mxu0 0.0
        %1632 = vmatprep.subr.mxu0 0.0
        %1633 = vmatpush2.xpose.msra.mxu0 0.0
        %1634 = vmatprep.mubr.f32.mxu0 0.0
        %1635 = vmatmul.mubr.f32.gmra.mxu0 %v1566
        %v1636 = vpop.f32.mrf.mxu0
        %v1637 = vadd.f32 0.0, %v1636
        %v1638 = vpop.f32.mrf.mxu0
        %1639 = vdwg.mxu0
        %v1640 = vsel %vm902, %v1637, -inf
        %1641 = vmax.xlane.f32.xlu0 %v1640
        %v1642 = vpop.xlane.xlu0 %1641
        %v1643 = vsub.f32 %v1637, %v1642
        %v1644 = vmul.f32 %v1643, 1.442695
        %v1645 = vpow.pop %v1644
        %v1646 = vsel %vm902, %v1645, 0.0
        %1647 = vadd.xlane.f32.xlu0 %v1646
        %v1648 = vpop.xlane.xlu0 %1647
        %v1649 = vrcp.pop %v1648
        %v1650 = vmul.f32 %v1645, %v1649
        %s1651 = scalar_lea.vmem %s307, 24 [#allocation4]
        %1652 = vst.msk [vmem:[%s1651] sm:$0xff] %vm902, %v1650
        %1654 = vrot.lane.b32.xlu0 %v752, 64
        %v1655 = vpop.permute.xlu0 %1654
        %v1658 = vsel %vm902, %v1650, 0
        %1660 = vmatprep.subr.mxu0 0.0
        %1661 = vmatpush1.msra.mxu0 0.0
        %1662 = vmatprep.subr.mxu0 0.0
        %1663 = vmatpush1.msra.mxu0 0.0
        %1664 = vmatprep.subr.mxu0 0.0
        %1665 = vmatpush1.msra.mxu0 0.0
        %1666 = vmatprep.subr.mxu0 0.0
        %1667 = vmatpush1.msra.mxu0 0.0
        %1668 = vmatprep.subr.mxu0 0.0
        %1669 = vmatpush1.msra.mxu0 0.0
        %1670 = vmatprep.subr.mxu0 0.0
        %1671 = vmatpush1.msra.mxu0 0.0
        %1672 = vmatprep.subr.mxu0 0.0
        %1673 = vmatpush1.msra.mxu0 0.0
        %1674 = vmatprep.subr.mxu0 0.0
        %1675 = vmatpush1.msra.mxu0 0.0
        %1676 = vmatprep.subr.mxu0 0.0
        %1677 = vmatpush1.msra.mxu0 0.0
        %1678 = vmatprep.subr.mxu0 0.0
        %1679 = vmatpush1.msra.mxu0 0.0
        %1680 = vmatprep.subr.mxu0 0.0
        %1681 = vmatpush1.msra.mxu0 0.0
        %1682 = vmatprep.subr.mxu0 0.0
        %1683 = vmatpush1.msra.mxu0 0.0
        %1684 = vmatprep.subr.mxu0 0.0
        %1685 = vmatpush1.msra.mxu0 0.0
        %1686 = vmatprep.subr.mxu0 0.0
        %1687 = vmatpush1.msra.mxu0 0.0
        %1688 = vmatprep.subr.mxu0 0.0
        %1689 = vmatpush1.msra.mxu0 0.0
        %1690 = vmatprep.subr.mxu0 0.0
        %1691 = vmatpush1.msra.mxu0 %v1655
        %1692 = vmatprep.subr.mxu0 0.0
        %1693 = vmatpush2.msra.mxu0 0.0
        %1694 = vmatprep.subr.mxu0 0.0
        %1695 = vmatpush2.msra.mxu0 0.0
        %1696 = vmatprep.subr.mxu0 0.0
        %1697 = vmatpush2.msra.mxu0 0.0
        %1698 = vmatprep.subr.mxu0 0.0
        %1699 = vmatpush2.msra.mxu0 0.0
        %1700 = vmatprep.subr.mxu0 0.0
        %1701 = vmatpush2.msra.mxu0 0.0
        %1702 = vmatprep.subr.mxu0 0.0
        %1703 = vmatpush2.msra.mxu0 0.0
        %1704 = vmatprep.subr.mxu0 0.0
        %1705 = vmatpush2.msra.mxu0 0.0
        %1706 = vmatprep.subr.mxu0 0.0
        %1707 = vmatpush2.msra.mxu0 0.0
        %1708 = vmatprep.subr.mxu0 0.0
        %1709 = vmatpush2.msra.mxu0 0.0
        %1710 = vmatprep.subr.mxu0 0.0
        %1711 = vmatpush2.msra.mxu0 0.0
        %1712 = vmatprep.subr.mxu0 0.0
        %1713 = vmatpush2.msra.mxu0 0.0
        %1714 = vmatprep.subr.mxu0 0.0
        %1715 = vmatpush2.msra.mxu0 0.0
        %1716 = vmatprep.subr.mxu0 0.0
        %1717 = vmatpush2.msra.mxu0 0.0
        %1718 = vmatprep.subr.mxu0 0.0
        %1719 = vmatpush2.msra.mxu0 0.0
        %1720 = vmatprep.subr.mxu0 0.0
        %1721 = vmatpush2.msra.mxu0 0.0
        %1722 = vmatprep.subr.mxu0 0.0
        %1723 = vmatpush2.msra.mxu0 0.0
        %1724 = vmatprep.mubr.f32.mxu0 0.0
        %1725 = vmatmul.mubr.f32.gmra.mxu0 %v1658
        %v1726 = vpop.f32.mrf.mxu0
        %v1727 = vadd.f32 0.0, %v1726
        %v1728 = vpop.f32.mrf.mxu0
        %1729 = vdwg.mxu0
        %v1730 = vld [vmem:[%s6 + $0xc0] sm:$0xff]
        %v1731 = vld [vmem:[%s6 + $0xc8] sm:$0xff]
        %v1732 = vld [vmem:[%s6 + $0xd0] sm:$0xff]
        %v1733 = vld [vmem:[%s6 + $0xd8] sm:$0xff]
        %v1734 = vld [vmem:[%s6 + $0xe0] sm:$0xff]
        %v1735 = vld [vmem:[%s6 + $0xe8] sm:$0xff]
        %v1736 = vld [vmem:[%s6 + $0xf0] sm:$0xff]
        %v1737 = vld [vmem:[%s6 + $0xf8] sm:$0xff]
        %v1739 = vsel %vm825, %v1727, 0
        %1741 = vmatprep.subr.mxu0 0.0
        %1742 = vmatpush1.msra.mxu0 0.0
        %1743 = vmatprep.subr.mxu0 0.0
        %1744 = vmatpush1.msra.mxu0 0.0
        %1745 = vmatprep.subr.mxu0 0.0
        %1746 = vmatpush1.msra.mxu0 0.0
        %1747 = vmatprep.subr.mxu0 0.0
        %1748 = vmatpush1.msra.mxu0 0.0
        %1749 = vmatprep.subr.mxu0 0.0
        %1750 = vmatpush1.msra.mxu0 0.0
        %1751 = vmatprep.subr.mxu0 0.0
        %1752 = vmatpush1.msra.mxu0 0.0
        %1753 = vmatprep.subr.mxu0 0.0
        %1754 = vmatpush1.msra.mxu0 0.0
        %1755 = vmatprep.subr.mxu0 0.0
        %1756 = vmatpush1.msra.mxu0 0.0
        %1757 = vmatprep.subr.mxu0 0.0
        %1758 = vmatpush1.msra.mxu0 %v1737
        %1759 = vmatprep.subr.mxu0 0.0
        %1760 = vmatpush1.msra.mxu0 %v1736
        %1761 = vmatprep.subr.mxu0 0.0
        %1762 = vmatpush1.msra.mxu0 %v1735
        %1763 = vmatprep.subr.mxu0 0.0
        %1764 = vmatpush1.msra.mxu0 %v1734
        %1765 = vmatprep.subr.mxu0 0.0
        %1766 = vmatpush1.msra.mxu0 %v1733
        %1767 = vmatprep.subr.mxu0 0.0
        %1768 = vmatpush1.msra.mxu0 %v1732
        %1769 = vmatprep.subr.mxu0 0.0
        %1770 = vmatpush1.msra.mxu0 %v1731
        %1771 = vmatprep.subr.mxu0 0.0
        %1772 = vmatpush1.msra.mxu0 %v1730
        %1773 = vmatprep.subr.mxu0 0.0
        %1774 = vmatpush2.msra.mxu0 0.0
        %1775 = vmatprep.subr.mxu0 0.0
        %1776 = vmatpush2.msra.mxu0 0.0
        %1777 = vmatprep.subr.mxu0 0.0
        %1778 = vmatpush2.msra.mxu0 0.0
        %1779 = vmatprep.subr.mxu0 0.0
        %1780 = vmatpush2.msra.mxu0 0.0
        %1781 = vmatprep.subr.mxu0 0.0
        %1782 = vmatpush2.msra.mxu0 0.0
        %1783 = vmatprep.subr.mxu0 0.0
        %1784 = vmatpush2.msra.mxu0 0.0
        %1785 = vmatprep.subr.mxu0 0.0
        %1786 = vmatpush2.msra.mxu0 0.0
        %1787 = vmatprep.subr.mxu0 0.0
        %1788 = vmatpush2.msra.mxu0 0.0
        %1789 = vmatprep.subr.mxu0 0.0
        %1790 = vmatpush2.msra.mxu0 0.0
        %1791 = vmatprep.subr.mxu0 0.0
        %1792 = vmatpush2.msra.mxu0 0.0
        %1793 = vmatprep.subr.mxu0 0.0
        %1794 = vmatpush2.msra.mxu0 0.0
        %1795 = vmatprep.subr.mxu0 0.0
        %1796 = vmatpush2.msra.mxu0 0.0
        %1797 = vmatprep.subr.mxu0 0.0
        %1798 = vmatpush2.msra.mxu0 0.0
        %1799 = vmatprep.subr.mxu0 0.0
        %1800 = vmatpush2.msra.mxu0 0.0
        %1801 = vmatprep.subr.mxu0 0.0
        %1802 = vmatpush2.msra.mxu0 0.0
        %1803 = vmatprep.subr.mxu0 0.0
        %1804 = vmatpush2.msra.mxu0 0.0
        %1805 = vmatprep.mubr.f32.mxu0 0.0
        %1806 = vmatmul.mubr.f32.gmra.mxu0 %v1739
        %v1807 = vpop.f32.mrf.mxu0
        %v1808 = vadd.f32 0.0, %v1807
        %v1809 = vpop.f32.mrf.mxu0
        %1810 = vdwg.mxu0
        %v1811 = vadd.f32 %v1561, %v1808
        %v1813 = vsel %vm825, %v507, 0
        %v1816 = vsel %vm825, %v663, 0
        %1818 = vmatprep.subr.mxu0 0.0
        %1819 = vmatpush1.xpose.msra.mxu0 0.0
        %1820 = vmatprep.subr.mxu0 0.0
        %1821 = vmatpush1.xpose.msra.mxu0 0.0
        %1822 = vmatprep.subr.mxu0 0.0
        %1823 = vmatpush1.xpose.msra.mxu0 0.0
        %1824 = vmatprep.subr.mxu0 0.0
        %1825 = vmatpush1.xpose.msra.mxu0 0.0
        %1826 = vmatprep.subr.mxu0 0.0
        %1827 = vmatpush1.xpose.msra.mxu0 0.0
        %1828 = vmatprep.subr.mxu0 0.0
        %1829 = vmatpush1.xpose.msra.mxu0 0.0
        %1830 = vmatprep.subr.mxu0 0.0
        %1831 = vmatpush1.xpose.msra.mxu0 0.0
        %1832 = vmatprep.subr.mxu0 0.0
        %1833 = vmatpush1.xpose.msra.mxu0 0.0
        %1834 = vmatprep.subr.mxu0 0.0
        %1835 = vmatpush1.xpose.msra.mxu0 0.0
        %1836 = vmatprep.subr.mxu0 0.0
        %1837 = vmatpush1.xpose.msra.mxu0 0.0
        %1838 = vmatprep.subr.mxu0 0.0
        %1839 = vmatpush1.xpose.msra.mxu0 0.0
        %1840 = vmatprep.subr.mxu0 0.0
        %1841 = vmatpush1.xpose.msra.mxu0 0.0
        %1842 = vmatprep.subr.mxu0 0.0
        %1843 = vmatpush1.xpose.msra.mxu0 0.0
        %1844 = vmatprep.subr.mxu0 0.0
        %1845 = vmatpush1.xpose.msra.mxu0 0.0
        %1846 = vmatprep.subr.mxu0 0.0
        %1847 = vmatpush1.xpose.msra.mxu0 0.0
        %1848 = vmatprep.subr.mxu0 0.0
        %1849 = vmatpush1.xpose.msra.mxu0 %v1816
        %1850 = vmatprep.subr.mxu0 0.0
        %1851 = vmatpush2.xpose.msra.mxu0 0.0
        %1852 = vmatprep.subr.mxu0 0.0
        %1853 = vmatpush2.xpose.msra.mxu0 0.0
        %1854 = vmatprep.subr.mxu0 0.0
        %1855 = vmatpush2.xpose.msra.mxu0 0.0
        %1856 = vmatprep.subr.mxu0 0.0
        %1857 = vmatpush2.xpose.msra.mxu0 0.0
        %1858 = vmatprep.subr.mxu0 0.0
        %1859 = vmatpush2.xpose.msra.mxu0 0.0
        %1860 = vmatprep.subr.mxu0 0.0
        %1861 = vmatpush2.xpose.msra.mxu0 0.0
        %1862 = vmatprep.subr.mxu0 0.0
        %1863 = vmatpush2.xpose.msra.mxu0 0.0
        %1864 = vmatprep.subr.mxu0 0.0
        %1865 = vmatpush2.xpose.msra.mxu0 0.0
        %1866 = vmatprep.subr.mxu0 0.0
        %1867 = vmatpush2.xpose.msra.mxu0 0.0
        %1868 = vmatprep.subr.mxu0 0.0
        %1869 = vmatpush2.xpose.msra.mxu0 0.0
        %1870 = vmatprep.subr.mxu0 0.0
        %1871 = vmatpush2.xpose.msra.mxu0 0.0
        %1872 = vmatprep.subr.mxu0 0.0
        %1873 = vmatpush2.xpose.msra.mxu0 0.0
        %1874 = vmatprep.subr.mxu0 0.0
        %1875 = vmatpush2.xpose.msra.mxu0 0.0
        %1876 = vmatprep.subr.mxu0 0.0
        %1877 = vmatpush2.xpose.msra.mxu0 0.0
        %1878 = vmatprep.subr.mxu0 0.0
        %1879 = vmatpush2.xpose.msra.mxu0 0.0
        %1880 = vmatprep.subr.mxu0 0.0
        %1881 = vmatpush2.xpose.msra.mxu0 0.0
        %1882 = vmatprep.mubr.f32.mxu0 0.0
        %1883 = vmatmul.mubr.f32.gmra.mxu0 %v1813
        %v1884 = vpop.f32.mrf.mxu0
        %v1885 = vadd.f32 0.0, %v1884
        %v1886 = vpop.f32.mrf.mxu0
        %1887 = vdwg.mxu0
        %v1888 = vsel %vm902, %v1885, -inf
        %1889 = vmax.xlane.f32.xlu0 %v1888
        %v1890 = vpop.xlane.xlu0 %1889
        %v1891 = vsub.f32 %v1885, %v1890
        %v1892 = vmul.f32 %v1891, 1.442695
        %v1893 = vpow.pop %v1892
        %v1894 = vsel %vm902, %v1893, 0.0
        %1895 = vadd.xlane.f32.xlu0 %v1894
        %v1896 = vpop.xlane.xlu0 %1895
        %v1897 = vrcp.pop %v1896
        %v1898 = vmul.f32 %v1893, %v1897
        %s1899 = scalar_lea.vmem %s307, 32 [#allocation4]
        %1900 = vst.msk [vmem:[%s1899] sm:$0xff] %vm902, %v1898
        %v1902 = vsel %vm902, %v1898, 0
        %1904 = vmatprep.subr.mxu0 0.0
        %1905 = vmatpush1.msra.mxu0 0.0
        %1906 = vmatprep.subr.mxu0 0.0
        %1907 = vmatpush1.msra.mxu0 0.0
        %1908 = vmatprep.subr.mxu0 0.0
        %1909 = vmatpush1.msra.mxu0 0.0
        %1910 = vmatprep.subr.mxu0 0.0
        %1911 = vmatpush1.msra.mxu0 0.0
        %1912 = vmatprep.subr.mxu0 0.0
        %1913 = vmatpush1.msra.mxu0 0.0
        %1914 = vmatprep.subr.mxu0 0.0
        %1915 = vmatpush1.msra.mxu0 0.0
        %1916 = vmatprep.subr.mxu0 0.0
        %1917 = vmatpush1.msra.mxu0 0.0
        %1918 = vmatprep.subr.mxu0 0.0
        %1919 = vmatpush1.msra.mxu0 0.0
        %1920 = vmatprep.subr.mxu0 0.0
        %1921 = vmatpush1.msra.mxu0 0.0
        %1922 = vmatprep.subr.mxu0 0.0
        %1923 = vmatpush1.msra.mxu0 0.0
        %1924 = vmatprep.subr.mxu0 0.0
        %1925 = vmatpush1.msra.mxu0 0.0
        %1926 = vmatprep.subr.mxu0 0.0
        %1927 = vmatpush1.msra.mxu0 0.0
        %1928 = vmatprep.subr.mxu0 0.0
        %1929 = vmatpush1.msra.mxu0 0.0
        %1930 = vmatprep.subr.mxu0 0.0
        %1931 = vmatpush1.msra.mxu0 0.0
        %1932 = vmatprep.subr.mxu0 0.0
        %1933 = vmatpush1.msra.mxu0 0.0
        %1934 = vmatprep.subr.mxu0 0.0
        %1935 = vmatpush1.msra.mxu0 %v821
        %1936 = vmatprep.subr.mxu0 0.0
        %1937 = vmatpush2.msra.mxu0 0.0
        %1938 = vmatprep.subr.mxu0 0.0
        %1939 = vmatpush2.msra.mxu0 0.0
        %1940 = vmatprep.subr.mxu0 0.0
        %1941 = vmatpush2.msra.mxu0 0.0
        %1942 = vmatprep.subr.mxu0 0.0
        %1943 = vmatpush2.msra.mxu0 0.0
        %1944 = vmatprep.subr.mxu0 0.0
        %1945 = vmatpush2.msra.mxu0 0.0
        %1946 = vmatprep.subr.mxu0 0.0
        %1947 = vmatpush2.msra.mxu0 0.0
        %1948 = vmatprep.subr.mxu0 0.0
        %1949 = vmatpush2.msra.mxu0 0.0
        %1950 = vmatprep.subr.mxu0 0.0
        %1951 = vmatpush2.msra.mxu0 0.0
        %1952 = vmatprep.subr.mxu0 0.0
        %1953 = vmatpush2.msra.mxu0 0.0
        %1954 = vmatprep.subr.mxu0 0.0
        %1955 = vmatpush2.msra.mxu0 0.0
        %1956 = vmatprep.subr.mxu0 0.0
        %1957 = vmatpush2.msra.mxu0 0.0
        %1958 = vmatprep.subr.mxu0 0.0
        %1959 = vmatpush2.msra.mxu0 0.0
        %1960 = vmatprep.subr.mxu0 0.0
        %1961 = vmatpush2.msra.mxu0 0.0
        %1962 = vmatprep.subr.mxu0 0.0
        %1963 = vmatpush2.msra.mxu0 0.0
        %1964 = vmatprep.subr.mxu0 0.0
        %1965 = vmatpush2.msra.mxu0 0.0
        %1966 = vmatprep.subr.mxu0 0.0
        %1967 = vmatpush2.msra.mxu0 0.0
        %1968 = vmatprep.mubr.f32.mxu0 0.0
        %1969 = vmatmul.mubr.f32.gmra.mxu0 %v1902
        %v1970 = vpop.f32.mrf.mxu0
        %v1971 = vadd.f32 0.0, %v1970
        %v1972 = vpop.f32.mrf.mxu0
        %1973 = vdwg.mxu0
        %v1974 = vld [vmem:[%s6 + $0x100] sm:$0xff]
        %v1975 = vld [vmem:[%s6 + $0x108] sm:$0xff]
        %v1976 = vld [vmem:[%s6 + $0x110] sm:$0xff]
        %v1977 = vld [vmem:[%s6 + $0x118] sm:$0xff]
        %v1978 = vld [vmem:[%s6 + $0x120] sm:$0xff]
        %v1979 = vld [vmem:[%s6 + $0x128] sm:$0xff]
        %v1980 = vld [vmem:[%s6 + $0x130] sm:$0xff]
        %v1981 = vld [vmem:[%s6 + $0x138] sm:$0xff]
        %v1983 = vsel %vm825, %v1971, 0
        %1985 = vmatprep.subr.mxu0 0.0
        %1986 = vmatpush1.msra.mxu0 0.0
        %1987 = vmatprep.subr.mxu0 0.0
        %1988 = vmatpush1.msra.mxu0 0.0
        %1989 = vmatprep.subr.mxu0 0.0
        %1990 = vmatpush1.msra.mxu0 0.0
        %1991 = vmatprep.subr.mxu0 0.0
        %1992 = vmatpush1.msra.mxu0 0.0
        %1993 = vmatprep.subr.mxu0 0.0
        %1994 = vmatpush1.msra.mxu0 0.0
        %1995 = vmatprep.subr.mxu0 0.0
        %1996 = vmatpush1.msra.mxu0 0.0
        %1997 = vmatprep.subr.mxu0 0.0
        %1998 = vmatpush1.msra.mxu0 0.0
        %1999 = vmatprep.subr.mxu0 0.0
        %2000 = vmatpush1.msra.mxu0 0.0
        %2001 = vmatprep.subr.mxu0 0.0
        %2002 = vmatpush1.msra.mxu0 %v1981
        %2003 = vmatprep.subr.mxu0 0.0
        %2004 = vmatpush1.msra.mxu0 %v1980
        %2005 = vmatprep.subr.mxu0 0.0
        %2006 = vmatpush1.msra.mxu0 %v1979
        %2007 = vmatprep.subr.mxu0 0.0
        %2008 = vmatpush1.msra.mxu0 %v1978
        %2009 = vmatprep.subr.mxu0 0.0
        %2010 = vmatpush1.msra.mxu0 %v1977
        %2011 = vmatprep.subr.mxu0 0.0
        %2012 = vmatpush1.msra.mxu0 %v1976
        %2013 = vmatprep.subr.mxu0 0.0
        %2014 = vmatpush1.msra.mxu0 %v1975
        %2015 = vmatprep.subr.mxu0 0.0
        %2016 = vmatpush1.msra.mxu0 %v1974
        %2017 = vmatprep.subr.mxu0 0.0
        %2018 = vmatpush2.msra.mxu0 0.0
        %2019 = vmatprep.subr.mxu0 0.0
        %2020 = vmatpush2.msra.mxu0 0.0
        %2021 = vmatprep.subr.mxu0 0.0
        %2022 = vmatpush2.msra.mxu0 0.0
        %2023 = vmatprep.subr.mxu0 0.0
        %2024 = vmatpush2.msra.mxu0 0.0
        %2025 = vmatprep.subr.mxu0 0.0
        %2026 = vmatpush2.msra.mxu0 0.0
        %2027 = vmatprep.subr.mxu0 0.0
        %2028 = vmatpush2.msra.mxu0 0.0
        %2029 = vmatprep.subr.mxu0 0.0
        %2030 = vmatpush2.msra.mxu0 0.0
        %2031 = vmatprep.subr.mxu0 0.0
        %2032 = vmatpush2.msra.mxu0 0.0
        %2033 = vmatprep.subr.mxu0 0.0
        %2034 = vmatpush2.msra.mxu0 0.0
        %2035 = vmatprep.subr.mxu0 0.0
        %2036 = vmatpush2.msra.mxu0 0.0
        %2037 = vmatprep.subr.mxu0 0.0
        %2038 = vmatpush2.msra.mxu0 0.0
        %2039 = vmatprep.subr.mxu0 0.0
        %2040 = vmatpush2.msra.mxu0 0.0
        %2041 = vmatprep.subr.mxu0 0.0
        %2042 = vmatpush2.msra.mxu0 0.0
        %2043 = vmatprep.subr.mxu0 0.0
        %2044 = vmatpush2.msra.mxu0 0.0
        %2045 = vmatprep.subr.mxu0 0.0
        %2046 = vmatpush2.msra.mxu0 0.0
        %2047 = vmatprep.subr.mxu0 0.0
        %2048 = vmatpush2.msra.mxu0 0.0
        %2049 = vmatprep.mubr.f32.mxu0 0.0
        %2050 = vmatmul.mubr.f32.gmra.mxu0 %v1983
        %v2051 = vpop.f32.mrf.mxu0
        %v2052 = vadd.f32 0.0, %v2051
        %v2053 = vpop.f32.mrf.mxu0
        %2054 = vdwg.mxu0
        %v2055 = vadd.f32 %v1811, %v2052
        %2056 = vrot.lane.b32.xlu0 %v507, 64
        %v2057 = vpop.permute.xlu0 %2056
        %2058 = vrot.lane.b32.xlu0 %v663, 64
        %v2059 = vpop.permute.xlu0 %2058
        %v2060 = vsel %vm825, %v2057, 0
        %v2062 = vsel %vm825, %v2059, 0
        %2064 = vmatprep.subr.mxu0 0.0
        %2065 = vmatpush1.xpose.msra.mxu0 0.0
        %2066 = vmatprep.subr.mxu0 0.0
        %2067 = vmatpush1.xpose.msra.mxu0 0.0
        %2068 = vmatprep.subr.mxu0 0.0
        %2069 = vmatpush1.xpose.msra.mxu0 0.0
        %2070 = vmatprep.subr.mxu0 0.0
        %2071 = vmatpush1.xpose.msra.mxu0 0.0
        %2072 = vmatprep.subr.mxu0 0.0
        %2073 = vmatpush1.xpose.msra.mxu0 0.0
        %2074 = vmatprep.subr.mxu0 0.0
        %2075 = vmatpush1.xpose.msra.mxu0 0.0
        %2076 = vmatprep.subr.mxu0 0.0
        %2077 = vmatpush1.xpose.msra.mxu0 0.0
        %2078 = vmatprep.subr.mxu0 0.0
        %2079 = vmatpush1.xpose.msra.mxu0 0.0
        %2080 = vmatprep.subr.mxu0 0.0
        %2081 = vmatpush1.xpose.msra.mxu0 0.0
        %2082 = vmatprep.subr.mxu0 0.0
        %2083 = vmatpush1.xpose.msra.mxu0 0.0
        %2084 = vmatprep.subr.mxu0 0.0
        %2085 = vmatpush1.xpose.msra.mxu0 0.0
        %2086 = vmatprep.subr.mxu0 0.0
        %2087 = vmatpush1.xpose.msra.mxu0 0.0
        %2088 = vmatprep.subr.mxu0 0.0
        %2089 = vmatpush1.xpose.msra.mxu0 0.0
        %2090 = vmatprep.subr.mxu0 0.0
        %2091 = vmatpush1.xpose.msra.mxu0 0.0
        %2092 = vmatprep.subr.mxu0 0.0
        %2093 = vmatpush1.xpose.msra.mxu0 0.0
        %2094 = vmatprep.subr.mxu0 0.0
        %2095 = vmatpush1.xpose.msra.mxu0 %v2062
        %2096 = vmatprep.subr.mxu0 0.0
        %2097 = vmatpush2.xpose.msra.mxu0 0.0
        %2098 = vmatprep.subr.mxu0 0.0
        %2099 = vmatpush2.xpose.msra.mxu0 0.0
        %2100 = vmatprep.subr.mxu0 0.0
        %2101 = vmatpush2.xpose.msra.mxu0 0.0
        %2102 = vmatprep.subr.mxu0 0.0
        %2103 = vmatpush2.xpose.msra.mxu0 0.0
        %2104 = vmatprep.subr.mxu0 0.0
        %2105 = vmatpush2.xpose.msra.mxu0 0.0
        %2106 = vmatprep.subr.mxu0 0.0
        %2107 = vmatpush2.xpose.msra.mxu0 0.0
        %2108 = vmatprep.subr.mxu0 0.0
        %2109 = vmatpush2.xpose.msra.mxu0 0.0
        %2110 = vmatprep.subr.mxu0 0.0
        %2111 = vmatpush2.xpose.msra.mxu0 0.0
        %2112 = vmatprep.subr.mxu0 0.0
        %2113 = vmatpush2.xpose.msra.mxu0 0.0
        %2114 = vmatprep.subr.mxu0 0.0
        %2115 = vmatpush2.xpose.msra.mxu0 0.0
        %2116 = vmatprep.subr.mxu0 0.0
        %2117 = vmatpush2.xpose.msra.mxu0 0.0
        %2118 = vmatprep.subr.mxu0 0.0
        %2119 = vmatpush2.xpose.msra.mxu0 0.0
        %2120 = vmatprep.subr.mxu0 0.0
        %2121 = vmatpush2.xpose.msra.mxu0 0.0
        %2122 = vmatprep.subr.mxu0 0.0
        %2123 = vmatpush2.xpose.msra.mxu0 0.0
        %2124 = vmatprep.subr.mxu0 0.0
        %2125 = vmatpush2.xpose.msra.mxu0 0.0
        %2126 = vmatprep.subr.mxu0 0.0
        %2127 = vmatpush2.xpose.msra.mxu0 0.0
        %2128 = vmatprep.mubr.f32.mxu0 0.0
        %2129 = vmatmul.mubr.f32.gmra.mxu0 %v2060
        %v2130 = vpop.f32.mrf.mxu0
        %v2131 = vadd.f32 0.0, %v2130
        %v2132 = vpop.f32.mrf.mxu0
        %2133 = vdwg.mxu0
        %v2134 = vsel %vm902, %v2131, -inf
        %2135 = vmax.xlane.f32.xlu0 %v2134
        %v2136 = vpop.xlane.xlu0 %2135
        %v2137 = vsub.f32 %v2131, %v2136
        %v2138 = vmul.f32 %v2137, 1.442695
        %v2139 = vpow.pop %v2138
        %v2140 = vsel %vm902, %v2139, 0.0
        %2141 = vadd.xlane.f32.xlu0 %v2140
        %v2142 = vpop.xlane.xlu0 %2141
        %v2143 = vrcp.pop %v2142
        %v2144 = vmul.f32 %v2139, %v2143
        %s2145 = scalar_lea.vmem %s307, 40 [#allocation4]
        %2146 = vst.msk [vmem:[%s2145] sm:$0xff] %vm902, %v2144
        %2148 = vrot.lane.b32.xlu0 %v821, 64
        %v2149 = vpop.permute.xlu0 %2148
        %v2152 = vsel %vm902, %v2144, 0
        %2154 = vmatprep.subr.mxu0 0.0
        %2155 = vmatpush1.msra.mxu0 0.0
        %2156 = vmatprep.subr.mxu0 0.0
        %2157 = vmatpush1.msra.mxu0 0.0
        %2158 = vmatprep.subr.mxu0 0.0
        %2159 = vmatpush1.msra.mxu0 0.0
        %2160 = vmatprep.subr.mxu0 0.0
        %2161 = vmatpush1.msra.mxu0 0.0
        %2162 = vmatprep.subr.mxu0 0.0
        %2163 = vmatpush1.msra.mxu0 0.0
        %2164 = vmatprep.subr.mxu0 0.0
        %2165 = vmatpush1.msra.mxu0 0.0
        %2166 = vmatprep.subr.mxu0 0.0
        %2167 = vmatpush1.msra.mxu0 0.0
        %2168 = vmatprep.subr.mxu0 0.0
        %2169 = vmatpush1.msra.mxu0 0.0
        %2170 = vmatprep.subr.mxu0 0.0
        %2171 = vmatpush1.msra.mxu0 0.0
        %2172 = vmatprep.subr.mxu0 0.0
        %2173 = vmatpush1.msra.mxu0 0.0
        %2174 = vmatprep.subr.mxu0 0.0
        %2175 = vmatpush1.msra.mxu0 0.0
        %2176 = vmatprep.subr.mxu0 0.0
        %2177 = vmatpush1.msra.mxu0 0.0
        %2178 = vmatprep.subr.mxu0 0.0
        %2179 = vmatpush1.msra.mxu0 0.0
        %2180 = vmatprep.subr.mxu0 0.0
        %2181 = vmatpush1.msra.mxu0 0.0
        %2182 = vmatprep.subr.mxu0 0.0
        %2183 = vmatpush1.msra.mxu0 0.0
        %2184 = vmatprep.subr.mxu0 0.0
        %2185 = vmatpush1.msra.mxu0 %v2149
        %2186 = vmatprep.subr.mxu0 0.0
        %2187 = vmatpush2.msra.mxu0 0.0
        %2188 = vmatprep.subr.mxu0 0.0
        %2189 = vmatpush2.msra.mxu0 0.0
        %2190 = vmatprep.subr.mxu0 0.0
        %2191 = vmatpush2.msra.mxu0 0.0
        %2192 = vmatprep.subr.mxu0 0.0
        %2193 = vmatpush2.msra.mxu0 0.0
        %2194 = vmatprep.subr.mxu0 0.0
        %2195 = vmatpush2.msra.mxu0 0.0
        %2196 = vmatprep.subr.mxu0 0.0
        %2197 = vmatpush2.msra.mxu0 0.0
        %2198 = vmatprep.subr.mxu0 0.0
        %2199 = vmatpush2.msra.mxu0 0.0
        %2200 = vmatprep.subr.mxu0 0.0
        %2201 = vmatpush2.msra.mxu0 0.0
        %2202 = vmatprep.subr.mxu0 0.0
        %2203 = vmatpush2.msra.mxu0 0.0
        %2204 = vmatprep.subr.mxu0 0.0
        %2205 = vmatpush2.msra.mxu0 0.0
        %2206 = vmatprep.subr.mxu0 0.0
        %2207 = vmatpush2.msra.mxu0 0.0
        %2208 = vmatprep.subr.mxu0 0.0
        %2209 = vmatpush2.msra.mxu0 0.0
        %2210 = vmatprep.subr.mxu0 0.0
        %2211 = vmatpush2.msra.mxu0 0.0
        %2212 = vmatprep.subr.mxu0 0.0
        %2213 = vmatpush2.msra.mxu0 0.0
        %2214 = vmatprep.subr.mxu0 0.0
        %2215 = vmatpush2.msra.mxu0 0.0
        %2216 = vmatprep.subr.mxu0 0.0
        %2217 = vmatpush2.msra.mxu0 0.0
        %2218 = vmatprep.mubr.f32.mxu0 0.0
        %2219 = vmatmul.mubr.f32.gmra.mxu0 %v2152
        %v2220 = vpop.f32.mrf.mxu0
        %v2221 = vadd.f32 0.0, %v2220
        %v2222 = vpop.f32.mrf.mxu0
        %2223 = vdwg.mxu0
        %v2224 = vld [vmem:[%s6 + $0x140] sm:$0xff]
        %v2225 = vld [vmem:[%s6 + $0x148] sm:$0xff]
        %v2226 = vld [vmem:[%s6 + $0x150] sm:$0xff]
        %v2227 = vld [vmem:[%s6 + $0x158] sm:$0xff]
        %v2228 = vld [vmem:[%s6 + $0x160] sm:$0xff]
        %v2229 = vld [vmem:[%s6 + $0x168] sm:$0xff]
        %v2230 = vld [vmem:[%s6 + $0x170] sm:$0xff]
        %v2231 = vld [vmem:[%s6 + $0x178] sm:$0xff]
        %v2233 = vsel %vm825, %v2221, 0
        %2235 = vmatprep.subr.mxu0 0.0
        %2236 = vmatpush1.msra.mxu0 0.0
        %2237 = vmatprep.subr.mxu0 0.0
        %2238 = vmatpush1.msra.mxu0 0.0
        %2239 = vmatprep.subr.mxu0 0.0
        %2240 = vmatpush1.msra.mxu0 0.0
        %2241 = vmatprep.subr.mxu0 0.0
        %2242 = vmatpush1.msra.mxu0 0.0
        %2243 = vmatprep.subr.mxu0 0.0
        %2244 = vmatpush1.msra.mxu0 0.0
        %2245 = vmatprep.subr.mxu0 0.0
        %2246 = vmatpush1.msra.mxu0 0.0
        %2247 = vmatprep.subr.mxu0 0.0
        %2248 = vmatpush1.msra.mxu0 0.0
        %2249 = vmatprep.subr.mxu0 0.0
        %2250 = vmatpush1.msra.mxu0 0.0
        %2251 = vmatprep.subr.mxu0 0.0
        %2252 = vmatpush1.msra.mxu0 %v2231
        %2253 = vmatprep.subr.mxu0 0.0
        %2254 = vmatpush1.msra.mxu0 %v2230
        %2255 = vmatprep.subr.mxu0 0.0
        %2256 = vmatpush1.msra.mxu0 %v2229
        %2257 = vmatprep.subr.mxu0 0.0
        %2258 = vmatpush1.msra.mxu0 %v2228
        %2259 = vmatprep.subr.mxu0 0.0
        %2260 = vmatpush1.msra.mxu0 %v2227
        %2261 = vmatprep.subr.mxu0 0.0
        %2262 = vmatpush1.msra.mxu0 %v2226
        %2263 = vmatprep.subr.mxu0 0.0
        %2264 = vmatpush1.msra.mxu0 %v2225
        %2265 = vmatprep.subr.mxu0 0.0
        %2266 = vmatpush1.msra.mxu0 %v2224
        %2267 = vmatprep.subr.mxu0 0.0
        %2268 = vmatpush2.msra.mxu0 0.0
        %2269 = vmatprep.subr.mxu0 0.0
        %2270 = vmatpush2.msra.mxu0 0.0
        %2271 = vmatprep.subr.mxu0 0.0
        %2272 = vmatpush2.msra.mxu0 0.0
        %2273 = vmatprep.subr.mxu0 0.0
        %2274 = vmatpush2.msra.mxu0 0.0
        %2275 = vmatprep.subr.mxu0 0.0
        %2276 = vmatpush2.msra.mxu0 0.0
        %2277 = vmatprep.subr.mxu0 0.0
        %2278 = vmatpush2.msra.mxu0 0.0
        %2279 = vmatprep.subr.mxu0 0.0
        %2280 = vmatpush2.msra.mxu0 0.0
        %2281 = vmatprep.subr.mxu0 0.0
        %2282 = vmatpush2.msra.mxu0 0.0
        %2283 = vmatprep.subr.mxu0 0.0
        %2284 = vmatpush2.msra.mxu0 0.0
        %2285 = vmatprep.subr.mxu0 0.0
        %2286 = vmatpush2.msra.mxu0 0.0
        %2287 = vmatprep.subr.mxu0 0.0
        %2288 = vmatpush2.msra.mxu0 0.0
        %2289 = vmatprep.subr.mxu0 0.0
        %2290 = vmatpush2.msra.mxu0 0.0
        %2291 = vmatprep.subr.mxu0 0.0
        %2292 = vmatpush2.msra.mxu0 0.0
        %2293 = vmatprep.subr.mxu0 0.0
        %2294 = vmatpush2.msra.mxu0 0.0
        %2295 = vmatprep.subr.mxu0 0.0
        %2296 = vmatpush2.msra.mxu0 0.0
        %2297 = vmatprep.subr.mxu0 0.0
        %2298 = vmatpush2.msra.mxu0 0.0
        %2299 = vmatprep.mubr.f32.mxu0 0.0
        %2300 = vmatmul.mubr.f32.gmra.mxu0 %v2233
        %v2301 = vpop.f32.mrf.mxu0
        %v2302 = vadd.f32 0.0, %v2301
        %v2303 = vpop.f32.mrf.mxu0
        %2304 = vdwg.mxu0
        %v2305 = vadd.f32 %v2055, %v2302
        %v2307 = vsel %vm825, %v508, 0
        %v2310 = vsel %vm825, %v665, 0
        %2312 = vmatprep.subr.mxu0 0.0
        %2313 = vmatpush1.xpose.msra.mxu0 0.0
        %2314 = vmatprep.subr.mxu0 0.0
        %2315 = vmatpush1.xpose.msra.mxu0 0.0
        %2316 = vmatprep.subr.mxu0 0.0
        %2317 = vmatpush1.xpose.msra.mxu0 0.0
        %2318 = vmatprep.subr.mxu0 0.0
        %2319 = vmatpush1.xpose.msra.mxu0 0.0
        %2320 = vmatprep.subr.mxu0 0.0
        %2321 = vmatpush1.xpose.msra.mxu0 0.0
        %2322 = vmatprep.subr.mxu0 0.0
        %2323 = vmatpush1.xpose.msra.mxu0 0.0
        %2324 = vmatprep.subr.mxu0 0.0
        %2325 = vmatpush1.xpose.msra.mxu0 0.0
        %2326 = vmatprep.subr.mxu0 0.0
        %2327 = vmatpush1.xpose.msra.mxu0 0.0
        %2328 = vmatprep.subr.mxu0 0.0
        %2329 = vmatpush1.xpose.msra.mxu0 0.0
        %2330 = vmatprep.subr.mxu0 0.0
        %2331 = vmatpush1.xpose.msra.mxu0 0.0
        %2332 = vmatprep.subr.mxu0 0.0
        %2333 = vmatpush1.xpose.msra.mxu0 0.0
        %2334 = vmatprep.subr.mxu0 0.0
        %2335 = vmatpush1.xpose.msra.mxu0 0.0
        %2336 = vmatprep.subr.mxu0 0.0
        %2337 = vmatpush1.xpose.msra.mxu0 0.0
        %2338 = vmatprep.subr.mxu0 0.0
        %2339 = vmatpush1.xpose.msra.mxu0 0.0
        %2340 = vmatprep.subr.mxu0 0.0
        %2341 = vmatpush1.xpose.msra.mxu0 0.0
        %2342 = vmatprep.subr.mxu0 0.0
        %2343 = vmatpush1.xpose.msra.mxu0 %v2310
        %2344 = vmatprep.subr.mxu0 0.0
        %2345 = vmatpush2.xpose.msra.mxu0 0.0
        %2346 = vmatprep.subr.mxu0 0.0
        %2347 = vmatpush2.xpose.msra.mxu0 0.0
        %2348 = vmatprep.subr.mxu0 0.0
        %2349 = vmatpush2.xpose.msra.mxu0 0.0
        %2350 = vmatprep.subr.mxu0 0.0
        %2351 = vmatpush2.xpose.msra.mxu0 0.0
        %2352 = vmatprep.subr.mxu0 0.0
        %2353 = vmatpush2.xpose.msra.mxu0 0.0
        %2354 = vmatprep.subr.mxu0 0.0
        %2355 = vmatpush2.xpose.msra.mxu0 0.0
        %2356 = vmatprep.subr.mxu0 0.0
        %2357 = vmatpush2.xpose.msra.mxu0 0.0
        %2358 = vmatprep.subr.mxu0 0.0
        %2359 = vmatpush2.xpose.msra.mxu0 0.0
        %2360 = vmatprep.subr.mxu0 0.0
        %2361 = vmatpush2.xpose.msra.mxu0 0.0
        %2362 = vmatprep.subr.mxu0 0.0
        %2363 = vmatpush2.xpose.msra.mxu0 0.0
        %2364 = vmatprep.subr.mxu0 0.0
        %2365 = vmatpush2.xpose.msra.mxu0 0.0
        %2366 = vmatprep.subr.mxu0 0.0
        %2367 = vmatpush2.xpose.msra.mxu0 0.0
        %2368 = vmatprep.subr.mxu0 0.0
        %2369 = vmatpush2.xpose.msra.mxu0 0.0
        %2370 = vmatprep.subr.mxu0 0.0
        %2371 = vmatpush2.xpose.msra.mxu0 0.0
        %2372 = vmatprep.subr.mxu0 0.0
        %2373 = vmatpush2.xpose.msra.mxu0 0.0
        %2374 = vmatprep.subr.mxu0 0.0
        %2375 = vmatpush2.xpose.msra.mxu0 0.0
        %2376 = vmatprep.mubr.f32.mxu0 0.0
        %2377 = vmatmul.mubr.f32.gmra.mxu0 %v2307
        %v2378 = vpop.f32.mrf.mxu0
        %v2379 = vadd.f32 0.0, %v2378
        %v2380 = vpop.f32.mrf.mxu0
        %2381 = vdwg.mxu0
        %v2382 = vsel %vm902, %v2379, -inf
        %2383 = vmax.xlane.f32.xlu0 %v2382
        %v2384 = vpop.xlane.xlu0 %2383
        %v2385 = vsub.f32 %v2379, %v2384
        %v2386 = vmul.f32 %v2385, 1.442695
        %v2387 = vpow.pop %v2386
        %v2388 = vsel %vm902, %v2387, 0.0
        %2389 = vadd.xlane.f32.xlu0 %v2388
        %v2390 = vpop.xlane.xlu0 %2389
        %v2391 = vrcp.pop %v2390
        %v2392 = vmul.f32 %v2387, %v2391
        %s2393 = scalar_lea.vmem %s307, 48 [#allocation4]
        %2394 = vst.msk [vmem:[%s2393] sm:$0xff] %vm902, %v2392
        %v2396 = vsel %vm902, %v2392, 0
        %2398 = vmatprep.subr.mxu0 0.0
        %2399 = vmatpush1.msra.mxu0 0.0
        %2400 = vmatprep.subr.mxu0 0.0
        %2401 = vmatpush1.msra.mxu0 0.0
        %2402 = vmatprep.subr.mxu0 0.0
        %2403 = vmatpush1.msra.mxu0 0.0
        %2404 = vmatprep.subr.mxu0 0.0
        %2405 = vmatpush1.msra.mxu0 0.0
        %2406 = vmatprep.subr.mxu0 0.0
        %2407 = vmatpush1.msra.mxu0 0.0
        %2408 = vmatprep.subr.mxu0 0.0
        %2409 = vmatpush1.msra.mxu0 0.0
        %2410 = vmatprep.subr.mxu0 0.0
        %2411 = vmatpush1.msra.mxu0 0.0
        %2412 = vmatprep.subr.mxu0 0.0
        %2413 = vmatpush1.msra.mxu0 0.0
        %2414 = vmatprep.subr.mxu0 0.0
        %2415 = vmatpush1.msra.mxu0 0.0
        %2416 = vmatprep.subr.mxu0 0.0
        %2417 = vmatpush1.msra.mxu0 0.0
        %2418 = vmatprep.subr.mxu0 0.0
        %2419 = vmatpush1.msra.mxu0 0.0
        %2420 = vmatprep.subr.mxu0 0.0
        %2421 = vmatpush1.msra.mxu0 0.0
        %2422 = vmatprep.subr.mxu0 0.0
        %2423 = vmatpush1.msra.mxu0 0.0
        %2424 = vmatprep.subr.mxu0 0.0
        %2425 = vmatpush1.msra.mxu0 0.0
        %2426 = vmatprep.subr.mxu0 0.0
        %2427 = vmatpush1.msra.mxu0 0.0
        %2428 = vmatprep.subr.mxu0 0.0
        %2429 = vmatpush1.msra.mxu0 %v823
        %2430 = vmatprep.subr.mxu0 0.0
        %2431 = vmatpush2.msra.mxu0 0.0
        %2432 = vmatprep.subr.mxu0 0.0
        %2433 = vmatpush2.msra.mxu0 0.0
        %2434 = vmatprep.subr.mxu0 0.0
        %2435 = vmatpush2.msra.mxu0 0.0
        %2436 = vmatprep.subr.mxu0 0.0
        %2437 = vmatpush2.msra.mxu0 0.0
        %2438 = vmatprep.subr.mxu0 0.0
        %2439 = vmatpush2.msra.mxu0 0.0
        %2440 = vmatprep.subr.mxu0 0.0
        %2441 = vmatpush2.msra.mxu0 0.0
        %2442 = vmatprep.subr.mxu0 0.0
        %2443 = vmatpush2.msra.mxu0 0.0
        %2444 = vmatprep.subr.mxu0 0.0
        %2445 = vmatpush2.msra.mxu0 0.0
        %2446 = vmatprep.subr.mxu0 0.0
        %2447 = vmatpush2.msra.mxu0 0.0
        %2448 = vmatprep.subr.mxu0 0.0
        %2449 = vmatpush2.msra.mxu0 0.0
        %2450 = vmatprep.subr.mxu0 0.0
        %2451 = vmatpush2.msra.mxu0 0.0
        %2452 = vmatprep.subr.mxu0 0.0
        %2453 = vmatpush2.msra.mxu0 0.0
        %2454 = vmatprep.subr.mxu0 0.0
        %2455 = vmatpush2.msra.mxu0 0.0
        %2456 = vmatprep.subr.mxu0 0.0
        %2457 = vmatpush2.msra.mxu0 0.0
        %2458 = vmatprep.subr.mxu0 0.0
        %2459 = vmatpush2.msra.mxu0 0.0
        %2460 = vmatprep.subr.mxu0 0.0
        %2461 = vmatpush2.msra.mxu0 0.0
        %2462 = vmatprep.mubr.f32.mxu0 0.0
        %2463 = vmatmul.mubr.f32.gmra.mxu0 %v2396
        %v2464 = vpop.f32.mrf.mxu0
        %v2465 = vadd.f32 0.0, %v2464
        %v2466 = vpop.f32.mrf.mxu0
        %2467 = vdwg.mxu0
        %v2468 = vld [vmem:[%s6 + $0x180] sm:$0xff]
        %v2469 = vld [vmem:[%s6 + $0x188] sm:$0xff]
        %v2470 = vld [vmem:[%s6 + $0x190] sm:$0xff]
        %v2471 = vld [vmem:[%s6 + $0x198] sm:$0xff]
        %v2472 = vld [vmem:[%s6 + $0x1a0] sm:$0xff]
        %v2473 = vld [vmem:[%s6 + $0x1a8] sm:$0xff]
        %v2474 = vld [vmem:[%s6 + $0x1b0] sm:$0xff]
        %v2475 = vld [vmem:[%s6 + $0x1b8] sm:$0xff]
        %v2477 = vsel %vm825, %v2465, 0
        %2479 = vmatprep.subr.mxu0 0.0
        %2480 = vmatpush1.msra.mxu0 0.0
        %2481 = vmatprep.subr.mxu0 0.0
        %2482 = vmatpush1.msra.mxu0 0.0
        %2483 = vmatprep.subr.mxu0 0.0
        %2484 = vmatpush1.msra.mxu0 0.0
        %2485 = vmatprep.subr.mxu0 0.0
        %2486 = vmatpush1.msra.mxu0 0.0
        %2487 = vmatprep.subr.mxu0 0.0
        %2488 = vmatpush1.msra.mxu0 0.0
        %2489 = vmatprep.subr.mxu0 0.0
        %2490 = vmatpush1.msra.mxu0 0.0
        %2491 = vmatprep.subr.mxu0 0.0
        %2492 = vmatpush1.msra.mxu0 0.0
        %2493 = vmatprep.subr.mxu0 0.0
        %2494 = vmatpush1.msra.mxu0 0.0
        %2495 = vmatprep.subr.mxu0 0.0
        %2496 = vmatpush1.msra.mxu0 %v2475
        %2497 = vmatprep.subr.mxu0 0.0
        %2498 = vmatpush1.msra.mxu0 %v2474
        %2499 = vmatprep.subr.mxu0 0.0
        %2500 = vmatpush1.msra.mxu0 %v2473
        %2501 = vmatprep.subr.mxu0 0.0
        %2502 = vmatpush1.msra.mxu0 %v2472
        %2503 = vmatprep.subr.mxu0 0.0
        %2504 = vmatpush1.msra.mxu0 %v2471
        %2505 = vmatprep.subr.mxu0 0.0
        %2506 = vmatpush1.msra.mxu0 %v2470
        %2507 = vmatprep.subr.mxu0 0.0
        %2508 = vmatpush1.msra.mxu0 %v2469
        %2509 = vmatprep.subr.mxu0 0.0
        %2510 = vmatpush1.msra.mxu0 %v2468
        %2511 = vmatprep.subr.mxu0 0.0
        %2512 = vmatpush2.msra.mxu0 0.0
        %2513 = vmatprep.subr.mxu0 0.0
        %2514 = vmatpush2.msra.mxu0 0.0
        %2515 = vmatprep.subr.mxu0 0.0
        %2516 = vmatpush2.msra.mxu0 0.0
        %2517 = vmatprep.subr.mxu0 0.0
        %2518 = vmatpush2.msra.mxu0 0.0
        %2519 = vmatprep.subr.mxu0 0.0
        %2520 = vmatpush2.msra.mxu0 0.0
        %2521 = vmatprep.subr.mxu0 0.0
        %2522 = vmatpush2.msra.mxu0 0.0
        %2523 = vmatprep.subr.mxu0 0.0
        %2524 = vmatpush2.msra.mxu0 0.0
        %2525 = vmatprep.subr.mxu0 0.0
        %2526 = vmatpush2.msra.mxu0 0.0
        %2527 = vmatprep.subr.mxu0 0.0
        %2528 = vmatpush2.msra.mxu0 0.0
        %2529 = vmatprep.subr.mxu0 0.0
        %2530 = vmatpush2.msra.mxu0 0.0
        %2531 = vmatprep.subr.mxu0 0.0
        %2532 = vmatpush2.msra.mxu0 0.0
        %2533 = vmatprep.subr.mxu0 0.0
        %2534 = vmatpush2.msra.mxu0 0.0
        %2535 = vmatprep.subr.mxu0 0.0
        %2536 = vmatpush2.msra.mxu0 0.0
        %2537 = vmatprep.subr.mxu0 0.0
        %2538 = vmatpush2.msra.mxu0 0.0
        %2539 = vmatprep.subr.mxu0 0.0
        %2540 = vmatpush2.msra.mxu0 0.0
        %2541 = vmatprep.subr.mxu0 0.0
        %2542 = vmatpush2.msra.mxu0 0.0
        %2543 = vmatprep.mubr.f32.mxu0 0.0
        %2544 = vmatmul.mubr.f32.gmra.mxu0 %v2477
        %v2545 = vpop.f32.mrf.mxu0
        %v2546 = vadd.f32 0.0, %v2545
        %v2547 = vpop.f32.mrf.mxu0
        %2548 = vdwg.mxu0
        %v2549 = vadd.f32 %v2305, %v2546
        %2550 = vrot.lane.b32.xlu0 %v508, 64
        %v2551 = vpop.permute.xlu0 %2550
        %2552 = vrot.lane.b32.xlu0 %v665, 64
        %v2553 = vpop.permute.xlu0 %2552
        %v2554 = vsel %vm825, %v2551, 0
        %v2556 = vsel %vm825, %v2553, 0
        %2558 = vmatprep.subr.mxu0 0.0
        %2559 = vmatpush1.xpose.msra.mxu0 0.0
        %2560 = vmatprep.subr.mxu0 0.0
        %2561 = vmatpush1.xpose.msra.mxu0 0.0
        %2562 = vmatprep.subr.mxu0 0.0
        %2563 = vmatpush1.xpose.msra.mxu0 0.0
        %2564 = vmatprep.subr.mxu0 0.0
        %2565 = vmatpush1.xpose.msra.mxu0 0.0
        %2566 = vmatprep.subr.mxu0 0.0
        %2567 = vmatpush1.xpose.msra.mxu0 0.0
        %2568 = vmatprep.subr.mxu0 0.0
        %2569 = vmatpush1.xpose.msra.mxu0 0.0
        %2570 = vmatprep.subr.mxu0 0.0
        %2571 = vmatpush1.xpose.msra.mxu0 0.0
        %2572 = vmatprep.subr.mxu0 0.0
        %2573 = vmatpush1.xpose.msra.mxu0 0.0
        %2574 = vmatprep.subr.mxu0 0.0
        %2575 = vmatpush1.xpose.msra.mxu0 0.0
        %2576 = vmatprep.subr.mxu0 0.0
        %2577 = vmatpush1.xpose.msra.mxu0 0.0
        %2578 = vmatprep.subr.mxu0 0.0
        %2579 = vmatpush1.xpose.msra.mxu0 0.0
        %2580 = vmatprep.subr.mxu0 0.0
        %2581 = vmatpush1.xpose.msra.mxu0 0.0
        %2582 = vmatprep.subr.mxu0 0.0
        %2583 = vmatpush1.xpose.msra.mxu0 0.0
        %2584 = vmatprep.subr.mxu0 0.0
        %2585 = vmatpush1.xpose.msra.mxu0 0.0
        %2586 = vmatprep.subr.mxu0 0.0
        %2587 = vmatpush1.xpose.msra.mxu0 0.0
        %2588 = vmatprep.subr.mxu0 0.0
        %2589 = vmatpush1.xpose.msra.mxu0 %v2556
        %2590 = vmatprep.subr.mxu0 0.0
        %2591 = vmatpush2.xpose.msra.mxu0 0.0
        %2592 = vmatprep.subr.mxu0 0.0
        %2593 = vmatpush2.xpose.msra.mxu0 0.0
        %2594 = vmatprep.subr.mxu0 0.0
        %2595 = vmatpush2.xpose.msra.mxu0 0.0
        %2596 = vmatprep.subr.mxu0 0.0
        %2597 = vmatpush2.xpose.msra.mxu0 0.0
        %2598 = vmatprep.subr.mxu0 0.0
        %2599 = vmatpush2.xpose.msra.mxu0 0.0
        %2600 = vmatprep.subr.mxu0 0.0
        %2601 = vmatpush2.xpose.msra.mxu0 0.0
        %2602 = vmatprep.subr.mxu0 0.0
        %2603 = vmatpush2.xpose.msra.mxu0 0.0
        %2604 = vmatprep.subr.mxu0 0.0
        %2605 = vmatpush2.xpose.msra.mxu0 0.0
        %2606 = vmatprep.subr.mxu0 0.0
        %2607 = vmatpush2.xpose.msra.mxu0 0.0
        %2608 = vmatprep.subr.mxu0 0.0
        %2609 = vmatpush2.xpose.msra.mxu0 0.0
        %2610 = vmatprep.subr.mxu0 0.0
        %2611 = vmatpush2.xpose.msra.mxu0 0.0
        %2612 = vmatprep.subr.mxu0 0.0
        %2613 = vmatpush2.xpose.msra.mxu0 0.0
        %2614 = vmatprep.subr.mxu0 0.0
        %2615 = vmatpush2.xpose.msra.mxu0 0.0
        %2616 = vmatprep.subr.mxu0 0.0
        %2617 = vmatpush2.xpose.msra.mxu0 0.0
        %2618 = vmatprep.subr.mxu0 0.0
        %2619 = vmatpush2.xpose.msra.mxu0 0.0
        %2620 = vmatprep.subr.mxu0 0.0
        %2621 = vmatpush2.xpose.msra.mxu0 0.0
        %2622 = vmatprep.mubr.f32.mxu0 0.0
        %2623 = vmatmul.mubr.f32.gmra.mxu0 %v2554
        %v2624 = vpop.f32.mrf.mxu0
        %v2625 = vadd.f32 0.0, %v2624
        %v2626 = vpop.f32.mrf.mxu0
        %2627 = vdwg.mxu0
        %v2628 = vsel %vm902, %v2625, -inf
        %2629 = vmax.xlane.f32.xlu0 %v2628
        %v2630 = vpop.xlane.xlu0 %2629
        %v2631 = vsub.f32 %v2625, %v2630
        %v2632 = vmul.f32 %v2631, 1.442695
        %v2633 = vpow.pop %v2632
        %v2634 = vsel %vm902, %v2633, 0.0
        %2635 = vadd.xlane.f32.xlu0 %v2634
        %v2636 = vpop.xlane.xlu0 %2635
        %v2637 = vrcp.pop %v2636
        %v2638 = vmul.f32 %v2633, %v2637
        %s2639 = scalar_lea.vmem %s307, 56 [#allocation4]
        %2640 = vst.msk [vmem:[%s2639] sm:$0xff] %vm902, %v2638
        %2642 = vrot.lane.b32.xlu0 %v823, 64
        %v2643 = vpop.permute.xlu0 %2642
        %v2646 = vsel %vm902, %v2638, 0
        %2648 = vmatprep.subr.mxu0 0.0
        %2649 = vmatpush1.msra.mxu0 0.0
        %2650 = vmatprep.subr.mxu0 0.0
        %2651 = vmatpush1.msra.mxu0 0.0
        %2652 = vmatprep.subr.mxu0 0.0
        %2653 = vmatpush1.msra.mxu0 0.0
        %2654 = vmatprep.subr.mxu0 0.0
        %2655 = vmatpush1.msra.mxu0 0.0
        %2656 = vmatprep.subr.mxu0 0.0
        %2657 = vmatpush1.msra.mxu0 0.0
        %2658 = vmatprep.subr.mxu0 0.0
        %2659 = vmatpush1.msra.mxu0 0.0
        %2660 = vmatprep.subr.mxu0 0.0
        %2661 = vmatpush1.msra.mxu0 0.0
        %2662 = vmatprep.subr.mxu0 0.0
        %2663 = vmatpush1.msra.mxu0 0.0
        %2664 = vmatprep.subr.mxu0 0.0
        %2665 = vmatpush1.msra.mxu0 0.0
        %2666 = vmatprep.subr.mxu0 0.0
        %2667 = vmatpush1.msra.mxu0 0.0
        %2668 = vmatprep.subr.mxu0 0.0
        %2669 = vmatpush1.msra.mxu0 0.0
        %2670 = vmatprep.subr.mxu0 0.0
        %2671 = vmatpush1.msra.mxu0 0.0
        %2672 = vmatprep.subr.mxu0 0.0
        %2673 = vmatpush1.msra.mxu0 0.0
        %2674 = vmatprep.subr.mxu0 0.0
        %2675 = vmatpush1.msra.mxu0 0.0
        %2676 = vmatprep.subr.mxu0 0.0
        %2677 = vmatpush1.msra.mxu0 0.0
        %2678 = vmatprep.subr.mxu0 0.0
        %2679 = vmatpush1.msra.mxu0 %v2643
        %2680 = vmatprep.subr.mxu0 0.0
        %2681 = vmatpush2.msra.mxu0 0.0
        %2682 = vmatprep.subr.mxu0 0.0
        %2683 = vmatpush2.msra.mxu0 0.0
        %2684 = vmatprep.subr.mxu0 0.0
        %2685 = vmatpush2.msra.mxu0 0.0
        %2686 = vmatprep.subr.mxu0 0.0
        %2687 = vmatpush2.msra.mxu0 0.0
        %2688 = vmatprep.subr.mxu0 0.0
        %2689 = vmatpush2.msra.mxu0 0.0
        %2690 = vmatprep.subr.mxu0 0.0
        %2691 = vmatpush2.msra.mxu0 0.0
        %2692 = vmatprep.subr.mxu0 0.0
        %2693 = vmatpush2.msra.mxu0 0.0
        %2694 = vmatprep.subr.mxu0 0.0
        %2695 = vmatpush2.msra.mxu0 0.0
        %2696 = vmatprep.subr.mxu0 0.0
        %2697 = vmatpush2.msra.mxu0 0.0
        %2698 = vmatprep.subr.mxu0 0.0
        %2699 = vmatpush2.msra.mxu0 0.0
        %2700 = vmatprep.subr.mxu0 0.0
        %2701 = vmatpush2.msra.mxu0 0.0
        %2702 = vmatprep.subr.mxu0 0.0
        %2703 = vmatpush2.msra.mxu0 0.0
        %2704 = vmatprep.subr.mxu0 0.0
        %2705 = vmatpush2.msra.mxu0 0.0
        %2706 = vmatprep.subr.mxu0 0.0
        %2707 = vmatpush2.msra.mxu0 0.0
        %2708 = vmatprep.subr.mxu0 0.0
        %2709 = vmatpush2.msra.mxu0 0.0
        %2710 = vmatprep.subr.mxu0 0.0
        %2711 = vmatpush2.msra.mxu0 0.0
        %2712 = vmatprep.mubr.f32.mxu0 0.0
        %2713 = vmatmul.mubr.f32.gmra.mxu0 %v2646
        %v2714 = vpop.f32.mrf.mxu0
        %v2715 = vadd.f32 0.0, %v2714
        %v2716 = vpop.f32.mrf.mxu0
        %2717 = vdwg.mxu0
        %v2718 = vld [vmem:[%s6 + $0x1c0] sm:$0xff]
        %v2719 = vld [vmem:[%s6 + $0x1c8] sm:$0xff]
        %v2720 = vld [vmem:[%s6 + $0x1d0] sm:$0xff]
        %v2721 = vld [vmem:[%s6 + $0x1d8] sm:$0xff]
        %v2722 = vld [vmem:[%s6 + $0x1e0] sm:$0xff]
        %v2723 = vld [vmem:[%s6 + $0x1e8] sm:$0xff]
        %v2724 = vld [vmem:[%s6 + $0x1f0] sm:$0xff]
        %v2725 = vld [vmem:[%s6 + $0x1f8] sm:$0xff]
        %v2727 = vsel %vm825, %v2715, 0
        %2729 = vmatprep.subr.mxu0 0.0
        %2730 = vmatpush1.msra.mxu0 0.0
        %2731 = vmatprep.subr.mxu0 0.0
        %2732 = vmatpush1.msra.mxu0 0.0
        %2733 = vmatprep.subr.mxu0 0.0
        %2734 = vmatpush1.msra.mxu0 0.0
        %2735 = vmatprep.subr.mxu0 0.0
        %2736 = vmatpush1.msra.mxu0 0.0
        %2737 = vmatprep.subr.mxu0 0.0
        %2738 = vmatpush1.msra.mxu0 0.0
        %2739 = vmatprep.subr.mxu0 0.0
        %2740 = vmatpush1.msra.mxu0 0.0
        %2741 = vmatprep.subr.mxu0 0.0
        %2742 = vmatpush1.msra.mxu0 0.0
        %2743 = vmatprep.subr.mxu0 0.0
        %2744 = vmatpush1.msra.mxu0 0.0
        %2745 = vmatprep.subr.mxu0 0.0
        %2746 = vmatpush1.msra.mxu0 %v2725
        %2747 = vmatprep.subr.mxu0 0.0
        %2748 = vmatpush1.msra.mxu0 %v2724
        %2749 = vmatprep.subr.mxu0 0.0
        %2750 = vmatpush1.msra.mxu0 %v2723
        %2751 = vmatprep.subr.mxu0 0.0
        %2752 = vmatpush1.msra.mxu0 %v2722
        %2753 = vmatprep.subr.mxu0 0.0
        %2754 = vmatpush1.msra.mxu0 %v2721
        %2755 = vmatprep.subr.mxu0 0.0
        %2756 = vmatpush1.msra.mxu0 %v2720
        %2757 = vmatprep.subr.mxu0 0.0
        %2758 = vmatpush1.msra.mxu0 %v2719
        %2759 = vmatprep.subr.mxu0 0.0
        %2760 = vmatpush1.msra.mxu0 %v2718
        %2761 = vmatprep.subr.mxu0 0.0
        %2762 = vmatpush2.msra.mxu0 0.0
        %2763 = vmatprep.subr.mxu0 0.0
        %2764 = vmatpush2.msra.mxu0 0.0
        %2765 = vmatprep.subr.mxu0 0.0
        %2766 = vmatpush2.msra.mxu0 0.0
        %2767 = vmatprep.subr.mxu0 0.0
        %2768 = vmatpush2.msra.mxu0 0.0
        %2769 = vmatprep.subr.mxu0 0.0
        %2770 = vmatpush2.msra.mxu0 0.0
        %2771 = vmatprep.subr.mxu0 0.0
        %2772 = vmatpush2.msra.mxu0 0.0
        %2773 = vmatprep.subr.mxu0 0.0
        %2774 = vmatpush2.msra.mxu0 0.0
        %2775 = vmatprep.subr.mxu0 0.0
        %2776 = vmatpush2.msra.mxu0 0.0
        %2777 = vmatprep.subr.mxu0 0.0
        %2778 = vmatpush2.msra.mxu0 0.0
        %2779 = vmatprep.subr.mxu0 0.0
        %2780 = vmatpush2.msra.mxu0 0.0
        %2781 = vmatprep.subr.mxu0 0.0
        %2782 = vmatpush2.msra.mxu0 0.0
        %2783 = vmatprep.subr.mxu0 0.0
        %2784 = vmatpush2.msra.mxu0 0.0
        %2785 = vmatprep.subr.mxu0 0.0
        %2786 = vmatpush2.msra.mxu0 0.0
        %2787 = vmatprep.subr.mxu0 0.0
        %2788 = vmatpush2.msra.mxu0 0.0
        %2789 = vmatprep.subr.mxu0 0.0
        %2790 = vmatpush2.msra.mxu0 0.0
        %2791 = vmatprep.subr.mxu0 0.0
        %2792 = vmatpush2.msra.mxu0 0.0
        %2793 = vmatprep.mubr.f32.mxu0 0.0
        %2794 = vmatmul.mubr.f32.gmra.mxu0 %v2727
        %v2795 = vpop.f32.mrf.mxu0
        %v2796 = vadd.f32 0.0, %v2795
        %v2797 = vpop.f32.mrf.mxu0
        %2798 = vdwg.mxu0
        %v2799 = vadd.f32 %v2549, %v2796
        %2800 = vst.msk [vmem:[%s300] sm:$0xff] %vm313, %v2799
        %s2801 = sand.u32 %s186, 1
        %s2802 = scalar_lea.sflag [#allocation3], %s2801
        %s2803 = sand.u32 %s186, 1
        %s2804 = smul.addr %s2803, 8
        %s2805 = scalar_lea.vmem [#allocation2], %s2804
        %s2806 = sand.u32 %s212, 1
        %s2807 = scalar_lea.sflag [#allocation5], %s2806
        %s2808 = sand.u32 %s212, 1
        %s2809 = smul.addr %s2808, 64
        %s2810 = scalar_lea.vmem [#allocation4], %s2809
        // Predicated region
        $region49: #{tpu_custom_call.1} parent=47 // pred_check
          %p2811 = pneg %p196
        $region50: #{tpu_custom_call.1} parent=47 // pred_check_branch
          %2813 = sbr.rel (%p2811) target = $region52
        $region51: #{tpu_custom_call.1} parent=47 // pred_region
          %s2815 = ssub.s32 128, 128
          %2816 = vsyncadd %s2802, %s2815
          %s2817 = smul.addr %s26, 128
          %s2818 = scalar_lea.hbm %s7, %s2817
          %s2820 = sshll.u32 %s2805, 4
          %s2821 = int_to_ptr.vmem [resolvable:$true] %s2820
          %2823 = dma.vmem_to_hbm [thread:$0]  %s2821, 128, %s2818, %s2802
        $region52: #{tpu_custom_call.1} parent=47 // pred_fallthru
          _
        // Predicated region
        $region53: #{tpu_custom_call.1} parent=47 // pred_check
          %p2824 = pneg %p222
        $region54: #{tpu_custom_call.1} parent=47 // pred_check_branch
          %2826 = sbr.rel (%p2824) target = $region56
        $region55: #{tpu_custom_call.1} parent=47 // pred_region
          %s2828 = ssub.s32 1024, 1024
          %2829 = vsyncadd %s2807, %s2828
          %s2830 = smul.addr %s26, 8
          %s2831 = smul.addr %s2830, 128
          %s2832 = scalar_lea.hbm %s8, %s2831
          %s2833 = sshll.u32 %s2810, 4
          %s2834 = int_to_ptr.vmem [resolvable:$true] %s2833
          %2839 = dma.vmem_to_hbm [thread:$0]  %s2834, 1024, %s2832, %s2807, 128, 128, 8
        $region56: #{tpu_custom_call.1} parent=47 // pred_fallthru
          _
      $region48: #{tpu_custom_call.1} parent=5 // pred_fallthru
        _
      %p2840 = scmp.le.s32.totalorder 2, %s21
      // Predicated region
      $region57: #{tpu_custom_call.1} parent=5 // pred_check
        %p2841 = pneg %p2840
      $region58: #{tpu_custom_call.1} parent=5 // pred_check_branch
        %2843 = sbr.rel (%p2841) target = $region60
      $region59: #{tpu_custom_call.1} parent=5 // pred_region
        %s2844 = ssub.s32 %s21, 2
        // Predicated region
        $region61: #{tpu_custom_call.1} parent=59 // pred_check
          %p2845 = pneg %p202
        $region62: #{tpu_custom_call.1} parent=59 // pred_check_branch
          %2847 = sbr.rel (%p2845) target = $region64
        $region63: #{tpu_custom_call.1} parent=59 // pred_region
          %s2848 = sand.u32 %s187, 1
          %s2849 = scalar_lea.sflag [#allocation3], %s2848
          %s2850 = sand.u32 %s187, 1
          %s2851 = smul.addr %s2850, 8
          %s2852 = scalar_lea.vmem [#allocation2], %s2851
          %2853 = dma.done %s2849, 128
        $region64: #{tpu_custom_call.1} parent=59 // pred_fallthru
          _
        // Predicated region
        $region65: #{tpu_custom_call.1} parent=59 // pred_check
          %p2854 = pneg %p228
        $region66: #{tpu_custom_call.1} parent=59 // pred_check_branch
          %2856 = sbr.rel (%p2854) target = $region68
        $region67: #{tpu_custom_call.1} parent=59 // pred_region
          %s2857 = sand.u32 %s213, 1
          %s2858 = scalar_lea.sflag [#allocation5], %s2857
          %s2859 = sand.u32 %s213, 1
          %s2860 = smul.addr %s2859, 64
          %s2861 = scalar_lea.vmem [#allocation4], %s2860
          %2862 = dma.done %s2858, 1024
        $region68: #{tpu_custom_call.1} parent=59 // pred_fallthru
          _
      $region60: #{tpu_custom_call.1} parent=5 // pred_fallthru
        _
    $region6: #{tpu_custom_call.1} parent=1 // loop_footer
      %s25 = sadd.s32 1, %s21
    $region7: #{tpu_custom_call.1} parent=1 // loop_footer_branch
      %20 = sbr.rel target = $region3
    $region8: #{tpu_custom_call.1} parent=1 // loop_exit
      _
    %2863 = vsyncpa [#allocation3], 1
    %s2864 = scalar_lea.sflag [#allocation3], 1
    %2865 = vsyncpa %s2864, 1
    %2866 = vsyncpa [#allocation5], 1
    %s2867 = scalar_lea.sflag [#allocation5], 1
    %2868 = vsyncpa %s2867, 1

</llo_original>
